<compile_context>
chip_gen: v7x
topology: tpu7x:2x2x1
jax: 0.10.0
libtpu: 0.0.40
codegen_flags: <defaults>
</compile_context>

<pallas_src>
import numpy as np
import jax
import jax.numpy as jnp
from jax.experimental import pallas as pl
from jax.experimental.pallas import tpu as pltpu

LRELU_SLOPE = 0.2
BN_EPS = 0.8          # nn.BatchNorm2d(out_filters, 0.8): 2nd positional arg is eps
CPAD = 128            # per-tap Cout lane padding inside Wcat / activations
MAX_BLOCK_BATCH = 8   # images fused per grid step (cap)


# ---------------------------------------------------------------------------
# Fused kernel: whole Discriminator forward for one block of B images.
# ---------------------------------------------------------------------------
def _discriminator_kernel(x_ref, w1_ref, w2_ref, w3_ref, w4_ref,
                          g2_ref, g3_ref, g4_ref, fcw_ref, aff_ref, o_ref):
    # ---- layer 1: conv3x3/s2/p1 as ONE matmul (im2col done in the wrapper) ----
    x = x_ref[...]                                                   # (B*64, 128) bf16
    h = jnp.dot(x, w1_ref[...], preferred_element_type=jnp.float32)  # (B*64, 16)
    h = h + aff_ref[0:1, :16]                                        # conv bias
    h = jnp.maximum(h, LRELU_SLOPE * h)                              # LeakyReLU(0.2)
    h = h.astype(jnp.bfloat16)
    # TODO(synk): nn.Dropout2d(0.25) is identity in eval mode; not implemented.

    # ---- layers 2..4: weight-first (Y = h @ Wcat), then 9 block-diag gathers ----
    for wcat_ref, gblk_ref, cin, row in ((w2_ref, g2_ref, 16, 1),
                                         (w3_ref, g3_ref, 32, 4),
                                         (w4_ref, g4_ref, 64, 7)):
        y = jnp.dot(h[:, :cin], wcat_ref[...],
                    preferred_element_type=jnp.float32)              # (B*Pin, 9*128)
        y = y.astype(jnp.bfloat16)
        rows_out = gblk_ref.shape[1]                                 # B * Pout
        acc = jnp.zeros((rows_out, CPAD), jnp.float32)
        for t in range(9):                       # static unroll, lane-aligned slices
            acc = acc + jnp.dot(gblk_ref[t], y[:, t * CPAD:(t + 1) * CPAD],
                                preferred_element_type=jnp.float32)
        acc = acc + aff_ref[row:row + 1, :]                          # conv bias (pad lanes stay 0)
        acc = jnp.maximum(acc, LRELU_SLOPE * acc)                    # LeakyReLU(0.2)
        acc = acc * aff_ref[row + 1:row + 2, :] + aff_ref[row + 2:row + 3, :]  # eval-BN affine
        h = acc.astype(jnp.bfloat16)

    # ---- Linear(128 -> 1) + Sigmoid; lane-dense (B, 128) store (col 0 real) ----
    z = jnp.dot(h, fcw_ref[...], preferred_element_type=jnp.float32) + aff_ref[10:11, :]
    o_ref[...] = (1.0 / (1.0 + jnp.exp(-z)))[None]                   # (1, B, 128)


# ---------------------------------------------------------------------------
# Host-side parameter / constant preparation (done once at init)
# ---------------------------------------------------------------------------
def init_raw_params(key, channels=4, img_size=16):
    """PyTorch-layout parameters (used by both the kernel prep and the reference)."""
    cfg = [(channels, 16, False), (16, 32, True), (32, 64, True), (64, 128, True)]
    keys = jax.random.split(key, 4 * len(cfg) + 2)
    layers = []
    for i, (cin, cout, bn) in enumerate(cfg):
        kw, kb, kg, kbe = keys[4 * i:4 * i + 4]
        w = 0.02 * jax.random.normal(kw, (cout, cin, 3, 3), jnp.float32)
        b = 0.01 * jax.random.normal(kb, (cout,), jnp.float32)
        if bn:
            gamma = 1.0 + 0.1 * jax.random.normal(kg, (cout,), jnp.float32)
            beta = 0.1 * jax.random.normal(kbe, (cout,), jnp.float32)
            # NOTE: eval-mode BN folded with running_mean=0 / running_var=1 (true for
            # fresh params; trained checkpoints must fold their actual running stats).
            scale = gamma / jnp.sqrt(1.0 + BN_EPS)
            shift = beta
        else:
            scale = jnp.ones((cout,), jnp.float32)
            shift = jnp.zeros((cout,), jnp.float32)
        layers.append(dict(w=w, b=b, scale=scale, shift=shift, cin=cin, cout=cout))
    ds = img_size // 2 ** 4
    fc_in = 128 * ds * ds
    fc_w = 0.02 * jax.random.normal(keys[-2], (1, fc_in), jnp.float32)   # (out, in)
    fc_b = 0.01 * jax.random.normal(keys[-1], (1,), jnp.float32)
    return dict(layers=layers, fc_w=fc_w, fc_b=fc_b,
                img_size=img_size, channels=channels)


def _selection_mats(hw):
    """0/1 matrices mapping a row-major (hw*hw,) pixel axis to the 9 tap slabs of a
    3x3 / stride-2 / pad-1 conv with (hw/2)^2 outputs (zero rows encode padding)."""
    ho = hw // 2
    g = np.zeros((9, ho * ho, hw * hw), np.float32)
    for ky in range(3):
        for kx in range(3):
            t = ky * 3 + kx
            for i in range(ho):
                r = 2 * i + ky - 1
                if r < 0 or r >= hw:
                    continue
                for j in range(ho):
                    c = 2 * j + kx - 1
                    if c < 0 or c >= hw:
                        continue
                    g[t, i * ho + j, r * hw + c] = 1.0
    return g


def prepare_kernel_params(raw, block_batch):
    """Pack weights for the fused kernel: true-Cin Wcat, block-diag gathers, one aff slab."""
    assert raw["img_size"] == 16, "fused kernel assumes img_size == 16 (ds_size == 1)"
    assert 9 * raw["channels"] <= 128, "layer-1 patch row must fit in 128 lanes"
    layers = raw["layers"]
    bb = int(block_batch)

    # layer 1: im2col weight, rows ordered tap-major / channel-minor, padded to 128 rows
    c0 = layers[0]["cin"]
    w0 = np.asarray(layers[0]["w"], np.float32)            # (16, c0, 3, 3)
    w1 = np.zeros((128, 16), np.float32)
    for ky in range(3):
        for kx in range(3):
            t = ky * 3 + kx
            w1[t * c0:(t + 1) * c0, :] = w0[:, :, ky, kx].T

    # layers 2..4: Wcat (Cin_true, 9*128); each tap's Cout zero-padded to a 128-lane block
    def pack_wcat(layer):
        w = np.asarray(layer["w"], np.float32)              # (cout, cin, 3, 3)
        cout, cin = w.shape[0], w.shape[1]
        wc = np.zeros((cin, 9 * CPAD), np.float32)
        for ky in range(3):
            for kx in range(3):
                t = ky * 3 + kx
                wc[:, t * CPAD:t * CPAD + cout] = w[:, :, ky, kx].T
        return jnp.asarray(wc, jnp.bfloat16)

    # block-diagonal selection matrices: bb images stacked along the row axis
    def block_diag(g):
        taps, po, pi = g.shape
        out = np.zeros((taps, bb * po, bb * pi), np.float32)
        for b in range(bb):
            out[:, b * po:(b + 1) * po, b * pi:(b + 1) * pi] = g
        return jnp.asarray(out, jnp.bfloat16)

    # packed bias / eval-BN affine / FC-bias rows (padded lanes are exactly zero)
    aff = np.zeros((11, 128), np.float32)
    aff[0, :16] = np.asarray(layers[0]["b"], np.float32)
    for li, row in ((1, 1), (2, 4), (3, 7)):
        cout = layers[li]["cout"]
        aff[row, :cout] = np.asarray(layers[li]["b"], np.float32)
        aff[row + 1, :cout] = np.asarray(layers[li]["scale"], np.float32)
        aff[row + 2, :cout] = np.asarray(layers[li]["shift"], np.float32)
    aff[10, 0] = float(np.asarray(raw["fc_b"], np.float32)[0])

    fcw = np.zeros((128, 128), np.float32)                  # col 0 = real FC weight
    fcw[:, 0] = np.asarray(raw["fc_w"], np.float32)[0, :]

    return dict(
        w1=jnp.asarray(w1, jnp.bfloat16),
        w2cat=pack_wcat(layers[1]),
        w3cat=pack_wcat(layers[2]),
        w4cat=pack_wcat(layers[3]),
        g2=block_diag(_selection_mats(8)),
        g3=block_diag(_selection_mats(4)),
        g4=block_diag(_selection_mats(2)),
        fcw=jnp.asarray(fcw, jnp.bfloat16),
        aff=jnp.asarray(aff, jnp.float32),
    )


# ---------------------------------------------------------------------------
# Forward wrappers
# ---------------------------------------------------------------------------
def discriminator_forward(img_nchw, kp):
    """NCHW float images -> (N, 1) validity; one fused pallas_call, B images / grid step."""
    n, c, h, w = img_nchw.shape
    bb = kp["g4"].shape[1]                   # block batch (static, from packed shapes)
    p1 = (h // 2) * (w // 2)                 # layer-1 output pixels per image (= 64)
    n_pad = -(-n // bb) * bb
    grid_n = n_pad // bb

    # --- layer-1 im2col in XLA: (n, 64, 9*c) patch slab, zero-padded to 128 lanes ---
    x = img_nchw.astype(jnp.float32)
    xp = jnp.pad(x, ((0, 0), (0, 0), (1, 1), (1, 1)))
    taps = [xp[:, :, ky:ky + h:2, kx:kx + w:2]            # (n, c, h/2, w/2) per tap
            for ky in range(3) for kx in range(3)]
    pat = jnp.stack(taps, axis=1)                          # (n, 9, c, h/2, w/2)
    pat = jnp.transpose(pat, (0, 3, 4, 1, 2)).reshape(n, p1, 9 * c)
    pat = jnp.pad(pat, ((0, n_pad - n), (0, 0), (0, 128 - 9 * c)))
    pat = pat.astype(jnp.bfloat16).reshape(n_pad * p1, 128)   # lane-dense input slab

    def _const_spec(a):   # same block every grid step -> fetched once, kept resident
        if a.ndim == 2:
            return pl.BlockSpec(a.shape, lambda g: (0, 0))
        return pl.BlockSpec(a.shape, lambda g: (0, 0, 0))

    consts = (kp["w1"], kp["w2cat"], kp["w3cat"], kp["w4cat"],
              kp["g2"], kp["g3"], kp["g4"], kp["fcw"], kp["aff"])

    out = pl.pallas_call(
        _discriminator_kernel,
        out_shape=jax.ShapeDtypeStruct((grid_n, bb, 128), jnp.float32),
        grid=(grid_n,),
        in_specs=[pl.BlockSpec((bb * p1, 128), lambda g: (g, 0))]
                 + [_const_spec(a) for a in consts],
        out_specs=pl.BlockSpec((1, bb, 128), lambda g: (g, 0, 0)),   # lane-dense store
        compiler_params=pltpu.CompilerParams(
            dimension_semantics=("parallel",)),
    )(pat, *consts)
    return out.reshape(n_pad, 128)[:n, :1]


def reference_forward(img_nchw, raw):
    """Pure-JAX f32 reference (lax.conv) with the same eval-mode BN assumption."""
    x = jnp.transpose(img_nchw.astype(jnp.float32), (0, 2, 3, 1))   # NHWC
    for layer in raw["layers"]:
        w_hwio = jnp.transpose(layer["w"], (2, 3, 1, 0))            # (3,3,Cin,Cout)
        x = jax.lax.conv_general_dilated(
            x, w_hwio, window_strides=(2, 2), padding=((1, 1), (1, 1)),
            dimension_numbers=("NHWC", "HWIO", "NHWC"))
        x = x + layer["b"][None, None, None, :]
        x = jnp.where(x >= 0.0, x, LRELU_SLOPE * x)
        x = x * layer["scale"][None, None, None, :] + layer["shift"][None, None, None, :]
    n = x.shape[0]
    flat = jnp.transpose(x, (0, 3, 1, 2)).reshape(n, -1)            # torch .view order
    z = flat @ jnp.transpose(raw["fc_w"]) + raw["fc_b"][None, :]
    return jax.nn.sigmoid(z)


if __name__ == "__main__":
    key = jax.random.PRNGKey(0)
    k_img, k_par = jax.random.split(key)

    batch, channels, img_size = 2, 4, 16
    img = jax.random.normal(k_img, (batch, channels, img_size, img_size), jnp.float32)

    raw = init_raw_params(k_par, channels=channels, img_size=img_size)
    kparams = prepare_kernel_params(raw, block_batch=min(MAX_BLOCK_BATCH, batch))

    fwd = jax.jit(discriminator_forward)
    validity = fwd(img, kparams)
    jax.block_until_ready(validity)

    assert validity.shape == (batch, 1)
    assert bool(jnp.all((validity >= 0.0) & (validity <= 1.0)))

    # Correctness check against the f32 pure-JAX reference (bf16 MXU tolerance).
    ref = reference_forward(img, raw)
    assert bool(jnp.allclose(validity, ref, atol=2e-2)), (validity, ref)

    print("KERNEL_OK")
</pallas_src>

<mosaic_0001>
module attributes {stable_mosaic.version = 11 : i64} {
  func.func @_discriminator_kernel(%arg0: i32, %arg1: memref<128x128xbf16, #tpu.memory_space<vmem>>, %arg2: memref<128x16xbf16, #tpu.memory_space<vmem>>, %arg3: memref<16x1152xbf16, #tpu.memory_space<vmem>>, %arg4: memref<32x1152xbf16, #tpu.memory_space<vmem>>, %arg5: memref<64x1152xbf16, #tpu.memory_space<vmem>>, %arg6: memref<9x32x128xbf16, #tpu.memory_space<vmem>>, %arg7: memref<9x8x32xbf16, #tpu.memory_space<vmem>>, %arg8: memref<9x2x8xbf16, #tpu.memory_space<vmem>>, %arg9: memref<128x128xbf16, #tpu.memory_space<vmem>>, %arg10: memref<11x128xf32, #tpu.memory_space<vmem>>, %arg11: memref<1x2x128xf32, #tpu.memory_space<vmem>>) attributes {dimension_semantics = [#tpu.dimension_semantics<parallel>], iteration_bounds = array<i64: 1>, scalar_prefetch = 0 : i64, scratch_operands = 0 : i64, tpu.core_type = #tpu.core_type<tc>, window_params = [{transform_indices = @transform_0, window_bounds = array<i64: 128, 128>}, {pipeline_mode = #tpu.pipeline_mode<synchronous>, transform_indices = @transform_1, window_bounds = array<i64: 128, 16>}, {pipeline_mode = #tpu.pipeline_mode<synchronous>, transform_indices = @transform_2, window_bounds = array<i64: 16, 1152>}, {pipeline_mode = #tpu.pipeline_mode<synchronous>, transform_indices = @transform_3, window_bounds = array<i64: 32, 1152>}, {pipeline_mode = #tpu.pipeline_mode<synchronous>, transform_indices = @transform_4, window_bounds = array<i64: 64, 1152>}, {pipeline_mode = #tpu.pipeline_mode<synchronous>, transform_indices = @transform_5, window_bounds = array<i64: 9, 32, 128>}, {pipeline_mode = #tpu.pipeline_mode<synchronous>, transform_indices = @transform_6, window_bounds = array<i64: 9, 8, 32>}, {pipeline_mode = #tpu.pipeline_mode<synchronous>, transform_indices = @transform_7, window_bounds = array<i64: 9, 2, 8>}, {pipeline_mode = #tpu.pipeline_mode<synchronous>, transform_indices = @transform_8, window_bounds = array<i64: 128, 128>}, {pipeline_mode = #tpu.pipeline_mode<synchronous>, transform_indices = @transform_9, window_bounds = array<i64: 11, 128>}, {transform_indices = @transform_10, window_bounds = array<i64: 1, 2, 128>}]} {
    %c0 = arith.constant 0 : index
    %c0_0 = arith.constant 0 : index
    %0 = vector.load %arg1[%c0, %c0_0] : memref<128x128xbf16, #tpu.memory_space<vmem>>, vector<128x128xbf16>
    %c0_1 = arith.constant 0 : index
    %c0_2 = arith.constant 0 : index
    %1 = vector.load %arg2[%c0_1, %c0_2] : memref<128x16xbf16, #tpu.memory_space<vmem>>, vector<128x16xbf16>
    %cst = arith.constant dense<0.000000e+00> : vector<128x16xf32>
    %2 = tpu.matmul %0, %1, %cst {dimension_numbers = #tpu.dot_dimension_numbers<[1], [0], [0], [1], [0, 0, 1, 1], [], []>} : vector<128x128xbf16>, vector<128x16xbf16>, vector<128x16xf32> -> vector<128x16xf32>
    %c0_3 = arith.constant 0 : index
    %c0_4 = arith.constant 0 : index
    %3 = vector.load %arg10[%c0_3, %c0_4] : memref<11x128xf32, #tpu.memory_space<vmem>>, vector<1x16xf32>
    %4 = vector.broadcast %3 : vector<1x16xf32> to vector<128x16xf32>
    %5 = arith.addf %2, %4 : vector<128x16xf32>
    %cst_5 = arith.constant 2.000000e-01 : f32
    %6 = vector.broadcast %cst_5 : f32 to vector<128x16xf32>
    %7 = arith.mulf %6, %5 : vector<128x16xf32>
    %8 = arith.maximumf %5, %7 : vector<128x16xf32>
    %9 = arith.truncf %8 : vector<128x16xf32> to vector<128x16xbf16>
    %c0_6 = arith.constant 0 : index
    %c0_7 = arith.constant 0 : index
    %10 = vector.load %arg3[%c0_6, %c0_7] : memref<16x1152xbf16, #tpu.memory_space<vmem>>, vector<16x1152xbf16>
    %cst_8 = arith.constant dense<0.000000e+00> : vector<128x1152xf32>
    %11 = tpu.matmul %9, %10, %cst_8 {dimension_numbers = #tpu.dot_dimension_numbers<[1], [0], [0], [1], [0, 0, 1, 1], [], []>} : vector<128x16xbf16>, vector<16x1152xbf16>, vector<128x1152xf32> -> vector<128x1152xf32>
    %12 = arith.truncf %11 : vector<128x1152xf32> to vector<128x1152xbf16>
    %cst_9 = arith.constant 0.000000e+00 : f32
    %13 = vector.broadcast %cst_9 : f32 to vector<32x128xf32>
    %c0_10 = arith.constant 0 : index
    %c0_11 = arith.constant 0 : index
    %c0_12 = arith.constant 0 : index
    %14 = vector.load %arg6[%c0_10, %c0_11, %c0_12] : memref<9x32x128xbf16, #tpu.memory_space<vmem>>, vector<1x32x128xbf16>
    %15 = vector.shape_cast %14 : vector<1x32x128xbf16> to vector<32x128xbf16>
    %16 = vector.extract_strided_slice %12 {offsets = [0, 0], sizes = [128, 128], strides = [1, 1]} : vector<128x1152xbf16> to vector<128x128xbf16>
    %cst_13 = arith.constant dense<0.000000e+00> : vector<32x128xf32>
    %17 = tpu.matmul %15, %16, %cst_13 {dimension_numbers = #tpu.dot_dimension_numbers<[1], [0], [0], [1], [0, 0, 1, 1], [], []>} : vector<32x128xbf16>, vector<128x128xbf16>, vector<32x128xf32> -> vector<32x128xf32>
    %18 = arith.addf %13, %17 : vector<32x128xf32>
    %c1 = arith.constant 1 : index
    %c0_14 = arith.constant 0 : index
    %c0_15 = arith.constant 0 : index
    %19 = vector.load %arg6[%c1, %c0_14, %c0_15] : memref<9x32x128xbf16, #tpu.memory_space<vmem>>, vector<1x32x128xbf16>
    %20 = vector.shape_cast %19 : vector<1x32x128xbf16> to vector<32x128xbf16>
    %21 = vector.extract_strided_slice %12 {offsets = [0, 128], sizes = [128, 128], strides = [1, 1]} : vector<128x1152xbf16> to vector<128x128xbf16>
    %cst_16 = arith.constant dense<0.000000e+00> : vector<32x128xf32>
    %22 = tpu.matmul %20, %21, %cst_16 {dimension_numbers = #tpu.dot_dimension_numbers<[1], [0], [0], [1], [0, 0, 1, 1], [], []>} : vector<32x128xbf16>, vector<128x128xbf16>, vector<32x128xf32> -> vector<32x128xf32>
    %23 = arith.addf %18, %22 : vector<32x128xf32>
    %c2 = arith.constant 2 : index
    %c0_17 = arith.constant 0 : index
    %c0_18 = arith.constant 0 : index
    %24 = vector.load %arg6[%c2, %c0_17, %c0_18] : memref<9x32x128xbf16, #tpu.memory_space<vmem>>, vector<1x32x128xbf16>
    %25 = vector.shape_cast %24 : vector<1x32x128xbf16> to vector<32x128xbf16>
    %26 = vector.extract_strided_slice %12 {offsets = [0, 256], sizes = [128, 128], strides = [1, 1]} : vector<128x1152xbf16> to vector<128x128xbf16>
    %cst_19 = arith.constant dense<0.000000e+00> : vector<32x128xf32>
    %27 = tpu.matmul %25, %26, %cst_19 {dimension_numbers = #tpu.dot_dimension_numbers<[1], [0], [0], [1], [0, 0, 1, 1], [], []>} : vector<32x128xbf16>, vector<128x128xbf16>, vector<32x128xf32> -> vector<32x128xf32>
    %28 = arith.addf %23, %27 : vector<32x128xf32>
    %c3 = arith.constant 3 : index
    %c0_20 = arith.constant 0 : index
    %c0_21 = arith.constant 0 : index
    %29 = vector.load %arg6[%c3, %c0_20, %c0_21] : memref<9x32x128xbf16, #tpu.memory_space<vmem>>, vector<1x32x128xbf16>
    %30 = vector.shape_cast %29 : vector<1x32x128xbf16> to vector<32x128xbf16>
    %31 = vector.extract_strided_slice %12 {offsets = [0, 384], sizes = [128, 128], strides = [1, 1]} : vector<128x1152xbf16> to vector<128x128xbf16>
    %cst_22 = arith.constant dense<0.000000e+00> : vector<32x128xf32>
    %32 = tpu.matmul %30, %31, %cst_22 {dimension_numbers = #tpu.dot_dimension_numbers<[1], [0], [0], [1], [0, 0, 1, 1], [], []>} : vector<32x128xbf16>, vector<128x128xbf16>, vector<32x128xf32> -> vector<32x128xf32>
    %33 = arith.addf %28, %32 : vector<32x128xf32>
    %c4 = arith.constant 4 : index
    %c0_23 = arith.constant 0 : index
    %c0_24 = arith.constant 0 : index
    %34 = vector.load %arg6[%c4, %c0_23, %c0_24] : memref<9x32x128xbf16, #tpu.memory_space<vmem>>, vector<1x32x128xbf16>
    %35 = vector.shape_cast %34 : vector<1x32x128xbf16> to vector<32x128xbf16>
    %36 = vector.extract_strided_slice %12 {offsets = [0, 512], sizes = [128, 128], strides = [1, 1]} : vector<128x1152xbf16> to vector<128x128xbf16>
    %cst_25 = arith.constant dense<0.000000e+00> : vector<32x128xf32>
    %37 = tpu.matmul %35, %36, %cst_25 {dimension_numbers = #tpu.dot_dimension_numbers<[1], [0], [0], [1], [0, 0, 1, 1], [], []>} : vector<32x128xbf16>, vector<128x128xbf16>, vector<32x128xf32> -> vector<32x128xf32>
    %38 = arith.addf %33, %37 : vector<32x128xf32>
    %c5 = arith.constant 5 : index
    %c0_26 = arith.constant 0 : index
    %c0_27 = arith.constant 0 : index
    %39 = vector.load %arg6[%c5, %c0_26, %c0_27] : memref<9x32x128xbf16, #tpu.memory_space<vmem>>, vector<1x32x128xbf16>
    %40 = vector.shape_cast %39 : vector<1x32x128xbf16> to vector<32x128xbf16>
    %41 = vector.extract_strided_slice %12 {offsets = [0, 640], sizes = [128, 128], strides = [1, 1]} : vector<128x1152xbf16> to vector<128x128xbf16>
    %cst_28 = arith.constant dense<0.000000e+00> : vector<32x128xf32>
    %42 = tpu.matmul %40, %41, %cst_28 {dimension_numbers = #tpu.dot_dimension_numbers<[1], [0], [0], [1], [0, 0, 1, 1], [], []>} : vector<32x128xbf16>, vector<128x128xbf16>, vector<32x128xf32> -> vector<32x128xf32>
    %43 = arith.addf %38, %42 : vector<32x128xf32>
    %c6 = arith.constant 6 : index
    %c0_29 = arith.constant 0 : index
    %c0_30 = arith.constant 0 : index
    %44 = vector.load %arg6[%c6, %c0_29, %c0_30] : memref<9x32x128xbf16, #tpu.memory_space<vmem>>, vector<1x32x128xbf16>
    %45 = vector.shape_cast %44 : vector<1x32x128xbf16> to vector<32x128xbf16>
    %46 = vector.extract_strided_slice %12 {offsets = [0, 768], sizes = [128, 128], strides = [1, 1]} : vector<128x1152xbf16> to vector<128x128xbf16>
    %cst_31 = arith.constant dense<0.000000e+00> : vector<32x128xf32>
    %47 = tpu.matmul %45, %46, %cst_31 {dimension_numbers = #tpu.dot_dimension_numbers<[1], [0], [0], [1], [0, 0, 1, 1], [], []>} : vector<32x128xbf16>, vector<128x128xbf16>, vector<32x128xf32> -> vector<32x128xf32>
    %48 = arith.addf %43, %47 : vector<32x128xf32>
    %c7 = arith.constant 7 : index
    %c0_32 = arith.constant 0 : index
    %c0_33 = arith.constant 0 : index
    %49 = vector.load %arg6[%c7, %c0_32, %c0_33] : memref<9x32x128xbf16, #tpu.memory_space<vmem>>, vector<1x32x128xbf16>
    %50 = vector.shape_cast %49 : vector<1x32x128xbf16> to vector<32x128xbf16>
    %51 = vector.extract_strided_slice %12 {offsets = [0, 896], sizes = [128, 128], strides = [1, 1]} : vector<128x1152xbf16> to vector<128x128xbf16>
    %cst_34 = arith.constant dense<0.000000e+00> : vector<32x128xf32>
    %52 = tpu.matmul %50, %51, %cst_34 {dimension_numbers = #tpu.dot_dimension_numbers<[1], [0], [0], [1], [0, 0, 1, 1], [], []>} : vector<32x128xbf16>, vector<128x128xbf16>, vector<32x128xf32> -> vector<32x128xf32>
    %53 = arith.addf %48, %52 : vector<32x128xf32>
    %c8 = arith.constant 8 : index
    %c0_35 = arith.constant 0 : index
    %c0_36 = arith.constant 0 : index
    %54 = vector.load %arg6[%c8, %c0_35, %c0_36] : memref<9x32x128xbf16, #tpu.memory_space<vmem>>, vector<1x32x128xbf16>
    %55 = vector.shape_cast %54 : vector<1x32x128xbf16> to vector<32x128xbf16>
    %56 = vector.extract_strided_slice %12 {offsets = [0, 1024], sizes = [128, 128], strides = [1, 1]} : vector<128x1152xbf16> to vector<128x128xbf16>
    %cst_37 = arith.constant dense<0.000000e+00> : vector<32x128xf32>
    %57 = tpu.matmul %55, %56, %cst_37 {dimension_numbers = #tpu.dot_dimension_numbers<[1], [0], [0], [1], [0, 0, 1, 1], [], []>} : vector<32x128xbf16>, vector<128x128xbf16>, vector<32x128xf32> -> vector<32x128xf32>
    %58 = arith.addf %53, %57 : vector<32x128xf32>
    %c1_38 = arith.constant 1 : index
    %c0_39 = arith.constant 0 : index
    %59 = vector.load %arg10[%c1_38, %c0_39] : memref<11x128xf32, #tpu.memory_space<vmem>>, vector<1x128xf32>
    %60 = vector.broadcast %59 : vector<1x128xf32> to vector<32x128xf32>
    %61 = arith.addf %58, %60 : vector<32x128xf32>
    %cst_40 = arith.constant 2.000000e-01 : f32
    %62 = vector.broadcast %cst_40 : f32 to vector<32x128xf32>
    %63 = arith.mulf %62, %61 : vector<32x128xf32>
    %64 = arith.maximumf %61, %63 : vector<32x128xf32>
    %c2_41 = arith.constant 2 : index
    %c0_42 = arith.constant 0 : index
    %65 = vector.load %arg10[%c2_41, %c0_42] : memref<11x128xf32, #tpu.memory_space<vmem>>, vector<1x128xf32>
    %66 = vector.broadcast %65 : vector<1x128xf32> to vector<32x128xf32>
    %67 = arith.mulf %64, %66 : vector<32x128xf32>
    %c3_43 = arith.constant 3 : index
    %c0_44 = arith.constant 0 : index
    %68 = vector.load %arg10[%c3_43, %c0_44] : memref<11x128xf32, #tpu.memory_space<vmem>>, vector<1x128xf32>
    %69 = vector.broadcast %68 : vector<1x128xf32> to vector<32x128xf32>
    %70 = arith.addf %67, %69 : vector<32x128xf32>
    %71 = arith.truncf %70 : vector<32x128xf32> to vector<32x128xbf16>
    %72 = vector.extract_strided_slice %71 {offsets = [0, 0], sizes = [32, 32], strides = [1, 1]} : vector<32x128xbf16> to vector<32x32xbf16>
    %c0_45 = arith.constant 0 : index
    %c0_46 = arith.constant 0 : index
    %73 = vector.load %arg4[%c0_45, %c0_46] : memref<32x1152xbf16, #tpu.memory_space<vmem>>, vector<32x1152xbf16>
    %cst_47 = arith.constant dense<0.000000e+00> : vector<32x1152xf32>
    %74 = tpu.matmul %72, %73, %cst_47 {dimension_numbers = #tpu.dot_dimension_numbers<[1], [0], [0], [1], [0, 0, 1, 1], [], []>} : vector<32x32xbf16>, vector<32x1152xbf16>, vector<32x1152xf32> -> vector<32x1152xf32>
    %75 = arith.truncf %74 : vector<32x1152xf32> to vector<32x1152xbf16>
    %cst_48 = arith.constant 0.000000e+00 : f32
    %76 = vector.broadcast %cst_48 : f32 to vector<8x128xf32>
    %c0_49 = arith.constant 0 : index
    %c0_50 = arith.constant 0 : index
    %c0_51 = arith.constant 0 : index
    %77 = vector.load %arg7[%c0_49, %c0_50, %c0_51] : memref<9x8x32xbf16, #tpu.memory_space<vmem>>, vector<1x8x32xbf16>
    %78 = vector.shape_cast %77 : vector<1x8x32xbf16> to vector<8x32xbf16>
    %79 = vector.extract_strided_slice %75 {offsets = [0, 0], sizes = [32, 128], strides = [1, 1]} : vector<32x1152xbf16> to vector<32x128xbf16>
    %cst_52 = arith.constant dense<0.000000e+00> : vector<8x128xf32>
    %80 = tpu.matmul %78, %79, %cst_52 {dimension_numbers = #tpu.dot_dimension_numbers<[1], [0], [0], [1], [0, 0, 1, 1], [], []>} : vector<8x32xbf16>, vector<32x128xbf16>, vector<8x128xf32> -> vector<8x128xf32>
    %81 = arith.addf %76, %80 : vector<8x128xf32>
    %c1_53 = arith.constant 1 : index
    %c0_54 = arith.constant 0 : index
    %c0_55 = arith.constant 0 : index
    %82 = vector.load %arg7[%c1_53, %c0_54, %c0_55] : memref<9x8x32xbf16, #tpu.memory_space<vmem>>, vector<1x8x32xbf16>
    %83 = vector.shape_cast %82 : vector<1x8x32xbf16> to vector<8x32xbf16>
    %84 = vector.extract_strided_slice %75 {offsets = [0, 128], sizes = [32, 128], strides = [1, 1]} : vector<32x1152xbf16> to vector<32x128xbf16>
    %cst_56 = arith.constant dense<0.000000e+00> : vector<8x128xf32>
    %85 = tpu.matmul %83, %84, %cst_56 {dimension_numbers = #tpu.dot_dimension_numbers<[1], [0], [0], [1], [0, 0, 1, 1], [], []>} : vector<8x32xbf16>, vector<32x128xbf16>, vector<8x128xf32> -> vector<8x128xf32>
    %86 = arith.addf %81, %85 : vector<8x128xf32>
    %c2_57 = arith.constant 2 : index
    %c0_58 = arith.constant 0 : index
    %c0_59 = arith.constant 0 : index
    %87 = vector.load %arg7[%c2_57, %c0_58, %c0_59] : memref<9x8x32xbf16, #tpu.memory_space<vmem>>, vector<1x8x32xbf16>
    %88 = vector.shape_cast %87 : vector<1x8x32xbf16> to vector<8x32xbf16>
    %89 = vector.extract_strided_slice %75 {offsets = [0, 256], sizes = [32, 128], strides = [1, 1]} : vector<32x1152xbf16> to vector<32x128xbf16>
    %cst_60 = arith.constant dense<0.000000e+00> : vector<8x128xf32>
    %90 = tpu.matmul %88, %89, %cst_60 {dimension_numbers = #tpu.dot_dimension_numbers<[1], [0], [0], [1], [0, 0, 1, 1], [], []>} : vector<8x32xbf16>, vector<32x128xbf16>, vector<8x128xf32> -> vector<8x128xf32>
    %91 = arith.addf %86, %90 : vector<8x128xf32>
    %c3_61 = arith.constant 3 : index
    %c0_62 = arith.constant 0 : index
    %c0_63 = arith.constant 0 : index
    %92 = vector.load %arg7[%c3_61, %c0_62, %c0_63] : memref<9x8x32xbf16, #tpu.memory_space<vmem>>, vector<1x8x32xbf16>
    %93 = vector.shape_cast %92 : vector<1x8x32xbf16> to vector<8x32xbf16>
    %94 = vector.extract_strided_slice %75 {offsets = [0, 384], sizes = [32, 128], strides = [1, 1]} : vector<32x1152xbf16> to vector<32x128xbf16>
    %cst_64 = arith.constant dense<0.000000e+00> : vector<8x128xf32>
    %95 = tpu.matmul %93, %94, %cst_64 {dimension_numbers = #tpu.dot_dimension_numbers<[1], [0], [0], [1], [0, 0, 1, 1], [], []>} : vector<8x32xbf16>, vector<32x128xbf16>, vector<8x128xf32> -> vector<8x128xf32>
    %96 = arith.addf %91, %95 : vector<8x128xf32>
    %c4_65 = arith.constant 4 : index
    %c0_66 = arith.constant 0 : index
    %c0_67 = arith.constant 0 : index
    %97 = vector.load %arg7[%c4_65, %c0_66, %c0_67] : memref<9x8x32xbf16, #tpu.memory_space<vmem>>, vector<1x8x32xbf16>
    %98 = vector.shape_cast %97 : vector<1x8x32xbf16> to vector<8x32xbf16>
    %99 = vector.extract_strided_slice %75 {offsets = [0, 512], sizes = [32, 128], strides = [1, 1]} : vector<32x1152xbf16> to vector<32x128xbf16>
    %cst_68 = arith.constant dense<0.000000e+00> : vector<8x128xf32>
    %100 = tpu.matmul %98, %99, %cst_68 {dimension_numbers = #tpu.dot_dimension_numbers<[1], [0], [0], [1], [0, 0, 1, 1], [], []>} : vector<8x32xbf16>, vector<32x128xbf16>, vector<8x128xf32> -> vector<8x128xf32>
    %101 = arith.addf %96, %100 : vector<8x128xf32>
    %c5_69 = arith.constant 5 : index
    %c0_70 = arith.constant 0 : index
    %c0_71 = arith.constant 0 : index
    %102 = vector.load %arg7[%c5_69, %c0_70, %c0_71] : memref<9x8x32xbf16, #tpu.memory_space<vmem>>, vector<1x8x32xbf16>
    %103 = vector.shape_cast %102 : vector<1x8x32xbf16> to vector<8x32xbf16>
    %104 = vector.extract_strided_slice %75 {offsets = [0, 640], sizes = [32, 128], strides = [1, 1]} : vector<32x1152xbf16> to vector<32x128xbf16>
    %cst_72 = arith.constant dense<0.000000e+00> : vector<8x128xf32>
    %105 = tpu.matmul %103, %104, %cst_72 {dimension_numbers = #tpu.dot_dimension_numbers<[1], [0], [0], [1], [0, 0, 1, 1], [], []>} : vector<8x32xbf16>, vector<32x128xbf16>, vector<8x128xf32> -> vector<8x128xf32>
    %106 = arith.addf %101, %105 : vector<8x128xf32>
    %c6_73 = arith.constant 6 : index
    %c0_74 = arith.constant 0 : index
    %c0_75 = arith.constant 0 : index
    %107 = vector.load %arg7[%c6_73, %c0_74, %c0_75] : memref<9x8x32xbf16, #tpu.memory_space<vmem>>, vector<1x8x32xbf16>
    %108 = vector.shape_cast %107 : vector<1x8x32xbf16> to vector<8x32xbf16>
    %109 = vector.extract_strided_slice %75 {offsets = [0, 768], sizes = [32, 128], strides = [1, 1]} : vector<32x1152xbf16> to vector<32x128xbf16>
    %cst_76 = arith.constant dense<0.000000e+00> : vector<8x128xf32>
    %110 = tpu.matmul %108, %109, %cst_76 {dimension_numbers = #tpu.dot_dimension_numbers<[1], [0], [0], [1], [0, 0, 1, 1], [], []>} : vector<8x32xbf16>, vector<32x128xbf16>, vector<8x128xf32> -> vector<8x128xf32>
    %111 = arith.addf %106, %110 : vector<8x128xf32>
    %c7_77 = arith.constant 7 : index
    %c0_78 = arith.constant 0 : index
    %c0_79 = arith.constant 0 : index
    %112 = vector.load %arg7[%c7_77, %c0_78, %c0_79] : memref<9x8x32xbf16, #tpu.memory_space<vmem>>, vector<1x8x32xbf16>
    %113 = vector.shape_cast %112 : vector<1x8x32xbf16> to vector<8x32xbf16>
    %114 = vector.extract_strided_slice %75 {offsets = [0, 896], sizes = [32, 128], strides = [1, 1]} : vector<32x1152xbf16> to vector<32x128xbf16>
    %cst_80 = arith.constant dense<0.000000e+00> : vector<8x128xf32>
    %115 = tpu.matmul %113, %114, %cst_80 {dimension_numbers = #tpu.dot_dimension_numbers<[1], [0], [0], [1], [0, 0, 1, 1], [], []>} : vector<8x32xbf16>, vector<32x128xbf16>, vector<8x128xf32> -> vector<8x128xf32>
    %116 = arith.addf %111, %115 : vector<8x128xf32>
    %c8_81 = arith.constant 8 : index
    %c0_82 = arith.constant 0 : index
    %c0_83 = arith.constant 0 : index
    %117 = vector.load %arg7[%c8_81, %c0_82, %c0_83] : memref<9x8x32xbf16, #tpu.memory_space<vmem>>, vector<1x8x32xbf16>
    %118 = vector.shape_cast %117 : vector<1x8x32xbf16> to vector<8x32xbf16>
    %119 = vector.extract_strided_slice %75 {offsets = [0, 1024], sizes = [32, 128], strides = [1, 1]} : vector<32x1152xbf16> to vector<32x128xbf16>
    %cst_84 = arith.constant dense<0.000000e+00> : vector<8x128xf32>
    %120 = tpu.matmul %118, %119, %cst_84 {dimension_numbers = #tpu.dot_dimension_numbers<[1], [0], [0], [1], [0, 0, 1, 1], [], []>} : vector<8x32xbf16>, vector<32x128xbf16>, vector<8x128xf32> -> vector<8x128xf32>
    %121 = arith.addf %116, %120 : vector<8x128xf32>
    %c4_85 = arith.constant 4 : index
    %c0_86 = arith.constant 0 : index
    %122 = vector.load %arg10[%c4_85, %c0_86] : memref<11x128xf32, #tpu.memory_space<vmem>>, vector<1x128xf32>
    %123 = vector.broadcast %122 : vector<1x128xf32> to vector<8x128xf32>
    %124 = arith.addf %121, %123 : vector<8x128xf32>
    %cst_87 = arith.constant 2.000000e-01 : f32
    %125 = vector.broadcast %cst_87 : f32 to vector<8x128xf32>
    %126 = arith.mulf %125, %124 : vector<8x128xf32>
    %127 = arith.maximumf %124, %126 : vector<8x128xf32>
    %c5_88 = arith.constant 5 : index
    %c0_89 = arith.constant 0 : index
    %128 = vector.load %arg10[%c5_88, %c0_89] : memref<11x128xf32, #tpu.memory_space<vmem>>, vector<1x128xf32>
    %129 = vector.broadcast %128 : vector<1x128xf32> to vector<8x128xf32>
    %130 = arith.mulf %127, %129 : vector<8x128xf32>
    %c6_90 = arith.constant 6 : index
    %c0_91 = arith.constant 0 : index
    %131 = vector.load %arg10[%c6_90, %c0_91] : memref<11x128xf32, #tpu.memory_space<vmem>>, vector<1x128xf32>
    %132 = vector.broadcast %131 : vector<1x128xf32> to vector<8x128xf32>
    %133 = arith.addf %130, %132 : vector<8x128xf32>
    %134 = arith.truncf %133 : vector<8x128xf32> to vector<8x128xbf16>
    %135 = vector.extract_strided_slice %134 {offsets = [0, 0], sizes = [8, 64], strides = [1, 1]} : vector<8x128xbf16> to vector<8x64xbf16>
    %c0_92 = arith.constant 0 : index
    %c0_93 = arith.constant 0 : index
    %136 = vector.load %arg5[%c0_92, %c0_93] : memref<64x1152xbf16, #tpu.memory_space<vmem>>, vector<64x1152xbf16>
    %cst_94 = arith.constant dense<0.000000e+00> : vector<8x1152xf32>
    %137 = tpu.matmul %135, %136, %cst_94 {dimension_numbers = #tpu.dot_dimension_numbers<[1], [0], [0], [1], [0, 0, 1, 1], [], []>} : vector<8x64xbf16>, vector<64x1152xbf16>, vector<8x1152xf32> -> vector<8x1152xf32>
    %138 = arith.truncf %137 : vector<8x1152xf32> to vector<8x1152xbf16>
    %cst_95 = arith.constant 0.000000e+00 : f32
    %139 = vector.broadcast %cst_95 : f32 to vector<2x128xf32>
    %c0_96 = arith.constant 0 : index
    %c0_97 = arith.constant 0 : index
    %c0_98 = arith.constant 0 : index
    %140 = vector.load %arg8[%c0_96, %c0_97, %c0_98] : memref<9x2x8xbf16, #tpu.memory_space<vmem>>, vector<1x2x8xbf16>
    %141 = vector.shape_cast %140 : vector<1x2x8xbf16> to vector<2x8xbf16>
    %142 = vector.extract_strided_slice %138 {offsets = [0, 0], sizes = [8, 128], strides = [1, 1]} : vector<8x1152xbf16> to vector<8x128xbf16>
    %cst_99 = arith.constant dense<0.000000e+00> : vector<2x128xf32>
    %143 = tpu.matmul %141, %142, %cst_99 {dimension_numbers = #tpu.dot_dimension_numbers<[1], [0], [0], [1], [0, 0, 1, 1], [], []>} : vector<2x8xbf16>, vector<8x128xbf16>, vector<2x128xf32> -> vector<2x128xf32>
    %144 = arith.addf %139, %143 : vector<2x128xf32>
    %c1_100 = arith.constant 1 : index
    %c0_101 = arith.constant 0 : index
    %c0_102 = arith.constant 0 : index
    %145 = vector.load %arg8[%c1_100, %c0_101, %c0_102] : memref<9x2x8xbf16, #tpu.memory_space<vmem>>, vector<1x2x8xbf16>
    %146 = vector.shape_cast %145 : vector<1x2x8xbf16> to vector<2x8xbf16>
    %147 = vector.extract_strided_slice %138 {offsets = [0, 128], sizes = [8, 128], strides = [1, 1]} : vector<8x1152xbf16> to vector<8x128xbf16>
    %cst_103 = arith.constant dense<0.000000e+00> : vector<2x128xf32>
    %148 = tpu.matmul %146, %147, %cst_103 {dimension_numbers = #tpu.dot_dimension_numbers<[1], [0], [0], [1], [0, 0, 1, 1], [], []>} : vector<2x8xbf16>, vector<8x128xbf16>, vector<2x128xf32> -> vector<2x128xf32>
    %149 = arith.addf %144, %148 : vector<2x128xf32>
    %c2_104 = arith.constant 2 : index
    %c0_105 = arith.constant 0 : index
    %c0_106 = arith.constant 0 : index
    %150 = vector.load %arg8[%c2_104, %c0_105, %c0_106] : memref<9x2x8xbf16, #tpu.memory_space<vmem>>, vector<1x2x8xbf16>
    %151 = vector.shape_cast %150 : vector<1x2x8xbf16> to vector<2x8xbf16>
    %152 = vector.extract_strided_slice %138 {offsets = [0, 256], sizes = [8, 128], strides = [1, 1]} : vector<8x1152xbf16> to vector<8x128xbf16>
    %cst_107 = arith.constant dense<0.000000e+00> : vector<2x128xf32>
    %153 = tpu.matmul %151, %152, %cst_107 {dimension_numbers = #tpu.dot_dimension_numbers<[1], [0], [0], [1], [0, 0, 1, 1], [], []>} : vector<2x8xbf16>, vector<8x128xbf16>, vector<2x128xf32> -> vector<2x128xf32>
    %154 = arith.addf %149, %153 : vector<2x128xf32>
    %c3_108 = arith.constant 3 : index
    %c0_109 = arith.constant 0 : index
    %c0_110 = arith.constant 0 : index
    %155 = vector.load %arg8[%c3_108, %c0_109, %c0_110] : memref<9x2x8xbf16, #tpu.memory_space<vmem>>, vector<1x2x8xbf16>
    %156 = vector.shape_cast %155 : vector<1x2x8xbf16> to vector<2x8xbf16>
    %157 = vector.extract_strided_slice %138 {offsets = [0, 384], sizes = [8, 128], strides = [1, 1]} : vector<8x1152xbf16> to vector<8x128xbf16>
    %cst_111 = arith.constant dense<0.000000e+00> : vector<2x128xf32>
    %158 = tpu.matmul %156, %157, %cst_111 {dimension_numbers = #tpu.dot_dimension_numbers<[1], [0], [0], [1], [0, 0, 1, 1], [], []>} : vector<2x8xbf16>, vector<8x128xbf16>, vector<2x128xf32> -> vector<2x128xf32>
    %159 = arith.addf %154, %158 : vector<2x128xf32>
    %c4_112 = arith.constant 4 : index
    %c0_113 = arith.constant 0 : index
    %c0_114 = arith.constant 0 : index
    %160 = vector.load %arg8[%c4_112, %c0_113, %c0_114] : memref<9x2x8xbf16, #tpu.memory_space<vmem>>, vector<1x2x8xbf16>
    %161 = vector.shape_cast %160 : vector<1x2x8xbf16> to vector<2x8xbf16>
    %162 = vector.extract_strided_slice %138 {offsets = [0, 512], sizes = [8, 128], strides = [1, 1]} : vector<8x1152xbf16> to vector<8x128xbf16>
    %cst_115 = arith.constant dense<0.000000e+00> : vector<2x128xf32>
    %163 = tpu.matmul %161, %162, %cst_115 {dimension_numbers = #tpu.dot_dimension_numbers<[1], [0], [0], [1], [0, 0, 1, 1], [], []>} : vector<2x8xbf16>, vector<8x128xbf16>, vector<2x128xf32> -> vector<2x128xf32>
    %164 = arith.addf %159, %163 : vector<2x128xf32>
    %c5_116 = arith.constant 5 : index
    %c0_117 = arith.constant 0 : index
    %c0_118 = arith.constant 0 : index
    %165 = vector.load %arg8[%c5_116, %c0_117, %c0_118] : memref<9x2x8xbf16, #tpu.memory_space<vmem>>, vector<1x2x8xbf16>
    %166 = vector.shape_cast %165 : vector<1x2x8xbf16> to vector<2x8xbf16>
    %167 = vector.extract_strided_slice %138 {offsets = [0, 640], sizes = [8, 128], strides = [1, 1]} : vector<8x1152xbf16> to vector<8x128xbf16>
    %cst_119 = arith.constant dense<0.000000e+00> : vector<2x128xf32>
    %168 = tpu.matmul %166, %167, %cst_119 {dimension_numbers = #tpu.dot_dimension_numbers<[1], [0], [0], [1], [0, 0, 1, 1], [], []>} : vector<2x8xbf16>, vector<8x128xbf16>, vector<2x128xf32> -> vector<2x128xf32>
    %169 = arith.addf %164, %168 : vector<2x128xf32>
    %c6_120 = arith.constant 6 : index
    %c0_121 = arith.constant 0 : index
    %c0_122 = arith.constant 0 : index
    %170 = vector.load %arg8[%c6_120, %c0_121, %c0_122] : memref<9x2x8xbf16, #tpu.memory_space<vmem>>, vector<1x2x8xbf16>
    %171 = vector.shape_cast %170 : vector<1x2x8xbf16> to vector<2x8xbf16>
    %172 = vector.extract_strided_slice %138 {offsets = [0, 768], sizes = [8, 128], strides = [1, 1]} : vector<8x1152xbf16> to vector<8x128xbf16>
    %cst_123 = arith.constant dense<0.000000e+00> : vector<2x128xf32>
    %173 = tpu.matmul %171, %172, %cst_123 {dimension_numbers = #tpu.dot_dimension_numbers<[1], [0], [0], [1], [0, 0, 1, 1], [], []>} : vector<2x8xbf16>, vector<8x128xbf16>, vector<2x128xf32> -> vector<2x128xf32>
    %174 = arith.addf %169, %173 : vector<2x128xf32>
    %c7_124 = arith.constant 7 : index
    %c0_125 = arith.constant 0 : index
    %c0_126 = arith.constant 0 : index
    %175 = vector.load %arg8[%c7_124, %c0_125, %c0_126] : memref<9x2x8xbf16, #tpu.memory_space<vmem>>, vector<1x2x8xbf16>
    %176 = vector.shape_cast %175 : vector<1x2x8xbf16> to vector<2x8xbf16>
    %177 = vector.extract_strided_slice %138 {offsets = [0, 896], sizes = [8, 128], strides = [1, 1]} : vector<8x1152xbf16> to vector<8x128xbf16>
    %cst_127 = arith.constant dense<0.000000e+00> : vector<2x128xf32>
    %178 = tpu.matmul %176, %177, %cst_127 {dimension_numbers = #tpu.dot_dimension_numbers<[1], [0], [0], [1], [0, 0, 1, 1], [], []>} : vector<2x8xbf16>, vector<8x128xbf16>, vector<2x128xf32> -> vector<2x128xf32>
    %179 = arith.addf %174, %178 : vector<2x128xf32>
    %c8_128 = arith.constant 8 : index
    %c0_129 = arith.constant 0 : index
    %c0_130 = arith.constant 0 : index
    %180 = vector.load %arg8[%c8_128, %c0_129, %c0_130] : memref<9x2x8xbf16, #tpu.memory_space<vmem>>, vector<1x2x8xbf16>
    %181 = vector.shape_cast %180 : vector<1x2x8xbf16> to vector<2x8xbf16>
    %182 = vector.extract_strided_slice %138 {offsets = [0, 1024], sizes = [8, 128], strides = [1, 1]} : vector<8x1152xbf16> to vector<8x128xbf16>
    %cst_131 = arith.constant dense<0.000000e+00> : vector<2x128xf32>
    %183 = tpu.matmul %181, %182, %cst_131 {dimension_numbers = #tpu.dot_dimension_numbers<[1], [0], [0], [1], [0, 0, 1, 1], [], []>} : vector<2x8xbf16>, vector<8x128xbf16>, vector<2x128xf32> -> vector<2x128xf32>
    %184 = arith.addf %179, %183 : vector<2x128xf32>
    %c7_132 = arith.constant 7 : index
    %c0_133 = arith.constant 0 : index
    %185 = vector.load %arg10[%c7_132, %c0_133] : memref<11x128xf32, #tpu.memory_space<vmem>>, vector<1x128xf32>
    %186 = vector.broadcast %185 : vector<1x128xf32> to vector<2x128xf32>
    %187 = arith.addf %184, %186 : vector<2x128xf32>
    %cst_134 = arith.constant 2.000000e-01 : f32
    %188 = vector.broadcast %cst_134 : f32 to vector<2x128xf32>
    %189 = arith.mulf %188, %187 : vector<2x128xf32>
    %190 = arith.maximumf %187, %189 : vector<2x128xf32>
    %c8_135 = arith.constant 8 : index
    %c0_136 = arith.constant 0 : index
    %191 = vector.load %arg10[%c8_135, %c0_136] : memref<11x128xf32, #tpu.memory_space<vmem>>, vector<1x128xf32>
    %192 = vector.broadcast %191 : vector<1x128xf32> to vector<2x128xf32>
    %193 = arith.mulf %190, %192 : vector<2x128xf32>
    %c9 = arith.constant 9 : index
    %c0_137 = arith.constant 0 : index
    %194 = vector.load %arg10[%c9, %c0_137] : memref<11x128xf32, #tpu.memory_space<vmem>>, vector<1x128xf32>
    %195 = vector.broadcast %194 : vector<1x128xf32> to vector<2x128xf32>
    %196 = arith.addf %193, %195 : vector<2x128xf32>
    %197 = arith.truncf %196 : vector<2x128xf32> to vector<2x128xbf16>
    %c0_138 = arith.constant 0 : index
    %c0_139 = arith.constant 0 : index
    %198 = vector.load %arg9[%c0_138, %c0_139] : memref<128x128xbf16, #tpu.memory_space<vmem>>, vector<128x128xbf16>
    %cst_140 = arith.constant dense<0.000000e+00> : vector<2x128xf32>
    %199 = tpu.matmul %197, %198, %cst_140 {dimension_numbers = #tpu.dot_dimension_numbers<[1], [0], [0], [1], [0, 0, 1, 1], [], []>} : vector<2x128xbf16>, vector<128x128xbf16>, vector<2x128xf32> -> vector<2x128xf32>
    %c10 = arith.constant 10 : index
    %c0_141 = arith.constant 0 : index
    %200 = vector.load %arg10[%c10, %c0_141] : memref<11x128xf32, #tpu.memory_space<vmem>>, vector<1x128xf32>
    %201 = vector.broadcast %200 : vector<1x128xf32> to vector<2x128xf32>
    %202 = arith.addf %199, %201 : vector<2x128xf32>
    %cst_142 = arith.constant 0.000000e+00 : f32
    %203 = vector.broadcast %cst_142 : f32 to vector<2x128xf32>
    %204 = arith.subf %203, %202 : vector<2x128xf32>
    %205 = math.exp %204 : vector<2x128xf32>
    %cst_143 = arith.constant 1.000000e+00 : f32
    %206 = vector.broadcast %cst_143 : f32 to vector<2x128xf32>
    %207 = arith.addf %206, %205 : vector<2x128xf32>
    %cst_144 = arith.constant 1.000000e+00 : f32
    %208 = vector.broadcast %cst_144 : f32 to vector<2x128xf32>
    %209 = arith.divf %208, %207 : vector<2x128xf32>
    %210 = vector.shape_cast %209 : vector<2x128xf32> to vector<1x2x128xf32>
    %c0_145 = arith.constant 0 : index
    %c0_146 = arith.constant 0 : index
    %c0_147 = arith.constant 0 : index
    %211 = vector.load %arg11[%c0_145, %c0_146, %c0_147] : memref<1x2x128xf32, #tpu.memory_space<vmem>>, vector<1x2x128xf32>
    tpu.vector_store %arg11[%c0_145, %c0_146, %c0_147], %210 {strides = array<i32>} : memref<1x2x128xf32, #tpu.memory_space<vmem>>, vector<1x2x128xf32>,
    return
  }
  func.func @transform_0(%arg0: i32) -> (i32, i32) {
    %c0_i32 = arith.constant 0 : i32
    %c0_i32_0 = arith.constant 0 : i32
    return %arg0, %c0_i32 : i32, i32
  }
  func.func @transform_1(%arg0: i32) -> (i32, i32) {
    %c0_i32 = arith.constant 0 : i32
    %c0_i32_0 = arith.constant 0 : i32
    %c0_i32_1 = arith.constant 0 : i32
    return %c0_i32, %c0_i32_0 : i32, i32
  }
  func.func @transform_2(%arg0: i32) -> (i32, i32) {
    %c0_i32 = arith.constant 0 : i32
    %c0_i32_0 = arith.constant 0 : i32
    %c0_i32_1 = arith.constant 0 : i32
    return %c0_i32, %c0_i32_0 : i32, i32
  }
  func.func @transform_3(%arg0: i32) -> (i32, i32) {
    %c0_i32 = arith.constant 0 : i32
    %c0_i32_0 = arith.constant 0 : i32
    %c0_i32_1 = arith.constant 0 : i32
    return %c0_i32, %c0_i32_0 : i32, i32
  }
  func.func @transform_4(%arg0: i32) -> (i32, i32) {
    %c0_i32 = arith.constant 0 : i32
    %c0_i32_0 = arith.constant 0 : i32
    %c0_i32_1 = arith.constant 0 : i32
    return %c0_i32, %c0_i32_0 : i32, i32
  }
  func.func @transform_5(%arg0: i32) -> (i32, i32, i32) {
    %c0_i32 = arith.constant 0 : i32
    %c0_i32_0 = arith.constant 0 : i32
    %c0_i32_1 = arith.constant 0 : i32
    %c0_i32_2 = arith.constant 0 : i32
    return %c0_i32, %c0_i32_0, %c0_i32_1 : i32, i32, i32
  }
  func.func @transform_6(%arg0: i32) -> (i32, i32, i32) {
    %c0_i32 = arith.constant 0 : i32
    %c0_i32_0 = arith.constant 0 : i32
    %c0_i32_1 = arith.constant 0 : i32
    %c0_i32_2 = arith.constant 0 : i32
    return %c0_i32, %c0_i32_0, %c0_i32_1 : i32, i32, i32
  }
  func.func @transform_7(%arg0: i32) -> (i32, i32, i32) {
    %c0_i32 = arith.constant 0 : i32
    %c0_i32_0 = arith.constant 0 : i32
    %c0_i32_1 = arith.constant 0 : i32
    %c0_i32_2 = arith.constant 0 : i32
    return %c0_i32, %c0_i32_0, %c0_i32_1 : i32, i32, i32
  }
  func.func @transform_8(%arg0: i32) -> (i32, i32) {
    %c0_i32 = arith.constant 0 : i32
    %c0_i32_0 = arith.constant 0 : i32
    %c0_i32_1 = arith.constant 0 : i32
    return %c0_i32, %c0_i32_0 : i32, i32
  }
  func.func @transform_9(%arg0: i32) -> (i32, i32) {
    %c0_i32 = arith.constant 0 : i32
    %c0_i32_0 = arith.constant 0 : i32
    %c0_i32_1 = arith.constant 0 : i32
    return %c0_i32, %c0_i32_0 : i32, i32
  }
  func.func @transform_10(%arg0: i32) -> (i32, i32, i32) {
    %c0_i32 = arith.constant 0 : i32
    %c0_i32_0 = arith.constant 0 : i32
    %c0_i32_1 = arith.constant 0 : i32
    return %arg0, %c0_i32, %c0_i32_0 : i32, i32, i32
  }
}

</mosaic_0001>

<llo_original>
// kernel: discriminator_forward.1
$region0: #{discriminator_forward.1}
  #allocation0 [shape = 'u32[]', space=smem, size = 0x4, offset = 0x4, fixed_abs, tag = 'smem constant byte address 0x4 - core index']
  #allocation1 [shape = 'u32[144,128]{1,0:T(1,128)}', space=vmem, size = 0x12000, scoped, tag = 'internal scratch']
  %s0 = inlined_call_operand.vmem [shape: bf16[128,128], index: 0, kind: input, shape index: {}]
  %s1 = inlined_call_operand.vmem [shape: bf16[128,16], index: 1, kind: input, shape index: {}]
  %s2 = inlined_call_operand.vmem [shape: bf16[16,1152], index: 2, kind: input, shape index: {}]
  %s3 = inlined_call_operand.vmem [shape: bf16[32,1152], index: 3, kind: input, shape index: {}]
  %s4 = inlined_call_operand.vmem [shape: bf16[64,1152], index: 4, kind: input, shape index: {}]
  %s5 = inlined_call_operand.vmem [shape: bf16[9,32,128], index: 5, kind: input, shape index: {}]
  %s6 = inlined_call_operand.vmem [shape: bf16[9,8,32], index: 6, kind: input, shape index: {}]
  %s7 = inlined_call_operand.vmem [shape: bf16[9,2,8], index: 7, kind: input, shape index: {}]
  %s8 = inlined_call_operand.vmem [shape: bf16[128,128], index: 8, kind: input, shape index: {}]
  %s9 = inlined_call_operand.vmem [shape: f32[11,128], index: 9, kind: input, shape index: {}]
  %s10 = inlined_call_operand.vmem [shape: f32[1,2,128], index: 10, kind: output, shape index: {}]
  %s11 = sld [smem:[#allocation0]]
  $region50: #{discriminator_forward.1} parent=0
    _
  %s13 = ssub.s32 1, %s11
  %s14 = scalar_select 0, %s13, %s11
  // Predicated region
  $region2: #{discriminator_forward.1} parent=0 // pred_check
    _
  $region3: #{discriminator_forward.1} parent=0 // pred_check_branch
    %16 = sbr.rel (0) target = $region5
  $region4: #{discriminator_forward.1} parent=0 // pred_region
    _
  $region5: #{discriminator_forward.1} parent=0 // pred_fallthru
    _
  // Predicated region
  $region6: #{discriminator_forward.1} parent=0 // pred_check
    _
  $region7: #{discriminator_forward.1} parent=0 // pred_check_branch
    %18 = sbr.rel (0) target = $region9
  $region8: #{discriminator_forward.1} parent=0 // pred_region
    _
  $region9: #{discriminator_forward.1} parent=0 // pred_fallthru
    _
  // Predicated region
  $region10: #{discriminator_forward.1} parent=0 // pred_check
    _
  $region11: #{discriminator_forward.1} parent=0 // pred_check_branch
    %20 = sbr.rel (0) target = $region13
  $region12: #{discriminator_forward.1} parent=0 // pred_region
    _
  $region13: #{discriminator_forward.1} parent=0 // pred_fallthru
    _
  // Predicated region
  $region14: #{discriminator_forward.1} parent=0 // pred_check
    _
  $region15: #{discriminator_forward.1} parent=0 // pred_check_branch
    %22 = sbr.rel (0) target = $region17
  $region16: #{discriminator_forward.1} parent=0 // pred_region
    _
  $region17: #{discriminator_forward.1} parent=0 // pred_fallthru
    _
  // Predicated region
  $region18: #{discriminator_forward.1} parent=0 // pred_check
    _
  $region19: #{discriminator_forward.1} parent=0 // pred_check_branch
    %24 = sbr.rel (0) target = $region21
  $region20: #{discriminator_forward.1} parent=0 // pred_region
    _
  $region21: #{discriminator_forward.1} parent=0 // pred_fallthru
    _
  // Predicated region
  $region22: #{discriminator_forward.1} parent=0 // pred_check
    _
  $region23: #{discriminator_forward.1} parent=0 // pred_check_branch
    %26 = sbr.rel (0) target = $region25
  $region24: #{discriminator_forward.1} parent=0 // pred_region
    _
  $region25: #{discriminator_forward.1} parent=0 // pred_fallthru
    _
  // Predicated region
  $region26: #{discriminator_forward.1} parent=0 // pred_check
    _
  $region27: #{discriminator_forward.1} parent=0 // pred_check_branch
    %28 = sbr.rel (0) target = $region29
  $region28: #{discriminator_forward.1} parent=0 // pred_region
    _
  $region29: #{discriminator_forward.1} parent=0 // pred_fallthru
    _
  // Predicated region
  $region30: #{discriminator_forward.1} parent=0 // pred_check
    _
  $region31: #{discriminator_forward.1} parent=0 // pred_check_branch
    %30 = sbr.rel (0) target = $region33
  $region32: #{discriminator_forward.1} parent=0 // pred_region
    _
  $region33: #{discriminator_forward.1} parent=0 // pred_fallthru
    _
  // Predicated region
  $region34: #{discriminator_forward.1} parent=0 // pred_check
    _
  $region35: #{discriminator_forward.1} parent=0 // pred_check_branch
    %32 = sbr.rel (0) target = $region37
  $region36: #{discriminator_forward.1} parent=0 // pred_region
    _
  $region37: #{discriminator_forward.1} parent=0 // pred_fallthru
    _
  // Predicated region
  $region38: #{discriminator_forward.1} parent=0 // pred_check
    _
  $region39: #{discriminator_forward.1} parent=0 // pred_check_branch
    %34 = sbr.rel (0) target = $region41
  $region40: #{discriminator_forward.1} parent=0 // pred_region
    _
  $region41: #{discriminator_forward.1} parent=0 // pred_fallthru
    _
  %v36 = vld [vmem:[%s0] sm:$0xf]
  %v37 = vld [vmem:[%s0 + $0x4] sm:$0xf]
  %v38 = vld [vmem:[%s0 + $0x8] sm:$0xf]
  %v39 = vld [vmem:[%s0 + $0xc] sm:$0xf]
  %v40 = vld [vmem:[%s0 + $0x10] sm:$0xf]
  %v41 = vld [vmem:[%s0 + $0x14] sm:$0xf]
  %v42 = vld [vmem:[%s0 + $0x18] sm:$0xf]
  %v43 = vld [vmem:[%s0 + $0x1c] sm:$0xf]
  %v44 = vld [vmem:[%s0 + $0x20] sm:$0xf]
  %v45 = vld [vmem:[%s0 + $0x24] sm:$0xf]
  %v46 = vld [vmem:[%s0 + $0x28] sm:$0xf]
  %v47 = vld [vmem:[%s0 + $0x2c] sm:$0xf]
  %v48 = vld [vmem:[%s0 + $0x30] sm:$0xf]
  %v49 = vld [vmem:[%s0 + $0x34] sm:$0xf]
  %v50 = vld [vmem:[%s0 + $0x38] sm:$0xf]
  %v51 = vld [vmem:[%s0 + $0x3c] sm:$0xf]
  %v52 = vld [vmem:[%s1] sm:$0xf]
  %v53 = vld [vmem:[%s1 + $0x4] sm:$0xf]
  %v54 = vld [vmem:[%s1 + $0x8] sm:$0xf]
  %v55 = vld [vmem:[%s1 + $0xc] sm:$0xf]
  %v56 = vld [vmem:[%s1 + $0x10] sm:$0xf]
  %v57 = vld [vmem:[%s1 + $0x14] sm:$0xf]
  %v58 = vld [vmem:[%s1 + $0x18] sm:$0xf]
  %v59 = vld [vmem:[%s1 + $0x1c] sm:$0xf]
  %v60 = vld [vmem:[%s1 + $0x20] sm:$0xf]
  %v61 = vld [vmem:[%s1 + $0x24] sm:$0xf]
  %v62 = vld [vmem:[%s1 + $0x28] sm:$0xf]
  %v63 = vld [vmem:[%s1 + $0x2c] sm:$0xf]
  %v64 = vld [vmem:[%s1 + $0x30] sm:$0xf]
  %v65 = vld [vmem:[%s1 + $0x34] sm:$0xf]
  %v66 = vld [vmem:[%s1 + $0x38] sm:$0xf]
  %v67 = vld [vmem:[%s1 + $0x3c] sm:$0xf]
  %v68 = vld [vmem:[%s9] sm:$0x1]
  %v69 = vlaneseq
  %v70 = vshrl.u32 %v69, 7
  %v71 = vsub.s32 0, %v70
  %v72 = vrot.slane %v68, %v71
  %v89 = vunpack.c.l.b16 %v36
  %v90 = vunpack.c.l.b16 %v37
  %v91 = vunpack.c.l.b16 %v38
  %v92 = vunpack.c.l.b16 %v39
  %v93 = vunpack.c.l.b16 %v40
  %v94 = vunpack.c.l.b16 %v41
  %v95 = vunpack.c.l.b16 %v42
  %v96 = vunpack.c.l.b16 %v43
  %v97 = vunpack.c.l.b16 %v44
  %v98 = vunpack.c.l.b16 %v45
  %v99 = vunpack.c.l.b16 %v46
  %v100 = vunpack.c.l.b16 %v47
  %v101 = vunpack.c.l.b16 %v48
  %v102 = vunpack.c.l.b16 %v49
  %v103 = vunpack.c.l.b16 %v50
  %v104 = vunpack.c.l.b16 %v51
  %v105 = vpack.c.b16 %v90, %v89
  %v106 = vpack.c.b16 %v92, %v91
  %v107 = vpack.c.b16 %v94, %v93
  %v108 = vpack.c.b16 %v96, %v95
  %v109 = vpack.c.b16 %v98, %v97
  %v110 = vpack.c.b16 %v100, %v99
  %v111 = vpack.c.b16 %v102, %v101
  %v112 = vpack.c.b16 %v104, %v103
  %v137 = vunpack.c.l.b16 %v52
  %v138 = vunpack.c.l.b16 %v53
  %v139 = vunpack.c.l.b16 %v54
  %v140 = vunpack.c.l.b16 %v55
  %v141 = vunpack.c.l.b16 %v56
  %v142 = vunpack.c.l.b16 %v57
  %v143 = vunpack.c.l.b16 %v58
  %v144 = vunpack.c.l.b16 %v59
  %v145 = vunpack.c.l.b16 %v60
  %v146 = vunpack.c.l.b16 %v61
  %v147 = vunpack.c.l.b16 %v62
  %v148 = vunpack.c.l.b16 %v63
  %v149 = vunpack.c.l.b16 %v64
  %v150 = vunpack.c.l.b16 %v65
  %v151 = vunpack.c.l.b16 %v66
  %v152 = vunpack.c.l.b16 %v67
  %v153 = vpack.c.b16 %v138, %v137
  %v154 = vpack.c.b16 %v140, %v139
  %v155 = vpack.c.b16 %v142, %v141
  %v156 = vpack.c.b16 %v144, %v143
  %v157 = vpack.c.b16 %v146, %v145
  %v158 = vpack.c.b16 %v148, %v147
  %v159 = vpack.c.b16 %v150, %v149
  %v160 = vpack.c.b16 %v152, %v151
  %169 = vmatprep.subr.bf16.mxu0 0
  %170 = vmatpush1.bf16.msra.mxu0 %v153
  %171 = vmatprep.subr.bf16.mxu0 0
  %172 = vmatpush1.bf16.msra.mxu0 %v154
  %173 = vmatprep.subr.bf16.mxu0 0
  %174 = vmatpush1.bf16.msra.mxu0 %v155
  %175 = vmatprep.subr.bf16.mxu0 0
  %176 = vmatpush1.bf16.msra.mxu0 %v156
  %177 = vmatprep.subr.bf16.mxu0 0
  %178 = vmatpush1.bf16.msra.mxu0 %v157
  %179 = vmatprep.subr.bf16.mxu0 0
  %180 = vmatpush1.bf16.msra.mxu0 %v158
  %181 = vmatprep.subr.bf16.mxu0 0
  %182 = vmatpush1.bf16.msra.mxu0 %v159
  %183 = vmatprep.subr.bf16.mxu0 0
  %184 = vmatpush1.bf16.msra.mxu0 %v160
  %185 = vmatprep.subr.bf16.mxu0 0
  %186 = vmatpush1.bf16.msra.mxu0 0
  %187 = vmatprep.subr.bf16.mxu0 0
  %188 = vmatpush1.bf16.msra.mxu0 0
  %189 = vmatprep.subr.bf16.mxu0 0
  %190 = vmatpush1.bf16.msra.mxu0 0
  %191 = vmatprep.subr.bf16.mxu0 0
  %192 = vmatpush1.bf16.msra.mxu0 0
  %193 = vmatprep.subr.bf16.mxu0 0
  %194 = vmatpush1.bf16.msra.mxu0 0
  %195 = vmatprep.subr.bf16.mxu0 0
  %196 = vmatpush1.bf16.msra.mxu0 0
  %197 = vmatprep.subr.bf16.mxu0 0
  %198 = vmatpush1.bf16.msra.mxu0 0
  %199 = vmatprep.subr.bf16.mxu0 0
  %200 = vmatpush1.bf16.msra.mxu0 0
  %201 = vmatprep.mubr.bf16.mxu0 0
  %202 = vmatmul.mubr.bf16.gmra.mrb[0].mxu0 %v105
  %v203 = vpop.f32.mrb[0].mxu0
  %v204 = vadd.f32 %v72, %v203
  %v205 = vpop.f32.mrb[0].mxu0
  %v206 = vpop.f32.mrb[0].mxu0
  %v207 = vadd.f32 %v72, %v206
  %v208 = vpop.f32.mrb[0].mxu0
  %209 = vmatprep.mubr.bf16.mxu0 0
  %210 = vmatmul.mubr.bf16.gmra.mrb[0].mxu0 %v106
  %v211 = vpop.f32.mrb[0].mxu0
  %v212 = vadd.f32 %v72, %v211
  %v213 = vpop.f32.mrb[0].mxu0
  %v214 = vpop.f32.mrb[0].mxu0
  %v215 = vadd.f32 %v72, %v214
  %v216 = vpop.f32.mrb[0].mxu0
  %217 = vmatprep.mubr.bf16.mxu0 0
  %218 = vmatmul.mubr.bf16.gmra.mrb[0].mxu0 %v107
  %v219 = vpop.f32.mrb[0].mxu0
  %v220 = vadd.f32 %v72, %v219
  %v221 = vpop.f32.mrb[0].mxu0
  %v222 = vpop.f32.mrb[0].mxu0
  %v223 = vadd.f32 %v72, %v222
  %v224 = vpop.f32.mrb[0].mxu0
  %225 = vmatprep.mubr.bf16.mxu0 0
  %226 = vmatmul.mubr.bf16.gmra.mrb[0].mxu0 %v108
  %v227 = vpop.f32.mrb[0].mxu0
  %v228 = vadd.f32 %v72, %v227
  %v229 = vpop.f32.mrb[0].mxu0
  %v230 = vpop.f32.mrb[0].mxu0
  %v231 = vadd.f32 %v72, %v230
  %v232 = vpop.f32.mrb[0].mxu0
  %233 = vmatprep.mubr.bf16.mxu0 0
  %234 = vmatmul.mubr.bf16.gmra.mrb[0].mxu0 %v109
  %v235 = vpop.f32.mrb[0].mxu0
  %v236 = vadd.f32 %v72, %v235
  %v237 = vpop.f32.mrb[0].mxu0
  %v238 = vpop.f32.mrb[0].mxu0
  %v239 = vadd.f32 %v72, %v238
  %v240 = vpop.f32.mrb[0].mxu0
  %241 = vmatprep.mubr.bf16.mxu0 0
  %242 = vmatmul.mubr.bf16.gmra.mrb[0].mxu0 %v110
  %v243 = vpop.f32.mrb[0].mxu0
  %v244 = vadd.f32 %v72, %v243
  %v245 = vpop.f32.mrb[0].mxu0
  %v246 = vpop.f32.mrb[0].mxu0
  %v247 = vadd.f32 %v72, %v246
  %v248 = vpop.f32.mrb[0].mxu0
  %249 = vmatprep.mubr.bf16.mxu0 0
  %250 = vmatmul.mubr.bf16.gmra.mrb[0].mxu0 %v111
  %v251 = vpop.f32.mrb[0].mxu0
  %v252 = vadd.f32 %v72, %v251
  %v253 = vpop.f32.mrb[0].mxu0
  %v254 = vpop.f32.mrb[0].mxu0
  %v255 = vadd.f32 %v72, %v254
  %v256 = vpop.f32.mrb[0].mxu0
  %257 = vmatprep.mubr.bf16.mxu0 0
  %258 = vmatmul.mubr.bf16.gmra.mrb[0].mxu0 %v112
  %v259 = vpop.f32.mrb[0].mxu0
  %v260 = vadd.f32 %v72, %v259
  %v261 = vpop.f32.mrb[0].mxu0
  %v262 = vpop.f32.mrb[0].mxu0
  %v263 = vadd.f32 %v72, %v262
  %v264 = vpop.f32.mrb[0].mxu0
  %265 = vdwg.mxu0
  %v266 = vmul.f32 %v204, 0.2
  %v267 = vmul.f32 %v207, 0.2
  %v268 = vmul.f32 %v212, 0.2
  %v269 = vmul.f32 %v215, 0.2
  %v270 = vmul.f32 %v220, 0.2
  %v271 = vmul.f32 %v223, 0.2
  %v272 = vmul.f32 %v228, 0.2
  %v273 = vmul.f32 %v231, 0.2
  %v274 = vmul.f32 %v236, 0.2
  %v275 = vmul.f32 %v239, 0.2
  %v276 = vmul.f32 %v244, 0.2
  %v277 = vmul.f32 %v247, 0.2
  %v278 = vmul.f32 %v252, 0.2
  %v279 = vmul.f32 %v255, 0.2
  %v280 = vmul.f32 %v260, 0.2
  %v281 = vmul.f32 %v263, 0.2
  %v282 = vmax.f32 %v204, %v266
  %v283 = vmax.f32 %v207, %v267
  %v284 = vmax.f32 %v212, %v268
  %v285 = vmax.f32 %v215, %v269
  %v286 = vmax.f32 %v220, %v270
  %v287 = vmax.f32 %v223, %v271
  %v288 = vmax.f32 %v228, %v272
  %v289 = vmax.f32 %v231, %v273
  %v290 = vmax.f32 %v236, %v274
  %v291 = vmax.f32 %v239, %v275
  %v292 = vmax.f32 %v244, %v276
  %v293 = vmax.f32 %v247, %v277
  %v294 = vmax.f32 %v252, %v278
  %v295 = vmax.f32 %v255, %v279
  %v296 = vmax.f32 %v260, %v280
  %v297 = vmax.f32 %v263, %v281
  %v298 = vpack.c.bf16 %v283, %v282
  %v299 = vpack.c.bf16 %v285, %v284
  %v300 = vpack.c.bf16 %v287, %v286
  %v301 = vpack.c.bf16 %v289, %v288
  %v302 = vpack.c.bf16 %v291, %v290
  %v303 = vpack.c.bf16 %v293, %v292
  %v304 = vpack.c.bf16 %v295, %v294
  %v305 = vpack.c.bf16 %v297, %v296
  %v306 = vld [vmem:[%s2] sm:$0xff]
  %v307 = vld [vmem:[%s2 + $0x8] sm:$0xff]
  %v308 = vld [vmem:[%s2 + $0x10] sm:$0xff]
  %v309 = vld [vmem:[%s2 + $0x18] sm:$0xff]
  %v310 = vld [vmem:[%s2 + $0x20] sm:$0xf]
  %v311 = vld [vmem:[%s2 + $0x24] sm:$0xff]
  %v312 = vld [vmem:[%s2 + $0x2c] sm:$0xff]
  %v313 = vld [vmem:[%s2 + $0x34] sm:$0xff]
  %v314 = vld [vmem:[%s2 + $0x3c] sm:$0xff]
  %v315 = vld [vmem:[%s2 + $0x44] sm:$0xf]
  %v326 = vunpack.c.l.b16 %v306
  %v327 = vunpack.c.h.b16 %v306
  %v328 = vunpack.c.l.b16 %v307
  %v329 = vunpack.c.h.b16 %v307
  %v330 = vunpack.c.l.b16 %v308
  %v331 = vunpack.c.h.b16 %v308
  %v332 = vunpack.c.l.b16 %v309
  %v333 = vunpack.c.h.b16 %v309
  %v334 = vunpack.c.l.b16 %v310
  %v335 = vunpack.c.l.b16 %v311
  %v336 = vunpack.c.h.b16 %v311
  %v337 = vunpack.c.l.b16 %v312
  %v338 = vunpack.c.h.b16 %v312
  %v339 = vunpack.c.l.b16 %v313
  %v340 = vunpack.c.h.b16 %v313
  %v341 = vunpack.c.l.b16 %v314
  %v342 = vunpack.c.h.b16 %v314
  %v343 = vunpack.c.l.b16 %v315
  %v344 = vpack.c.b16 %v335, %v326
  %v345 = vpack.c.b16 %v336, %v327
  %v346 = vpack.c.b16 %v337, %v328
  %v347 = vpack.c.b16 %v338, %v329
  %v348 = vpack.c.b16 %v339, %v330
  %v349 = vpack.c.b16 %v340, %v331
  %v350 = vpack.c.b16 %v341, %v332
  %v351 = vpack.c.b16 %v342, %v333
  %v352 = vpack.c.b16 %v343, %v334
  %vm362 = vcmask 130048
  %v364 = vsel %vm362, %v298, 0
  %v367 = vsel %vm362, %v299, 0
  %v370 = vsel %vm362, %v300, 0
  %v373 = vsel %vm362, %v301, 0
  %v376 = vsel %vm362, %v302, 0
  %v379 = vsel %vm362, %v303, 0
  %v382 = vsel %vm362, %v304, 0
  %v385 = vsel %vm362, %v305, 0
  %387 = vmatprep.subr.bf16.mxu0 %v345
  %388 = vmatpush1.bf16.msra.mxu0 %v344
  %389 = vmatprep.subr.bf16.mxu0 0
  %390 = vmatpush1.bf16.msra.mxu0 0
  %391 = vmatprep.subr.bf16.mxu0 0
  %392 = vmatpush1.bf16.msra.mxu0 0
  %393 = vmatprep.subr.bf16.mxu0 0
  %394 = vmatpush1.bf16.msra.mxu0 0
  %395 = vmatprep.subr.bf16.mxu0 0
  %396 = vmatpush1.bf16.msra.mxu0 0
  %397 = vmatprep.subr.bf16.mxu0 0
  %398 = vmatpush1.bf16.msra.mxu0 0
  %399 = vmatprep.subr.bf16.mxu0 0
  %400 = vmatpush1.bf16.msra.mxu0 0
  %401 = vmatprep.subr.bf16.mxu0 0
  %402 = vmatpush1.bf16.msra.mxu0 0
  %403 = vmatprep.subr.bf16.mxu0 0
  %404 = vmatpush1.bf16.msra.mxu0 0
  %405 = vmatprep.subr.bf16.mxu0 0
  %406 = vmatpush1.bf16.msra.mxu0 0
  %407 = vmatprep.subr.bf16.mxu0 0
  %408 = vmatpush1.bf16.msra.mxu0 0
  %409 = vmatprep.subr.bf16.mxu0 0
  %410 = vmatpush1.bf16.msra.mxu0 0
  %411 = vmatprep.subr.bf16.mxu0 0
  %412 = vmatpush1.bf16.msra.mxu0 0
  %413 = vmatprep.subr.bf16.mxu0 0
  %414 = vmatpush1.bf16.msra.mxu0 0
  %415 = vmatprep.subr.bf16.mxu0 0
  %416 = vmatpush1.bf16.msra.mxu0 0
  %417 = vmatprep.subr.bf16.mxu0 0
  %418 = vmatpush1.bf16.msra.mxu0 0
  %419 = vmatprep.mubr.bf16.mxu0 0
  %420 = vmatmul.mubr.bf16.gmra.mrb[0].mxu0 %v364
  %v421 = vpop.f32.mrb[0].mxu0
  %v422 = vadd.f32 0.0, %v421
  %v423 = vpop.f32.mrb[0].mxu0
  %v424 = vadd.f32 0.0, %v423
  %v425 = vpop.f32.mrb[0].mxu0
  %v426 = vadd.f32 0.0, %v425
  %v427 = vpop.f32.mrb[0].mxu0
  %v428 = vadd.f32 0.0, %v427
  %429 = vmatprep.mubr.bf16.mxu0 0
  %430 = vmatmul.mubr.bf16.gmra.mrb[0].mxu0 %v367
  %v431 = vpop.f32.mrb[0].mxu0
  %v432 = vadd.f32 0.0, %v431
  %v433 = vpop.f32.mrb[0].mxu0
  %v434 = vadd.f32 0.0, %v433
  %v435 = vpop.f32.mrb[0].mxu0
  %v436 = vadd.f32 0.0, %v435
  %v437 = vpop.f32.mrb[0].mxu0
  %v438 = vadd.f32 0.0, %v437
  %439 = vmatprep.mubr.bf16.mxu0 0
  %440 = vmatmul.mubr.bf16.gmra.mrb[0].mxu0 %v370
  %v441 = vpop.f32.mrb[0].mxu0
  %v442 = vadd.f32 0.0, %v441
  %v443 = vpop.f32.mrb[0].mxu0
  %v444 = vadd.f32 0.0, %v443
  %v445 = vpop.f32.mrb[0].mxu0
  %v446 = vadd.f32 0.0, %v445
  %v447 = vpop.f32.mrb[0].mxu0
  %v448 = vadd.f32 0.0, %v447
  %449 = vmatprep.mubr.bf16.mxu0 0
  %450 = vmatmul.mubr.bf16.gmra.mrb[0].mxu0 %v373
  %v451 = vpop.f32.mrb[0].mxu0
  %v452 = vadd.f32 0.0, %v451
  %v453 = vpop.f32.mrb[0].mxu0
  %v454 = vadd.f32 0.0, %v453
  %v455 = vpop.f32.mrb[0].mxu0
  %v456 = vadd.f32 0.0, %v455
  %v457 = vpop.f32.mrb[0].mxu0
  %v458 = vadd.f32 0.0, %v457
  %459 = vmatprep.mubr.bf16.mxu0 0
  %460 = vmatmul.mubr.bf16.gmra.mrb[0].mxu0 %v376
  %v461 = vpop.f32.mrb[0].mxu0
  %v462 = vadd.f32 0.0, %v461
  %v463 = vpop.f32.mrb[0].mxu0
  %v464 = vadd.f32 0.0, %v463
  %v465 = vpop.f32.mrb[0].mxu0
  %v466 = vadd.f32 0.0, %v465
  %v467 = vpop.f32.mrb[0].mxu0
  %v468 = vadd.f32 0.0, %v467
  %469 = vmatprep.mubr.bf16.mxu0 0
  %470 = vmatmul.mubr.bf16.gmra.mrb[0].mxu0 %v379
  %v471 = vpop.f32.mrb[0].mxu0
  %v472 = vadd.f32 0.0, %v471
  %v473 = vpop.f32.mrb[0].mxu0
  %v474 = vadd.f32 0.0, %v473
  %v475 = vpop.f32.mrb[0].mxu0
  %v476 = vadd.f32 0.0, %v475
  %v477 = vpop.f32.mrb[0].mxu0
  %v478 = vadd.f32 0.0, %v477
  %479 = vmatprep.mubr.bf16.mxu0 0
  %480 = vmatmul.mubr.bf16.gmra.mrb[0].mxu0 %v382
  %v481 = vpop.f32.mrb[0].mxu0
  %v482 = vadd.f32 0.0, %v481
  %v483 = vpop.f32.mrb[0].mxu0
  %v484 = vadd.f32 0.0, %v483
  %v485 = vpop.f32.mrb[0].mxu0
  %v486 = vadd.f32 0.0, %v485
  %v487 = vpop.f32.mrb[0].mxu0
  %v488 = vadd.f32 0.0, %v487
  %489 = vmatprep.mubr.bf16.mxu0 0
  %490 = vmatmul.mubr.bf16.gmra.mrb[0].mxu0 %v385
  %v491 = vpop.f32.mrb[0].mxu0
  %v492 = vadd.f32 0.0, %v491
  %v493 = vpop.f32.mrb[0].mxu0
  %v494 = vadd.f32 0.0, %v493
  %v495 = vpop.f32.mrb[0].mxu0
  %v496 = vadd.f32 0.0, %v495
  %v497 = vpop.f32.mrb[0].mxu0
  %v498 = vadd.f32 0.0, %v497
  %499 = vdwg.mxu0
  %500 = vmatprep.subr.bf16.mxu0 %v347
  %501 = vmatpush1.bf16.msra.mxu0 %v346
  %502 = vmatprep.subr.bf16.mxu0 0
  %503 = vmatpush1.bf16.msra.mxu0 0
  %504 = vmatprep.subr.bf16.mxu0 0
  %505 = vmatpush1.bf16.msra.mxu0 0
  %506 = vmatprep.subr.bf16.mxu0 0
  %507 = vmatpush1.bf16.msra.mxu0 0
  %508 = vmatprep.subr.bf16.mxu0 0
  %509 = vmatpush1.bf16.msra.mxu0 0
  %510 = vmatprep.subr.bf16.mxu0 0
  %511 = vmatpush1.bf16.msra.mxu0 0
  %512 = vmatprep.subr.bf16.mxu0 0
  %513 = vmatpush1.bf16.msra.mxu0 0
  %514 = vmatprep.subr.bf16.mxu0 0
  %515 = vmatpush1.bf16.msra.mxu0 0
  %516 = vmatprep.subr.bf16.mxu0 0
  %517 = vmatpush1.bf16.msra.mxu0 0
  %518 = vmatprep.subr.bf16.mxu0 0
  %519 = vmatpush1.bf16.msra.mxu0 0
  %520 = vmatprep.subr.bf16.mxu0 0
  %521 = vmatpush1.bf16.msra.mxu0 0
  %522 = vmatprep.subr.bf16.mxu0 0
  %523 = vmatpush1.bf16.msra.mxu0 0
  %524 = vmatprep.subr.bf16.mxu0 0
  %525 = vmatpush1.bf16.msra.mxu0 0
  %526 = vmatprep.subr.bf16.mxu0 0
  %527 = vmatpush1.bf16.msra.mxu0 0
  %528 = vmatprep.subr.bf16.mxu0 0
  %529 = vmatpush1.bf16.msra.mxu0 0
  %530 = vmatprep.subr.bf16.mxu0 0
  %531 = vmatpush1.bf16.msra.mxu0 0
  %532 = vmatprep.mubr.bf16.mxu0 0
  %533 = vmatmul.mubr.bf16.gmra.mrb[0].mxu0 %v364
  %v534 = vpop.f32.mrb[0].mxu0
  %v535 = vadd.f32 0.0, %v534
  %v536 = vpop.f32.mrb[0].mxu0
  %v537 = vadd.f32 0.0, %v536
  %v538 = vpop.f32.mrb[0].mxu0
  %v539 = vadd.f32 0.0, %v538
  %v540 = vpop.f32.mrb[0].mxu0
  %v541 = vadd.f32 0.0, %v540
  %542 = vmatprep.mubr.bf16.mxu0 0
  %543 = vmatmul.mubr.bf16.gmra.mrb[0].mxu0 %v367
  %v544 = vpop.f32.mrb[0].mxu0
  %v545 = vadd.f32 0.0, %v544
  %v546 = vpop.f32.mrb[0].mxu0
  %v547 = vadd.f32 0.0, %v546
  %v548 = vpop.f32.mrb[0].mxu0
  %v549 = vadd.f32 0.0, %v548
  %v550 = vpop.f32.mrb[0].mxu0
  %v551 = vadd.f32 0.0, %v550
  %552 = vmatprep.mubr.bf16.mxu0 0
  %553 = vmatmul.mubr.bf16.gmra.mrb[0].mxu0 %v370
  %v554 = vpop.f32.mrb[0].mxu0
  %v555 = vadd.f32 0.0, %v554
  %v556 = vpop.f32.mrb[0].mxu0
  %v557 = vadd.f32 0.0, %v556
  %v558 = vpop.f32.mrb[0].mxu0
  %v559 = vadd.f32 0.0, %v558
  %v560 = vpop.f32.mrb[0].mxu0
  %v561 = vadd.f32 0.0, %v560
  %562 = vmatprep.mubr.bf16.mxu0 0
  %563 = vmatmul.mubr.bf16.gmra.mrb[0].mxu0 %v373
  %v564 = vpop.f32.mrb[0].mxu0
  %v565 = vadd.f32 0.0, %v564
  %v566 = vpop.f32.mrb[0].mxu0
  %v567 = vadd.f32 0.0, %v566
  %v568 = vpop.f32.mrb[0].mxu0
  %v569 = vadd.f32 0.0, %v568
  %v570 = vpop.f32.mrb[0].mxu0
  %v571 = vadd.f32 0.0, %v570
  %572 = vmatprep.mubr.bf16.mxu0 0
  %573 = vmatmul.mubr.bf16.gmra.mrb[0].mxu0 %v376
  %v574 = vpop.f32.mrb[0].mxu0
  %v575 = vadd.f32 0.0, %v574
  %v576 = vpop.f32.mrb[0].mxu0
  %v577 = vadd.f32 0.0, %v576
  %v578 = vpop.f32.mrb[0].mxu0
  %v579 = vadd.f32 0.0, %v578
  %v580 = vpop.f32.mrb[0].mxu0
  %v581 = vadd.f32 0.0, %v580
  %582 = vmatprep.mubr.bf16.mxu0 0
  %583 = vmatmul.mubr.bf16.gmra.mrb[0].mxu0 %v379
  %v584 = vpop.f32.mrb[0].mxu0
  %v585 = vadd.f32 0.0, %v584
  %v586 = vpop.f32.mrb[0].mxu0
  %v587 = vadd.f32 0.0, %v586
  %v588 = vpop.f32.mrb[0].mxu0
  %v589 = vadd.f32 0.0, %v588
  %v590 = vpop.f32.mrb[0].mxu0
  %v591 = vadd.f32 0.0, %v590
  %592 = vmatprep.mubr.bf16.mxu0 0
  %593 = vmatmul.mubr.bf16.gmra.mrb[0].mxu0 %v382
  %v594 = vpop.f32.mrb[0].mxu0
  %v595 = vadd.f32 0.0, %v594
  %v596 = vpop.f32.mrb[0].mxu0
  %v597 = vadd.f32 0.0, %v596
  %v598 = vpop.f32.mrb[0].mxu0
  %v599 = vadd.f32 0.0, %v598
  %v600 = vpop.f32.mrb[0].mxu0
  %v601 = vadd.f32 0.0, %v600
  %602 = vmatprep.mubr.bf16.mxu0 0
  %603 = vmatmul.mubr.bf16.gmra.mrb[0].mxu0 %v385
  %v604 = vpop.f32.mrb[0].mxu0
  %v605 = vadd.f32 0.0, %v604
  %v606 = vpop.f32.mrb[0].mxu0
  %v607 = vadd.f32 0.0, %v606
  %v608 = vpop.f32.mrb[0].mxu0
  %v609 = vadd.f32 0.0, %v608
  %v610 = vpop.f32.mrb[0].mxu0
  %v611 = vadd.f32 0.0, %v610
  %612 = vdwg.mxu0
  %613 = vmatprep.subr.bf16.mxu0 %v349
  %614 = vmatpush1.bf16.msra.mxu0 %v348
  %615 = vmatprep.subr.bf16.mxu0 0
  %616 = vmatpush1.bf16.msra.mxu0 0
  %617 = vmatprep.subr.bf16.mxu0 0
  %618 = vmatpush1.bf16.msra.mxu0 0
  %619 = vmatprep.subr.bf16.mxu0 0
  %620 = vmatpush1.bf16.msra.mxu0 0
  %621 = vmatprep.subr.bf16.mxu0 0
  %622 = vmatpush1.bf16.msra.mxu0 0
  %623 = vmatprep.subr.bf16.mxu0 0
  %624 = vmatpush1.bf16.msra.mxu0 0
  %625 = vmatprep.subr.bf16.mxu0 0
  %626 = vmatpush1.bf16.msra.mxu0 0
  %627 = vmatprep.subr.bf16.mxu0 0
  %628 = vmatpush1.bf16.msra.mxu0 0
  %629 = vmatprep.subr.bf16.mxu0 0
  %630 = vmatpush1.bf16.msra.mxu0 0
  %631 = vmatprep.subr.bf16.mxu0 0
  %632 = vmatpush1.bf16.msra.mxu0 0
  %633 = vmatprep.subr.bf16.mxu0 0
  %634 = vmatpush1.bf16.msra.mxu0 0
  %635 = vmatprep.subr.bf16.mxu0 0
  %636 = vmatpush1.bf16.msra.mxu0 0
  %637 = vmatprep.subr.bf16.mxu0 0
  %638 = vmatpush1.bf16.msra.mxu0 0
  %639 = vmatprep.subr.bf16.mxu0 0
  %640 = vmatpush1.bf16.msra.mxu0 0
  %641 = vmatprep.subr.bf16.mxu0 0
  %642 = vmatpush1.bf16.msra.mxu0 0
  %643 = vmatprep.subr.bf16.mxu0 0
  %644 = vmatpush1.bf16.msra.mxu0 0
  %645 = vmatprep.mubr.bf16.mxu0 0
  %646 = vmatmul.mubr.bf16.gmra.mrb[0].mxu0 %v364
  %v647 = vpop.f32.mrb[0].mxu0
  %v648 = vadd.f32 0.0, %v647
  %v649 = vpop.f32.mrb[0].mxu0
  %v650 = vadd.f32 0.0, %v649
  %v651 = vpop.f32.mrb[0].mxu0
  %v652 = vadd.f32 0.0, %v651
  %v653 = vpop.f32.mrb[0].mxu0
  %v654 = vadd.f32 0.0, %v653
  %655 = vmatprep.mubr.bf16.mxu0 0
  %656 = vmatmul.mubr.bf16.gmra.mrb[0].mxu0 %v367
  %v657 = vpop.f32.mrb[0].mxu0
  %v658 = vadd.f32 0.0, %v657
  %v659 = vpop.f32.mrb[0].mxu0
  %v660 = vadd.f32 0.0, %v659
  %v661 = vpop.f32.mrb[0].mxu0
  %v662 = vadd.f32 0.0, %v661
  %v663 = vpop.f32.mrb[0].mxu0
  %v664 = vadd.f32 0.0, %v663
  %665 = vmatprep.mubr.bf16.mxu0 0
  %666 = vmatmul.mubr.bf16.gmra.mrb[0].mxu0 %v370
  %v667 = vpop.f32.mrb[0].mxu0
  %v668 = vadd.f32 0.0, %v667
  %v669 = vpop.f32.mrb[0].mxu0
  %v670 = vadd.f32 0.0, %v669
  %v671 = vpop.f32.mrb[0].mxu0
  %v672 = vadd.f32 0.0, %v671
  %v673 = vpop.f32.mrb[0].mxu0
  %v674 = vadd.f32 0.0, %v673
  %675 = vmatprep.mubr.bf16.mxu0 0
  %676 = vmatmul.mubr.bf16.gmra.mrb[0].mxu0 %v373
  %v677 = vpop.f32.mrb[0].mxu0
  %v678 = vadd.f32 0.0, %v677
  %v679 = vpop.f32.mrb[0].mxu0
  %v680 = vadd.f32 0.0, %v679
  %v681 = vpop.f32.mrb[0].mxu0
  %v682 = vadd.f32 0.0, %v681
  %v683 = vpop.f32.mrb[0].mxu0
  %v684 = vadd.f32 0.0, %v683
  %685 = vmatprep.mubr.bf16.mxu0 0
  %686 = vmatmul.mubr.bf16.gmra.mrb[0].mxu0 %v376
  %v687 = vpop.f32.mrb[0].mxu0
  %v688 = vadd.f32 0.0, %v687
  %v689 = vpop.f32.mrb[0].mxu0
  %v690 = vadd.f32 0.0, %v689
  %v691 = vpop.f32.mrb[0].mxu0
  %v692 = vadd.f32 0.0, %v691
  %v693 = vpop.f32.mrb[0].mxu0
  %v694 = vadd.f32 0.0, %v693
  %695 = vmatprep.mubr.bf16.mxu0 0
  %696 = vmatmul.mubr.bf16.gmra.mrb[0].mxu0 %v379
  %v697 = vpop.f32.mrb[0].mxu0
  %v698 = vadd.f32 0.0, %v697
  %v699 = vpop.f32.mrb[0].mxu0
  %v700 = vadd.f32 0.0, %v699
  %v701 = vpop.f32.mrb[0].mxu0
  %v702 = vadd.f32 0.0, %v701
  %v703 = vpop.f32.mrb[0].mxu0
  %v704 = vadd.f32 0.0, %v703
  %705 = vmatprep.mubr.bf16.mxu0 0
  %706 = vmatmul.mubr.bf16.gmra.mrb[0].mxu0 %v382
  %v707 = vpop.f32.mrb[0].mxu0
  %v708 = vadd.f32 0.0, %v707
  %v709 = vpop.f32.mrb[0].mxu0
  %v710 = vadd.f32 0.0, %v709
  %v711 = vpop.f32.mrb[0].mxu0
  %v712 = vadd.f32 0.0, %v711
  %v713 = vpop.f32.mrb[0].mxu0
  %v714 = vadd.f32 0.0, %v713
  %715 = vmatprep.mubr.bf16.mxu0 0
  %716 = vmatmul.mubr.bf16.gmra.mrb[0].mxu0 %v385
  %v717 = vpop.f32.mrb[0].mxu0
  %v718 = vadd.f32 0.0, %v717
  %v719 = vpop.f32.mrb[0].mxu0
  %v720 = vadd.f32 0.0, %v719
  %v721 = vpop.f32.mrb[0].mxu0
  %v722 = vadd.f32 0.0, %v721
  %v723 = vpop.f32.mrb[0].mxu0
  %v724 = vadd.f32 0.0, %v723
  %725 = vdwg.mxu0
  %726 = vmatprep.subr.bf16.mxu0 %v351
  %727 = vmatpush1.bf16.msra.mxu0 %v350
  %728 = vmatprep.subr.bf16.mxu0 0
  %729 = vmatpush1.bf16.msra.mxu0 0
  %730 = vmatprep.subr.bf16.mxu0 0
  %731 = vmatpush1.bf16.msra.mxu0 0
  %732 = vmatprep.subr.bf16.mxu0 0
  %733 = vmatpush1.bf16.msra.mxu0 0
  %734 = vmatprep.subr.bf16.mxu0 0
  %735 = vmatpush1.bf16.msra.mxu0 0
  %736 = vmatprep.subr.bf16.mxu0 0
  %737 = vmatpush1.bf16.msra.mxu0 0
  %738 = vmatprep.subr.bf16.mxu0 0
  %739 = vmatpush1.bf16.msra.mxu0 0
  %740 = vmatprep.subr.bf16.mxu0 0
  %741 = vmatpush1.bf16.msra.mxu0 0
  %742 = vmatprep.subr.bf16.mxu0 0
  %743 = vmatpush1.bf16.msra.mxu0 0
  %744 = vmatprep.subr.bf16.mxu0 0
  %745 = vmatpush1.bf16.msra.mxu0 0
  %746 = vmatprep.subr.bf16.mxu0 0
  %747 = vmatpush1.bf16.msra.mxu0 0
  %748 = vmatprep.subr.bf16.mxu0 0
  %749 = vmatpush1.bf16.msra.mxu0 0
  %750 = vmatprep.subr.bf16.mxu0 0
  %751 = vmatpush1.bf16.msra.mxu0 0
  %752 = vmatprep.subr.bf16.mxu0 0
  %753 = vmatpush1.bf16.msra.mxu0 0
  %754 = vmatprep.subr.bf16.mxu0 0
  %755 = vmatpush1.bf16.msra.mxu0 0
  %756 = vmatprep.subr.bf16.mxu0 0
  %757 = vmatpush1.bf16.msra.mxu0 0
  %758 = vmatprep.mubr.bf16.mxu0 0
  %759 = vmatmul.mubr.bf16.gmra.mrb[0].mxu0 %v364
  %v760 = vpop.f32.mrb[0].mxu0
  %v761 = vadd.f32 0.0, %v760
  %v762 = vpop.f32.mrb[0].mxu0
  %v763 = vadd.f32 0.0, %v762
  %v764 = vpop.f32.mrb[0].mxu0
  %v765 = vadd.f32 0.0, %v764
  %v766 = vpop.f32.mrb[0].mxu0
  %v767 = vadd.f32 0.0, %v766
  %768 = vmatprep.mubr.bf16.mxu0 0
  %769 = vmatmul.mubr.bf16.gmra.mrb[0].mxu0 %v367
  %v770 = vpop.f32.mrb[0].mxu0
  %v771 = vadd.f32 0.0, %v770
  %v772 = vpop.f32.mrb[0].mxu0
  %v773 = vadd.f32 0.0, %v772
  %v774 = vpop.f32.mrb[0].mxu0
  %v775 = vadd.f32 0.0, %v774
  %v776 = vpop.f32.mrb[0].mxu0
  %v777 = vadd.f32 0.0, %v776
  %778 = vmatprep.mubr.bf16.mxu0 0
  %779 = vmatmul.mubr.bf16.gmra.mrb[0].mxu0 %v370
  %v780 = vpop.f32.mrb[0].mxu0
  %v781 = vadd.f32 0.0, %v780
  %v782 = vpop.f32.mrb[0].mxu0
  %v783 = vadd.f32 0.0, %v782
  %v784 = vpop.f32.mrb[0].mxu0
  %v785 = vadd.f32 0.0, %v784
  %v786 = vpop.f32.mrb[0].mxu0
  %v787 = vadd.f32 0.0, %v786
  %788 = vmatprep.mubr.bf16.mxu0 0
  %789 = vmatmul.mubr.bf16.gmra.mrb[0].mxu0 %v373
  %v790 = vpop.f32.mrb[0].mxu0
  %v791 = vadd.f32 0.0, %v790
  %v792 = vpop.f32.mrb[0].mxu0
  %v793 = vadd.f32 0.0, %v792
  %v794 = vpop.f32.mrb[0].mxu0
  %v795 = vadd.f32 0.0, %v794
  %v796 = vpop.f32.mrb[0].mxu0
  %v797 = vadd.f32 0.0, %v796
  %798 = vmatprep.mubr.bf16.mxu0 0
  %799 = vmatmul.mubr.bf16.gmra.mrb[0].mxu0 %v376
  %v800 = vpop.f32.mrb[0].mxu0
  %v801 = vadd.f32 0.0, %v800
  %v802 = vpop.f32.mrb[0].mxu0
  %v803 = vadd.f32 0.0, %v802
  %v804 = vpop.f32.mrb[0].mxu0
  %v805 = vadd.f32 0.0, %v804
  %v806 = vpop.f32.mrb[0].mxu0
  %v807 = vadd.f32 0.0, %v806
  %808 = vmatprep.mubr.bf16.mxu0 0
  %809 = vmatmul.mubr.bf16.gmra.mrb[0].mxu0 %v379
  %v810 = vpop.f32.mrb[0].mxu0
  %v811 = vadd.f32 0.0, %v810
  %v812 = vpop.f32.mrb[0].mxu0
  %v813 = vadd.f32 0.0, %v812
  %v814 = vpop.f32.mrb[0].mxu0
  %v815 = vadd.f32 0.0, %v814
  %v816 = vpop.f32.mrb[0].mxu0
  %v817 = vadd.f32 0.0, %v816
  %818 = vmatprep.mubr.bf16.mxu0 0
  %819 = vmatmul.mubr.bf16.gmra.mrb[0].mxu0 %v382
  %v820 = vpop.f32.mrb[0].mxu0
  %v821 = vadd.f32 0.0, %v820
  %v822 = vpop.f32.mrb[0].mxu0
  %v823 = vadd.f32 0.0, %v822
  %v824 = vpop.f32.mrb[0].mxu0
  %v825 = vadd.f32 0.0, %v824
  %v826 = vpop.f32.mrb[0].mxu0
  %v827 = vadd.f32 0.0, %v826
  %828 = vmatprep.mubr.bf16.mxu0 0
  %829 = vmatmul.mubr.bf16.gmra.mrb[0].mxu0 %v385
  %v830 = vpop.f32.mrb[0].mxu0
  %v831 = vadd.f32 0.0, %v830
  %v832 = vpop.f32.mrb[0].mxu0
  %v833 = vadd.f32 0.0, %v832
  %v834 = vpop.f32.mrb[0].mxu0
  %v835 = vadd.f32 0.0, %v834
  %v836 = vpop.f32.mrb[0].mxu0
  %v837 = vadd.f32 0.0, %v836
  %838 = vdwg.mxu0
  %839 = vmatprep.subr.bf16.mxu0 0
  %840 = vmatpush1.bf16.msra.mxu0 %v352
  %841 = vmatprep.subr.bf16.mxu0 0
  %842 = vmatpush1.bf16.msra.mxu0 0
  %843 = vmatprep.subr.bf16.mxu0 0
  %844 = vmatpush1.bf16.msra.mxu0 0
  %845 = vmatprep.subr.bf16.mxu0 0
  %846 = vmatpush1.bf16.msra.mxu0 0
  %847 = vmatprep.subr.bf16.mxu0 0
  %848 = vmatpush1.bf16.msra.mxu0 0
  %849 = vmatprep.subr.bf16.mxu0 0
  %850 = vmatpush1.bf16.msra.mxu0 0
  %851 = vmatprep.subr.bf16.mxu0 0
  %852 = vmatpush1.bf16.msra.mxu0 0
  %853 = vmatprep.subr.bf16.mxu0 0
  %854 = vmatpush1.bf16.msra.mxu0 0
  %855 = vmatprep.subr.bf16.mxu0 0
  %856 = vmatpush1.bf16.msra.mxu0 0
  %857 = vmatprep.subr.bf16.mxu0 0
  %858 = vmatpush1.bf16.msra.mxu0 0
  %859 = vmatprep.subr.bf16.mxu0 0
  %860 = vmatpush1.bf16.msra.mxu0 0
  %861 = vmatprep.subr.bf16.mxu0 0
  %862 = vmatpush1.bf16.msra.mxu0 0
  %863 = vmatprep.subr.bf16.mxu0 0
  %864 = vmatpush1.bf16.msra.mxu0 0
  %865 = vmatprep.subr.bf16.mxu0 0
  %866 = vmatpush1.bf16.msra.mxu0 0
  %867 = vmatprep.subr.bf16.mxu0 0
  %868 = vmatpush1.bf16.msra.mxu0 0
  %869 = vmatprep.subr.bf16.mxu0 0
  %870 = vmatpush1.bf16.msra.mxu0 0
  %871 = vmatprep.mubr.bf16.mxu0 0
  %872 = vmatmul.mubr.bf16.gmra.mrb[0].mxu0 %v364
  %v873 = vpop.f32.mrb[0].mxu0
  %v874 = vadd.f32 0.0, %v873
  %v875 = vpop.f32.mrb[0].mxu0
  %v876 = vpop.f32.mrb[0].mxu0
  %v877 = vadd.f32 0.0, %v876
  %v878 = vpop.f32.mrb[0].mxu0
  %879 = vmatprep.mubr.bf16.mxu0 0
  %880 = vmatmul.mubr.bf16.gmra.mrb[0].mxu0 %v367
  %v881 = vpop.f32.mrb[0].mxu0
  %v882 = vadd.f32 0.0, %v881
  %v883 = vpop.f32.mrb[0].mxu0
  %v884 = vpop.f32.mrb[0].mxu0
  %v885 = vadd.f32 0.0, %v884
  %v886 = vpop.f32.mrb[0].mxu0
  %887 = vmatprep.mubr.bf16.mxu0 0
  %888 = vmatmul.mubr.bf16.gmra.mrb[0].mxu0 %v370
  %v889 = vpop.f32.mrb[0].mxu0
  %v890 = vadd.f32 0.0, %v889
  %v891 = vpop.f32.mrb[0].mxu0
  %v892 = vpop.f32.mrb[0].mxu0
  %v893 = vadd.f32 0.0, %v892
  %v894 = vpop.f32.mrb[0].mxu0
  %895 = vmatprep.mubr.bf16.mxu0 0
  %896 = vmatmul.mubr.bf16.gmra.mrb[0].mxu0 %v373
  %v897 = vpop.f32.mrb[0].mxu0
  %v898 = vadd.f32 0.0, %v897
  %v899 = vpop.f32.mrb[0].mxu0
  %v900 = vpop.f32.mrb[0].mxu0
  %v901 = vadd.f32 0.0, %v900
  %v902 = vpop.f32.mrb[0].mxu0
  %903 = vmatprep.mubr.bf16.mxu0 0
  %904 = vmatmul.mubr.bf16.gmra.mrb[0].mxu0 %v376
  %v905 = vpop.f32.mrb[0].mxu0
  %v906 = vadd.f32 0.0, %v905
  %v907 = vpop.f32.mrb[0].mxu0
  %v908 = vpop.f32.mrb[0].mxu0
  %v909 = vadd.f32 0.0, %v908
  %v910 = vpop.f32.mrb[0].mxu0
  %911 = vmatprep.mubr.bf16.mxu0 0
  %912 = vmatmul.mubr.bf16.gmra.mrb[0].mxu0 %v379
  %v913 = vpop.f32.mrb[0].mxu0
  %v914 = vadd.f32 0.0, %v913
  %v915 = vpop.f32.mrb[0].mxu0
  %v916 = vpop.f32.mrb[0].mxu0
  %v917 = vadd.f32 0.0, %v916
  %v918 = vpop.f32.mrb[0].mxu0
  %919 = vmatprep.mubr.bf16.mxu0 0
  %920 = vmatmul.mubr.bf16.gmra.mrb[0].mxu0 %v382
  %v921 = vpop.f32.mrb[0].mxu0
  %v922 = vadd.f32 0.0, %v921
  %v923 = vpop.f32.mrb[0].mxu0
  %v924 = vpop.f32.mrb[0].mxu0
  %v925 = vadd.f32 0.0, %v924
  %v926 = vpop.f32.mrb[0].mxu0
  %927 = vmatprep.mubr.bf16.mxu0 0
  %928 = vmatmul.mubr.bf16.gmra.mrb[0].mxu0 %v385
  %v929 = vpop.f32.mrb[0].mxu0
  %v930 = vadd.f32 0.0, %v929
  %v931 = vpop.f32.mrb[0].mxu0
  %v932 = vpop.f32.mrb[0].mxu0
  %v933 = vadd.f32 0.0, %v932
  %v934 = vpop.f32.mrb[0].mxu0
  %935 = vdwg.mxu0
  %v936 = vpack.c.bf16 %v426, %v422
  %v937 = vpack.c.bf16 %v428, %v424
  %v938 = vpack.c.bf16 %v539, %v535
  %v939 = vpack.c.bf16 %v541, %v537
  %v940 = vpack.c.bf16 %v652, %v648
  %v941 = vpack.c.bf16 %v654, %v650
  %v942 = vpack.c.bf16 %v765, %v761
  %v943 = vpack.c.bf16 %v767, %v763
  %v944 = vpack.c.bf16 %v877, %v874
  %v945 = vpack.c.bf16 %v436, %v432
  %v946 = vpack.c.bf16 %v438, %v434
  %v947 = vpack.c.bf16 %v549, %v545
  %v948 = vpack.c.bf16 %v551, %v547
  %v949 = vpack.c.bf16 %v662, %v658
  %v950 = vpack.c.bf16 %v664, %v660
  %v951 = vpack.c.bf16 %v775, %v771
  %v952 = vpack.c.bf16 %v777, %v773
  %v953 = vpack.c.bf16 %v885, %v882
  %v954 = vpack.c.bf16 %v446, %v442
  %v955 = vpack.c.bf16 %v448, %v444
  %v956 = vpack.c.bf16 %v559, %v555
  %v957 = vpack.c.bf16 %v561, %v557
  %v958 = vpack.c.bf16 %v672, %v668
  %v959 = vpack.c.bf16 %v674, %v670
  %v960 = vpack.c.bf16 %v785, %v781
  %v961 = vpack.c.bf16 %v787, %v783
  %v962 = vpack.c.bf16 %v893, %v890
  %v963 = vpack.c.bf16 %v456, %v452
  %v964 = vpack.c.bf16 %v458, %v454
  %v965 = vpack.c.bf16 %v569, %v565
  %v966 = vpack.c.bf16 %v571, %v567
  %v967 = vpack.c.bf16 %v682, %v678
  %v968 = vpack.c.bf16 %v684, %v680
  %v969 = vpack.c.bf16 %v795, %v791
  %v970 = vpack.c.bf16 %v797, %v793
  %v971 = vpack.c.bf16 %v901, %v898
  %v972 = vpack.c.bf16 %v466, %v462
  %v973 = vpack.c.bf16 %v468, %v464
  %v974 = vpack.c.bf16 %v579, %v575
  %v975 = vpack.c.bf16 %v581, %v577
  %v976 = vpack.c.bf16 %v692, %v688
  %v977 = vpack.c.bf16 %v694, %v690
  %v978 = vpack.c.bf16 %v805, %v801
  %v979 = vpack.c.bf16 %v807, %v803
  %v980 = vpack.c.bf16 %v909, %v906
  %v981 = vpack.c.bf16 %v476, %v472
  %v982 = vpack.c.bf16 %v478, %v474
  %v983 = vpack.c.bf16 %v589, %v585
  %v984 = vpack.c.bf16 %v591, %v587
  %v985 = vpack.c.bf16 %v702, %v698
  %v986 = vpack.c.bf16 %v704, %v700
  %v987 = vpack.c.bf16 %v815, %v811
  %v988 = vpack.c.bf16 %v817, %v813
  %v989 = vpack.c.bf16 %v917, %v914
  %v990 = vpack.c.bf16 %v486, %v482
  %v991 = vpack.c.bf16 %v488, %v484
  %v992 = vpack.c.bf16 %v599, %v595
  %v993 = vpack.c.bf16 %v601, %v597
  %v994 = vpack.c.bf16 %v712, %v708
  %v995 = vpack.c.bf16 %v714, %v710
  %v996 = vpack.c.bf16 %v825, %v821
  %v997 = vpack.c.bf16 %v827, %v823
  %v998 = vpack.c.bf16 %v925, %v922
  %v999 = vpack.c.bf16 %v496, %v492
  %v1000 = vpack.c.bf16 %v498, %v494
  %v1001 = vpack.c.bf16 %v609, %v605
  %v1002 = vpack.c.bf16 %v611, %v607
  %v1003 = vpack.c.bf16 %v722, %v718
  %v1004 = vpack.c.bf16 %v724, %v720
  %v1005 = vpack.c.bf16 %v835, %v831
  %v1006 = vpack.c.bf16 %v837, %v833
  %v1007 = vpack.c.bf16 %v933, %v930
  %v1008 = vld [vmem:[%s5] sm:$0xf]
  %v1009 = vld [vmem:[%s5 + $0x4] sm:$0xf]
  %v1010 = vld [vmem:[%s5 + $0x8] sm:$0xf]
  %v1011 = vld [vmem:[%s5 + $0xc] sm:$0xf]
  %s1012 = scalar_lea.vmem %s5, 16
  %v1013 = vld [vmem:[%s1012] sm:$0xf]
  %v1014 = vld [vmem:[%s1012 + $0x4] sm:$0xf]
  %v1015 = vld [vmem:[%s1012 + $0x8] sm:$0xf]
  %v1016 = vld [vmem:[%s1012 + $0xc] sm:$0xf]
  %v1021 = vunpack.c.l.b16 %v1013
  %v1022 = vunpack.c.l.b16 %v1014
  %v1023 = vunpack.c.l.b16 %v1015
  %v1024 = vunpack.c.l.b16 %v1016
  %v1025 = vpack.c.b16 %v1022, %v1021
  %v1026 = vpack.c.b16 %v1024, %v1023
  %1029 = vmatprep.subr.bf16.mxu0 0
  %1030 = vmatpush1.bf16.msra.mxu0 %v937
  %1031 = vmatprep.subr.bf16.mxu0 0
  %1032 = vmatpush1.bf16.msra.mxu0 %v946
  %1033 = vmatprep.subr.bf16.mxu0 0
  %1034 = vmatpush1.bf16.msra.mxu0 %v955
  %1035 = vmatprep.subr.bf16.mxu0 0
  %1036 = vmatpush1.bf16.msra.mxu0 %v964
  %1037 = vmatprep.subr.bf16.mxu0 0
  %1038 = vmatpush1.bf16.msra.mxu0 %v973
  %1039 = vmatprep.subr.bf16.mxu0 0
  %1040 = vmatpush1.bf16.msra.mxu0 %v982
  %1041 = vmatprep.subr.bf16.mxu0 0
  %1042 = vmatpush1.bf16.msra.mxu0 %v991
  %1043 = vmatprep.subr.bf16.mxu0 0
  %1044 = vmatpush1.bf16.msra.mxu0 %v1000
  %1045 = vmatprep.subr.bf16.mxu0 0
  %1046 = vmatpush1.bf16.msra.mxu0 0
  %1047 = vmatprep.subr.bf16.mxu0 0
  %1048 = vmatpush1.bf16.msra.mxu0 0
  %1049 = vmatprep.subr.bf16.mxu0 0
  %1050 = vmatpush1.bf16.msra.mxu0 0
  %1051 = vmatprep.subr.bf16.mxu0 0
  %1052 = vmatpush1.bf16.msra.mxu0 0
  %1053 = vmatprep.subr.bf16.mxu0 0
  %1054 = vmatpush1.bf16.msra.mxu0 0
  %1055 = vmatprep.subr.bf16.mxu0 0
  %1056 = vmatpush1.bf16.msra.mxu0 0
  %1057 = vmatprep.subr.bf16.mxu0 0
  %1058 = vmatpush1.bf16.msra.mxu0 0
  %1059 = vmatprep.subr.bf16.mxu0 0
  %1060 = vmatpush1.bf16.msra.mxu0 0
  %1061 = vmatprep.mubr.bf16.mxu0 0
  %1062 = vmatmul.mubr.bf16.gmra.mrb[0].mxu0 %v1025
  %v1063 = vpop.f32.mrb[0].mxu0
  %v1064 = vadd.f32 0.0, %v1063
  %v1065 = vpop.f32.mrb[0].mxu0
  %v1066 = vpop.f32.mrb[0].mxu0
  %v1067 = vadd.f32 0.0, %v1066
  %v1068 = vpop.f32.mrb[0].mxu0
  %1069 = vmatprep.mubr.bf16.mxu0 0
  %1070 = vmatmul.mubr.bf16.gmra.mrb[0].mxu0 %v1026
  %v1071 = vpop.f32.mrb[0].mxu0
  %v1072 = vadd.f32 0.0, %v1071
  %v1073 = vpop.f32.mrb[0].mxu0
  %v1074 = vpop.f32.mrb[0].mxu0
  %v1075 = vadd.f32 0.0, %v1074
  %v1076 = vpop.f32.mrb[0].mxu0
  %1077 = vdwg.mxu0
  %v1082 = vunpack.c.l.b16 %v1008
  %v1083 = vunpack.c.l.b16 %v1009
  %v1084 = vunpack.c.l.b16 %v1010
  %v1085 = vunpack.c.l.b16 %v1011
  %v1086 = vpack.c.b16 %v1083, %v1082
  %v1087 = vpack.c.b16 %v1085, %v1084
  %1090 = vmatprep.subr.bf16.mxu0 0
  %1091 = vmatpush1.bf16.msra.mxu0 %v936
  %1092 = vmatprep.subr.bf16.mxu0 0
  %1093 = vmatpush1.bf16.msra.mxu0 %v945
  %1094 = vmatprep.subr.bf16.mxu0 0
  %1095 = vmatpush1.bf16.msra.mxu0 %v954
  %1096 = vmatprep.subr.bf16.mxu0 0
  %1097 = vmatpush1.bf16.msra.mxu0 %v963
  %1098 = vmatprep.subr.bf16.mxu0 0
  %1099 = vmatpush1.bf16.msra.mxu0 %v972
  %1100 = vmatprep.subr.bf16.mxu0 0
  %1101 = vmatpush1.bf16.msra.mxu0 %v981
  %1102 = vmatprep.subr.bf16.mxu0 0
  %1103 = vmatpush1.bf16.msra.mxu0 %v990
  %1104 = vmatprep.subr.bf16.mxu0 0
  %1105 = vmatpush1.bf16.msra.mxu0 %v999
  %1106 = vmatprep.subr.bf16.mxu0 0
  %1107 = vmatpush1.bf16.msra.mxu0 0
  %1108 = vmatprep.subr.bf16.mxu0 0
  %1109 = vmatpush1.bf16.msra.mxu0 0
  %1110 = vmatprep.subr.bf16.mxu0 0
  %1111 = vmatpush1.bf16.msra.mxu0 0
  %1112 = vmatprep.subr.bf16.mxu0 0
  %1113 = vmatpush1.bf16.msra.mxu0 0
  %1114 = vmatprep.subr.bf16.mxu0 0
  %1115 = vmatpush1.bf16.msra.mxu0 0
  %1116 = vmatprep.subr.bf16.mxu0 0
  %1117 = vmatpush1.bf16.msra.mxu0 0
  %1118 = vmatprep.subr.bf16.mxu0 0
  %1119 = vmatpush1.bf16.msra.mxu0 0
  %1120 = vmatprep.subr.bf16.mxu0 0
  %1121 = vmatpush1.bf16.msra.mxu0 0
  %1122 = vmatprep.mubr.bf16.mxu0 0
  %1123 = vmatmul.mubr.bf16.gmra.mrb[0].mxu0 %v1086
  %v1124 = vpop.f32.mrb[0].mxu0
  %v1125 = vadd.f32 %v1064, %v1124
  %v1126 = vpop.f32.mrb[0].mxu0
  %v1127 = vpop.f32.mrb[0].mxu0
  %v1128 = vadd.f32 %v1067, %v1127
  %v1129 = vpop.f32.mrb[0].mxu0
  %1130 = vmatprep.mubr.bf16.mxu0 0
  %1131 = vmatmul.mubr.bf16.gmra.mrb[0].mxu0 %v1087
  %v1132 = vpop.f32.mrb[0].mxu0
  %v1133 = vadd.f32 %v1072, %v1132
  %v1134 = vpop.f32.mrb[0].mxu0
  %v1135 = vpop.f32.mrb[0].mxu0
  %v1136 = vadd.f32 %v1075, %v1135
  %v1137 = vpop.f32.mrb[0].mxu0
  %1138 = vdwg.mxu0
  %s1139 = scalar_lea.vmem %s5, 32
  %v1140 = vld [vmem:[%s1139] sm:$0xf]
  %v1141 = vld [vmem:[%s1139 + $0x4] sm:$0xf]
  %v1142 = vld [vmem:[%s1139 + $0x8] sm:$0xf]
  %v1143 = vld [vmem:[%s1139 + $0xc] sm:$0xf]
  %v1148 = vunpack.c.l.b16 %v1140
  %v1149 = vunpack.c.l.b16 %v1141
  %v1150 = vunpack.c.l.b16 %v1142
  %v1151 = vunpack.c.l.b16 %v1143
  %v1152 = vpack.c.b16 %v1149, %v1148
  %v1153 = vpack.c.b16 %v1151, %v1150
  %1156 = vmatprep.subr.bf16.mxu0 0
  %1157 = vmatpush1.bf16.msra.mxu0 %v938
  %1158 = vmatprep.subr.bf16.mxu0 0
  %1159 = vmatpush1.bf16.msra.mxu0 %v947
  %1160 = vmatprep.subr.bf16.mxu0 0
  %1161 = vmatpush1.bf16.msra.mxu0 %v956
  %1162 = vmatprep.subr.bf16.mxu0 0
  %1163 = vmatpush1.bf16.msra.mxu0 %v965
  %1164 = vmatprep.subr.bf16.mxu0 0
  %1165 = vmatpush1.bf16.msra.mxu0 %v974
  %1166 = vmatprep.subr.bf16.mxu0 0
  %1167 = vmatpush1.bf16.msra.mxu0 %v983
  %1168 = vmatprep.subr.bf16.mxu0 0
  %1169 = vmatpush1.bf16.msra.mxu0 %v992
  %1170 = vmatprep.subr.bf16.mxu0 0
  %1171 = vmatpush1.bf16.msra.mxu0 %v1001
  %1172 = vmatprep.subr.bf16.mxu0 0
  %1173 = vmatpush1.bf16.msra.mxu0 0
  %1174 = vmatprep.subr.bf16.mxu0 0
  %1175 = vmatpush1.bf16.msra.mxu0 0
  %1176 = vmatprep.subr.bf16.mxu0 0
  %1177 = vmatpush1.bf16.msra.mxu0 0
  %1178 = vmatprep.subr.bf16.mxu0 0
  %1179 = vmatpush1.bf16.msra.mxu0 0
  %1180 = vmatprep.subr.bf16.mxu0 0
  %1181 = vmatpush1.bf16.msra.mxu0 0
  %1182 = vmatprep.subr.bf16.mxu0 0
  %1183 = vmatpush1.bf16.msra.mxu0 0
  %1184 = vmatprep.subr.bf16.mxu0 0
  %1185 = vmatpush1.bf16.msra.mxu0 0
  %1186 = vmatprep.subr.bf16.mxu0 0
  %1187 = vmatpush1.bf16.msra.mxu0 0
  %1188 = vmatprep.mubr.bf16.mxu0 0
  %1189 = vmatmul.mubr.bf16.gmra.mrb[0].mxu0 %v1152
  %v1190 = vpop.f32.mrb[0].mxu0
  %v1191 = vadd.f32 0.0, %v1190
  %v1192 = vpop.f32.mrb[0].mxu0
  %v1193 = vpop.f32.mrb[0].mxu0
  %v1194 = vadd.f32 0.0, %v1193
  %v1195 = vpop.f32.mrb[0].mxu0
  %1196 = vmatprep.mubr.bf16.mxu0 0
  %1197 = vmatmul.mubr.bf16.gmra.mrb[0].mxu0 %v1153
  %v1198 = vpop.f32.mrb[0].mxu0
  %v1199 = vadd.f32 0.0, %v1198
  %v1200 = vpop.f32.mrb[0].mxu0
  %v1201 = vpop.f32.mrb[0].mxu0
  %v1202 = vadd.f32 0.0, %v1201
  %v1203 = vpop.f32.mrb[0].mxu0
  %1204 = vdwg.mxu0
  %v1205 = vadd.f32 %v1125, %v1191
  %v1206 = vadd.f32 %v1128, %v1194
  %v1207 = vadd.f32 %v1133, %v1199
  %v1208 = vadd.f32 %v1136, %v1202
  %s1209 = scalar_lea.vmem %s5, 48
  %v1210 = vld [vmem:[%s1209] sm:$0xf]
  %v1211 = vld [vmem:[%s1209 + $0x4] sm:$0xf]
  %v1212 = vld [vmem:[%s1209 + $0x8] sm:$0xf]
  %v1213 = vld [vmem:[%s1209 + $0xc] sm:$0xf]
  %v1218 = vunpack.c.l.b16 %v1210
  %v1219 = vunpack.c.l.b16 %v1211
  %v1220 = vunpack.c.l.b16 %v1212
  %v1221 = vunpack.c.l.b16 %v1213
  %v1222 = vpack.c.b16 %v1219, %v1218
  %v1223 = vpack.c.b16 %v1221, %v1220
  %1226 = vmatprep.subr.bf16.mxu0 0
  %1227 = vmatpush1.bf16.msra.mxu0 %v939
  %1228 = vmatprep.subr.bf16.mxu0 0
  %1229 = vmatpush1.bf16.msra.mxu0 %v948
  %1230 = vmatprep.subr.bf16.mxu0 0
  %1231 = vmatpush1.bf16.msra.mxu0 %v957
  %1232 = vmatprep.subr.bf16.mxu0 0
  %1233 = vmatpush1.bf16.msra.mxu0 %v966
  %1234 = vmatprep.subr.bf16.mxu0 0
  %1235 = vmatpush1.bf16.msra.mxu0 %v975
  %1236 = vmatprep.subr.bf16.mxu0 0
  %1237 = vmatpush1.bf16.msra.mxu0 %v984
  %1238 = vmatprep.subr.bf16.mxu0 0
  %1239 = vmatpush1.bf16.msra.mxu0 %v993
  %1240 = vmatprep.subr.bf16.mxu0 0
  %1241 = vmatpush1.bf16.msra.mxu0 %v1002
  %1242 = vmatprep.subr.bf16.mxu0 0
  %1243 = vmatpush1.bf16.msra.mxu0 0
  %1244 = vmatprep.subr.bf16.mxu0 0
  %1245 = vmatpush1.bf16.msra.mxu0 0
  %1246 = vmatprep.subr.bf16.mxu0 0
  %1247 = vmatpush1.bf16.msra.mxu0 0
  %1248 = vmatprep.subr.bf16.mxu0 0
  %1249 = vmatpush1.bf16.msra.mxu0 0
  %1250 = vmatprep.subr.bf16.mxu0 0
  %1251 = vmatpush1.bf16.msra.mxu0 0
  %1252 = vmatprep.subr.bf16.mxu0 0
  %1253 = vmatpush1.bf16.msra.mxu0 0
  %1254 = vmatprep.subr.bf16.mxu0 0
  %1255 = vmatpush1.bf16.msra.mxu0 0
  %1256 = vmatprep.subr.bf16.mxu0 0
  %1257 = vmatpush1.bf16.msra.mxu0 0
  %1258 = vmatprep.mubr.bf16.mxu0 0
  %1259 = vmatmul.mubr.bf16.gmra.mrb[0].mxu0 %v1222
  %v1260 = vpop.f32.mrb[0].mxu0
  %v1261 = vadd.f32 0.0, %v1260
  %v1262 = vpop.f32.mrb[0].mxu0
  %v1263 = vpop.f32.mrb[0].mxu0
  %v1264 = vadd.f32 0.0, %v1263
  %v1265 = vpop.f32.mrb[0].mxu0
  %1266 = vmatprep.mubr.bf16.mxu0 0
  %1267 = vmatmul.mubr.bf16.gmra.mrb[0].mxu0 %v1223
  %v1268 = vpop.f32.mrb[0].mxu0
  %v1269 = vadd.f32 0.0, %v1268
  %v1270 = vpop.f32.mrb[0].mxu0
  %v1271 = vpop.f32.mrb[0].mxu0
  %v1272 = vadd.f32 0.0, %v1271
  %v1273 = vpop.f32.mrb[0].mxu0
  %1274 = vdwg.mxu0
  %v1275 = vadd.f32 %v1205, %v1261
  %v1276 = vadd.f32 %v1206, %v1264
  %v1277 = vadd.f32 %v1207, %v1269
  %v1278 = vadd.f32 %v1208, %v1272
  %s1279 = scalar_lea.vmem %s5, 64
  %v1280 = vld [vmem:[%s1279] sm:$0xf]
  %v1281 = vld [vmem:[%s1279 + $0x4] sm:$0xf]
  %v1282 = vld [vmem:[%s1279 + $0x8] sm:$0xf]
  %v1283 = vld [vmem:[%s1279 + $0xc] sm:$0xf]
  %v1288 = vunpack.c.l.b16 %v1280
  %v1289 = vunpack.c.l.b16 %v1281
  %v1290 = vunpack.c.l.b16 %v1282
  %v1291 = vunpack.c.l.b16 %v1283
  %v1292 = vpack.c.b16 %v1289, %v1288
  %v1293 = vpack.c.b16 %v1291, %v1290
  %1296 = vmatprep.subr.bf16.mxu0 0
  %1297 = vmatpush1.bf16.msra.mxu0 %v940
  %1298 = vmatprep.subr.bf16.mxu0 0
  %1299 = vmatpush1.bf16.msra.mxu0 %v949
  %1300 = vmatprep.subr.bf16.mxu0 0
  %1301 = vmatpush1.bf16.msra.mxu0 %v958
  %1302 = vmatprep.subr.bf16.mxu0 0
  %1303 = vmatpush1.bf16.msra.mxu0 %v967
  %1304 = vmatprep.subr.bf16.mxu0 0
  %1305 = vmatpush1.bf16.msra.mxu0 %v976
  %1306 = vmatprep.subr.bf16.mxu0 0
  %1307 = vmatpush1.bf16.msra.mxu0 %v985
  %1308 = vmatprep.subr.bf16.mxu0 0
  %1309 = vmatpush1.bf16.msra.mxu0 %v994
  %1310 = vmatprep.subr.bf16.mxu0 0
  %1311 = vmatpush1.bf16.msra.mxu0 %v1003
  %1312 = vmatprep.subr.bf16.mxu0 0
  %1313 = vmatpush1.bf16.msra.mxu0 0
  %1314 = vmatprep.subr.bf16.mxu0 0
  %1315 = vmatpush1.bf16.msra.mxu0 0
  %1316 = vmatprep.subr.bf16.mxu0 0
  %1317 = vmatpush1.bf16.msra.mxu0 0
  %1318 = vmatprep.subr.bf16.mxu0 0
  %1319 = vmatpush1.bf16.msra.mxu0 0
  %1320 = vmatprep.subr.bf16.mxu0 0
  %1321 = vmatpush1.bf16.msra.mxu0 0
  %1322 = vmatprep.subr.bf16.mxu0 0
  %1323 = vmatpush1.bf16.msra.mxu0 0
  %1324 = vmatprep.subr.bf16.mxu0 0
  %1325 = vmatpush1.bf16.msra.mxu0 0
  %1326 = vmatprep.subr.bf16.mxu0 0
  %1327 = vmatpush1.bf16.msra.mxu0 0
  %1328 = vmatprep.mubr.bf16.mxu0 0
  %1329 = vmatmul.mubr.bf16.gmra.mrb[0].mxu0 %v1292
  %v1330 = vpop.f32.mrb[0].mxu0
  %v1331 = vadd.f32 0.0, %v1330
  %v1332 = vpop.f32.mrb[0].mxu0
  %v1333 = vpop.f32.mrb[0].mxu0
  %v1334 = vadd.f32 0.0, %v1333
  %v1335 = vpop.f32.mrb[0].mxu0
  %1336 = vmatprep.mubr.bf16.mxu0 0
  %1337 = vmatmul.mubr.bf16.gmra.mrb[0].mxu0 %v1293
  %v1338 = vpop.f32.mrb[0].mxu0
  %v1339 = vadd.f32 0.0, %v1338
  %v1340 = vpop.f32.mrb[0].mxu0
  %v1341 = vpop.f32.mrb[0].mxu0
  %v1342 = vadd.f32 0.0, %v1341
  %v1343 = vpop.f32.mrb[0].mxu0
  %1344 = vdwg.mxu0
  %v1345 = vadd.f32 %v1275, %v1331
  %v1346 = vadd.f32 %v1276, %v1334
  %v1347 = vadd.f32 %v1277, %v1339
  %v1348 = vadd.f32 %v1278, %v1342
  %s1349 = scalar_lea.vmem %s5, 80
  %v1350 = vld [vmem:[%s1349] sm:$0xf]
  %v1351 = vld [vmem:[%s1349 + $0x4] sm:$0xf]
  %v1352 = vld [vmem:[%s1349 + $0x8] sm:$0xf]
  %v1353 = vld [vmem:[%s1349 + $0xc] sm:$0xf]
  %v1358 = vunpack.c.l.b16 %v1350
  %v1359 = vunpack.c.l.b16 %v1351
  %v1360 = vunpack.c.l.b16 %v1352
  %v1361 = vunpack.c.l.b16 %v1353
  %v1362 = vpack.c.b16 %v1359, %v1358
  %v1363 = vpack.c.b16 %v1361, %v1360
  %1366 = vmatprep.subr.bf16.mxu0 0
  %1367 = vmatpush1.bf16.msra.mxu0 %v941
  %1368 = vmatprep.subr.bf16.mxu0 0
  %1369 = vmatpush1.bf16.msra.mxu0 %v950
  %1370 = vmatprep.subr.bf16.mxu0 0
  %1371 = vmatpush1.bf16.msra.mxu0 %v959
  %1372 = vmatprep.subr.bf16.mxu0 0
  %1373 = vmatpush1.bf16.msra.mxu0 %v968
  %1374 = vmatprep.subr.bf16.mxu0 0
  %1375 = vmatpush1.bf16.msra.mxu0 %v977
  %1376 = vmatprep.subr.bf16.mxu0 0
  %1377 = vmatpush1.bf16.msra.mxu0 %v986
  %1378 = vmatprep.subr.bf16.mxu0 0
  %1379 = vmatpush1.bf16.msra.mxu0 %v995
  %1380 = vmatprep.subr.bf16.mxu0 0
  %1381 = vmatpush1.bf16.msra.mxu0 %v1004
  %1382 = vmatprep.subr.bf16.mxu0 0
  %1383 = vmatpush1.bf16.msra.mxu0 0
  %1384 = vmatprep.subr.bf16.mxu0 0
  %1385 = vmatpush1.bf16.msra.mxu0 0
  %1386 = vmatprep.subr.bf16.mxu0 0
  %1387 = vmatpush1.bf16.msra.mxu0 0
  %1388 = vmatprep.subr.bf16.mxu0 0
  %1389 = vmatpush1.bf16.msra.mxu0 0
  %1390 = vmatprep.subr.bf16.mxu0 0
  %1391 = vmatpush1.bf16.msra.mxu0 0
  %1392 = vmatprep.subr.bf16.mxu0 0
  %1393 = vmatpush1.bf16.msra.mxu0 0
  %1394 = vmatprep.subr.bf16.mxu0 0
  %1395 = vmatpush1.bf16.msra.mxu0 0
  %1396 = vmatprep.subr.bf16.mxu0 0
  %1397 = vmatpush1.bf16.msra.mxu0 0
  %1398 = vmatprep.mubr.bf16.mxu0 0
  %1399 = vmatmul.mubr.bf16.gmra.mrb[0].mxu0 %v1362
  %v1400 = vpop.f32.mrb[0].mxu0
  %v1401 = vadd.f32 0.0, %v1400
  %v1402 = vpop.f32.mrb[0].mxu0
  %v1403 = vpop.f32.mrb[0].mxu0
  %v1404 = vadd.f32 0.0, %v1403
  %v1405 = vpop.f32.mrb[0].mxu0
  %1406 = vmatprep.mubr.bf16.mxu0 0
  %1407 = vmatmul.mubr.bf16.gmra.mrb[0].mxu0 %v1363
  %v1408 = vpop.f32.mrb[0].mxu0
  %v1409 = vadd.f32 0.0, %v1408
  %v1410 = vpop.f32.mrb[0].mxu0
  %v1411 = vpop.f32.mrb[0].mxu0
  %v1412 = vadd.f32 0.0, %v1411
  %v1413 = vpop.f32.mrb[0].mxu0
  %1414 = vdwg.mxu0
  %v1415 = vadd.f32 %v1345, %v1401
  %v1416 = vadd.f32 %v1346, %v1404
  %v1417 = vadd.f32 %v1347, %v1409
  %v1418 = vadd.f32 %v1348, %v1412
  %s1419 = scalar_lea.vmem %s5, 96
  %v1420 = vld [vmem:[%s1419] sm:$0xf]
  %v1421 = vld [vmem:[%s1419 + $0x4] sm:$0xf]
  %v1422 = vld [vmem:[%s1419 + $0x8] sm:$0xf]
  %v1423 = vld [vmem:[%s1419 + $0xc] sm:$0xf]
  %v1428 = vunpack.c.l.b16 %v1420
  %v1429 = vunpack.c.l.b16 %v1421
  %v1430 = vunpack.c.l.b16 %v1422
  %v1431 = vunpack.c.l.b16 %v1423
  %v1432 = vpack.c.b16 %v1429, %v1428
  %v1433 = vpack.c.b16 %v1431, %v1430
  %1436 = vmatprep.subr.bf16.mxu0 0
  %1437 = vmatpush1.bf16.msra.mxu0 %v942
  %1438 = vmatprep.subr.bf16.mxu0 0
  %1439 = vmatpush1.bf16.msra.mxu0 %v951
  %1440 = vmatprep.subr.bf16.mxu0 0
  %1441 = vmatpush1.bf16.msra.mxu0 %v960
  %1442 = vmatprep.subr.bf16.mxu0 0
  %1443 = vmatpush1.bf16.msra.mxu0 %v969
  %1444 = vmatprep.subr.bf16.mxu0 0
  %1445 = vmatpush1.bf16.msra.mxu0 %v978
  %1446 = vmatprep.subr.bf16.mxu0 0
  %1447 = vmatpush1.bf16.msra.mxu0 %v987
  %1448 = vmatprep.subr.bf16.mxu0 0
  %1449 = vmatpush1.bf16.msra.mxu0 %v996
  %1450 = vmatprep.subr.bf16.mxu0 0
  %1451 = vmatpush1.bf16.msra.mxu0 %v1005
  %1452 = vmatprep.subr.bf16.mxu0 0
  %1453 = vmatpush1.bf16.msra.mxu0 0
  %1454 = vmatprep.subr.bf16.mxu0 0
  %1455 = vmatpush1.bf16.msra.mxu0 0
  %1456 = vmatprep.subr.bf16.mxu0 0
  %1457 = vmatpush1.bf16.msra.mxu0 0
  %1458 = vmatprep.subr.bf16.mxu0 0
  %1459 = vmatpush1.bf16.msra.mxu0 0
  %1460 = vmatprep.subr.bf16.mxu0 0
  %1461 = vmatpush1.bf16.msra.mxu0 0
  %1462 = vmatprep.subr.bf16.mxu0 0
  %1463 = vmatpush1.bf16.msra.mxu0 0
  %1464 = vmatprep.subr.bf16.mxu0 0
  %1465 = vmatpush1.bf16.msra.mxu0 0
  %1466 = vmatprep.subr.bf16.mxu0 0
  %1467 = vmatpush1.bf16.msra.mxu0 0
  %1468 = vmatprep.mubr.bf16.mxu0 0
  %1469 = vmatmul.mubr.bf16.gmra.mrb[0].mxu0 %v1432
  %v1470 = vpop.f32.mrb[0].mxu0
  %v1471 = vadd.f32 0.0, %v1470
  %v1472 = vpop.f32.mrb[0].mxu0
  %v1473 = vpop.f32.mrb[0].mxu0
  %v1474 = vadd.f32 0.0, %v1473
  %v1475 = vpop.f32.mrb[0].mxu0
  %1476 = vmatprep.mubr.bf16.mxu0 0
  %1477 = vmatmul.mubr.bf16.gmra.mrb[0].mxu0 %v1433
  %v1478 = vpop.f32.mrb[0].mxu0
  %v1479 = vadd.f32 0.0, %v1478
  %v1480 = vpop.f32.mrb[0].mxu0
  %v1481 = vpop.f32.mrb[0].mxu0
  %v1482 = vadd.f32 0.0, %v1481
  %v1483 = vpop.f32.mrb[0].mxu0
  %1484 = vdwg.mxu0
  %v1485 = vadd.f32 %v1415, %v1471
  %v1486 = vadd.f32 %v1416, %v1474
  %v1487 = vadd.f32 %v1417, %v1479
  %v1488 = vadd.f32 %v1418, %v1482
  %s1489 = scalar_lea.vmem %s5, 112
  %v1490 = vld [vmem:[%s1489] sm:$0xf]
  %v1491 = vld [vmem:[%s1489 + $0x4] sm:$0xf]
  %v1492 = vld [vmem:[%s1489 + $0x8] sm:$0xf]
  %v1493 = vld [vmem:[%s1489 + $0xc] sm:$0xf]
  %v1498 = vunpack.c.l.b16 %v1490
  %v1499 = vunpack.c.l.b16 %v1491
  %v1500 = vunpack.c.l.b16 %v1492
  %v1501 = vunpack.c.l.b16 %v1493
  %v1502 = vpack.c.b16 %v1499, %v1498
  %v1503 = vpack.c.b16 %v1501, %v1500
  %1506 = vmatprep.subr.bf16.mxu0 0
  %1507 = vmatpush1.bf16.msra.mxu0 %v943
  %1508 = vmatprep.subr.bf16.mxu0 0
  %1509 = vmatpush1.bf16.msra.mxu0 %v952
  %1510 = vmatprep.subr.bf16.mxu0 0
  %1511 = vmatpush1.bf16.msra.mxu0 %v961
  %1512 = vmatprep.subr.bf16.mxu0 0
  %1513 = vmatpush1.bf16.msra.mxu0 %v970
  %1514 = vmatprep.subr.bf16.mxu0 0
  %1515 = vmatpush1.bf16.msra.mxu0 %v979
  %1516 = vmatprep.subr.bf16.mxu0 0
  %1517 = vmatpush1.bf16.msra.mxu0 %v988
  %1518 = vmatprep.subr.bf16.mxu0 0
  %1519 = vmatpush1.bf16.msra.mxu0 %v997
  %1520 = vmatprep.subr.bf16.mxu0 0
  %1521 = vmatpush1.bf16.msra.mxu0 %v1006
  %1522 = vmatprep.subr.bf16.mxu0 0
  %1523 = vmatpush1.bf16.msra.mxu0 0
  %1524 = vmatprep.subr.bf16.mxu0 0
  %1525 = vmatpush1.bf16.msra.mxu0 0
  %1526 = vmatprep.subr.bf16.mxu0 0
  %1527 = vmatpush1.bf16.msra.mxu0 0
  %1528 = vmatprep.subr.bf16.mxu0 0
  %1529 = vmatpush1.bf16.msra.mxu0 0
  %1530 = vmatprep.subr.bf16.mxu0 0
  %1531 = vmatpush1.bf16.msra.mxu0 0
  %1532 = vmatprep.subr.bf16.mxu0 0
  %1533 = vmatpush1.bf16.msra.mxu0 0
  %1534 = vmatprep.subr.bf16.mxu0 0
  %1535 = vmatpush1.bf16.msra.mxu0 0
  %1536 = vmatprep.subr.bf16.mxu0 0
  %1537 = vmatpush1.bf16.msra.mxu0 0
  %1538 = vmatprep.mubr.bf16.mxu0 0
  %1539 = vmatmul.mubr.bf16.gmra.mrb[0].mxu0 %v1502
  %v1540 = vpop.f32.mrb[0].mxu0
  %v1541 = vadd.f32 0.0, %v1540
  %v1542 = vpop.f32.mrb[0].mxu0
  %v1543 = vpop.f32.mrb[0].mxu0
  %v1544 = vadd.f32 0.0, %v1543
  %v1545 = vpop.f32.mrb[0].mxu0
  %1546 = vmatprep.mubr.bf16.mxu0 0
  %1547 = vmatmul.mubr.bf16.gmra.mrb[0].mxu0 %v1503
  %v1548 = vpop.f32.mrb[0].mxu0
  %v1549 = vadd.f32 0.0, %v1548
  %v1550 = vpop.f32.mrb[0].mxu0
  %v1551 = vpop.f32.mrb[0].mxu0
  %v1552 = vadd.f32 0.0, %v1551
  %v1553 = vpop.f32.mrb[0].mxu0
  %1554 = vdwg.mxu0
  %v1555 = vadd.f32 %v1485, %v1541
  %v1556 = vadd.f32 %v1486, %v1544
  %v1557 = vadd.f32 %v1487, %v1549
  %v1558 = vadd.f32 %v1488, %v1552
  %s1559 = scalar_lea.vmem %s5, 128
  %v1560 = vld [vmem:[%s1559] sm:$0xf]
  %v1561 = vld [vmem:[%s1559 + $0x4] sm:$0xf]
  %v1562 = vld [vmem:[%s1559 + $0x8] sm:$0xf]
  %v1563 = vld [vmem:[%s1559 + $0xc] sm:$0xf]
  %v1568 = vunpack.c.l.b16 %v1560
  %v1569 = vunpack.c.l.b16 %v1561
  %v1570 = vunpack.c.l.b16 %v1562
  %v1571 = vunpack.c.l.b16 %v1563
  %v1572 = vpack.c.b16 %v1569, %v1568
  %v1573 = vpack.c.b16 %v1571, %v1570
  %1576 = vmatprep.subr.bf16.mxu0 0
  %1577 = vmatpush1.bf16.msra.mxu0 %v944
  %1578 = vmatprep.subr.bf16.mxu0 0
  %1579 = vmatpush1.bf16.msra.mxu0 %v953
  %1580 = vmatprep.subr.bf16.mxu0 0
  %1581 = vmatpush1.bf16.msra.mxu0 %v962
  %1582 = vmatprep.subr.bf16.mxu0 0
  %1583 = vmatpush1.bf16.msra.mxu0 %v971
  %1584 = vmatprep.subr.bf16.mxu0 0
  %1585 = vmatpush1.bf16.msra.mxu0 %v980
  %1586 = vmatprep.subr.bf16.mxu0 0
  %1587 = vmatpush1.bf16.msra.mxu0 %v989
  %1588 = vmatprep.subr.bf16.mxu0 0
  %1589 = vmatpush1.bf16.msra.mxu0 %v998
  %1590 = vmatprep.subr.bf16.mxu0 0
  %1591 = vmatpush1.bf16.msra.mxu0 %v1007
  %1592 = vmatprep.subr.bf16.mxu0 0
  %1593 = vmatpush1.bf16.msra.mxu0 0
  %1594 = vmatprep.subr.bf16.mxu0 0
  %1595 = vmatpush1.bf16.msra.mxu0 0
  %1596 = vmatprep.subr.bf16.mxu0 0
  %1597 = vmatpush1.bf16.msra.mxu0 0
  %1598 = vmatprep.subr.bf16.mxu0 0
  %1599 = vmatpush1.bf16.msra.mxu0 0
  %1600 = vmatprep.subr.bf16.mxu0 0
  %1601 = vmatpush1.bf16.msra.mxu0 0
  %1602 = vmatprep.subr.bf16.mxu0 0
  %1603 = vmatpush1.bf16.msra.mxu0 0
  %1604 = vmatprep.subr.bf16.mxu0 0
  %1605 = vmatpush1.bf16.msra.mxu0 0
  %1606 = vmatprep.subr.bf16.mxu0 0
  %1607 = vmatpush1.bf16.msra.mxu0 0
  %1608 = vmatprep.mubr.bf16.mxu0 0
  %1609 = vmatmul.mubr.bf16.gmra.mrb[0].mxu0 %v1572
  %v1610 = vpop.f32.mrb[0].mxu0
  %v1611 = vadd.f32 0.0, %v1610
  %v1612 = vpop.f32.mrb[0].mxu0
  %v1613 = vpop.f32.mrb[0].mxu0
  %v1614 = vadd.f32 0.0, %v1613
  %v1615 = vpop.f32.mrb[0].mxu0
  %1616 = vmatprep.mubr.bf16.mxu0 0
  %1617 = vmatmul.mubr.bf16.gmra.mrb[0].mxu0 %v1573
  %v1618 = vpop.f32.mrb[0].mxu0
  %v1619 = vadd.f32 0.0, %v1618
  %v1620 = vpop.f32.mrb[0].mxu0
  %v1621 = vpop.f32.mrb[0].mxu0
  %v1622 = vadd.f32 0.0, %v1621
  %v1623 = vpop.f32.mrb[0].mxu0
  %1624 = vdwg.mxu0
  %v1625 = vadd.f32 %v1555, %v1611
  %v1626 = vadd.f32 %v1556, %v1614
  %v1627 = vadd.f32 %v1557, %v1619
  %v1628 = vadd.f32 %v1558, %v1622
  %v1629 = vld [vmem:[%s9 + $0x1] sm:$0x1]
  %v1630 = vlaneseq
  %v1631 = vshrl.u32 %v1630, 7
  %v1632 = vsub.s32 0, %v1631
  %v1633 = vrot.slane %v1629, %v1632
  %v1634 = vadd.f32 %v1625, %v1633
  %v1635 = vadd.f32 %v1626, %v1633
  %v1636 = vadd.f32 %v1627, %v1633
  %v1637 = vadd.f32 %v1628, %v1633
  %v1638 = vmul.f32 %v1634, 0.2
  %v1639 = vmul.f32 %v1635, 0.2
  %v1640 = vmul.f32 %v1636, 0.2
  %v1641 = vmul.f32 %v1637, 0.2
  %v1642 = vmax.f32 %v1634, %v1638
  %v1643 = vmax.f32 %v1635, %v1639
  %v1644 = vmax.f32 %v1636, %v1640
  %v1645 = vmax.f32 %v1637, %v1641
  %v1646 = vld [vmem:[%s9 + $0x2] sm:$0x1]
  %v1647 = vlaneseq
  %v1648 = vshrl.u32 %v1647, 7
  %v1649 = vsub.s32 0, %v1648
  %v1650 = vrot.slane %v1646, %v1649
  %v1651 = vmul.f32 %v1642, %v1650
  %v1652 = vmul.f32 %v1643, %v1650
  %v1653 = vmul.f32 %v1644, %v1650
  %v1654 = vmul.f32 %v1645, %v1650
  %v1655 = vld [vmem:[%s9 + $0x3] sm:$0x1]
  %v1656 = vlaneseq
  %v1657 = vshrl.u32 %v1656, 7
  %v1658 = vsub.s32 0, %v1657
  %v1659 = vrot.slane %v1655, %v1658
  %v1660 = vadd.f32 %v1651, %v1659
  %v1661 = vadd.f32 %v1652, %v1659
  %v1662 = vadd.f32 %v1653, %v1659
  %v1663 = vadd.f32 %v1654, %v1659
  %v1664 = vpack.c.bf16 %v1661, %v1660
  %v1665 = vpack.c.bf16 %v1663, %v1662
  %v1666 = vld [vmem:[%s3] sm:$0xff]
  %v1667 = vld [vmem:[%s3 + $0x8] sm:$0xff]
  %v1668 = vld [vmem:[%s3 + $0x10] sm:$0xff]
  %v1669 = vld [vmem:[%s3 + $0x18] sm:$0xff]
  %v1670 = vld [vmem:[%s3 + $0x20] sm:$0xf]
  %v1671 = vld [vmem:[%s3 + $0x24] sm:$0xff]
  %v1672 = vld [vmem:[%s3 + $0x2c] sm:$0xff]
  %v1673 = vld [vmem:[%s3 + $0x34] sm:$0xff]
  %v1674 = vld [vmem:[%s3 + $0x3c] sm:$0xff]
  %v1675 = vld [vmem:[%s3 + $0x44] sm:$0xf]
  %v1676 = vld [vmem:[%s3 + $0x48] sm:$0xff]
  %v1677 = vld [vmem:[%s3 + $0x50] sm:$0xff]
  %v1678 = vld [vmem:[%s3 + $0x58] sm:$0xff]
  %v1679 = vld [vmem:[%s3 + $0x60] sm:$0xff]
  %v1680 = vld [vmem:[%s3 + $0x68] sm:$0xf]
  %v1681 = vld [vmem:[%s3 + $0x6c] sm:$0xff]
  %v1682 = vld [vmem:[%s3 + $0x74] sm:$0xff]
  %v1683 = vld [vmem:[%s3 + $0x7c] sm:$0xff]
  %v1684 = vld [vmem:[%s3 + $0x84] sm:$0xff]
  %v1685 = vld [vmem:[%s3 + $0x8c] sm:$0xf]
  %v1706 = vunpack.c.l.b16 %v1666
  %v1707 = vunpack.c.h.b16 %v1666
  %v1708 = vunpack.c.l.b16 %v1667
  %v1709 = vunpack.c.h.b16 %v1667
  %v1710 = vunpack.c.l.b16 %v1668
  %v1711 = vunpack.c.h.b16 %v1668
  %v1712 = vunpack.c.l.b16 %v1669
  %v1713 = vunpack.c.h.b16 %v1669
  %v1714 = vunpack.c.l.b16 %v1670
  %v1715 = vunpack.c.l.b16 %v1671
  %v1716 = vunpack.c.h.b16 %v1671
  %v1717 = vunpack.c.l.b16 %v1672
  %v1718 = vunpack.c.h.b16 %v1672
  %v1719 = vunpack.c.l.b16 %v1673
  %v1720 = vunpack.c.h.b16 %v1673
  %v1721 = vunpack.c.l.b16 %v1674
  %v1722 = vunpack.c.h.b16 %v1674
  %v1723 = vunpack.c.l.b16 %v1675
  %v1724 = vunpack.c.l.b16 %v1676
  %v1725 = vunpack.c.h.b16 %v1676
  %v1726 = vunpack.c.l.b16 %v1677
  %v1727 = vunpack.c.h.b16 %v1677
  %v1728 = vunpack.c.l.b16 %v1678
  %v1729 = vunpack.c.h.b16 %v1678
  %v1730 = vunpack.c.l.b16 %v1679
  %v1731 = vunpack.c.h.b16 %v1679
  %v1732 = vunpack.c.l.b16 %v1680
  %v1733 = vunpack.c.l.b16 %v1681
  %v1734 = vunpack.c.h.b16 %v1681
  %v1735 = vunpack.c.l.b16 %v1682
  %v1736 = vunpack.c.h.b16 %v1682
  %v1737 = vunpack.c.l.b16 %v1683
  %v1738 = vunpack.c.h.b16 %v1683
  %v1739 = vunpack.c.l.b16 %v1684
  %v1740 = vunpack.c.h.b16 %v1684
  %v1741 = vunpack.c.l.b16 %v1685
  %v1742 = vpack.c.b16 %v1715, %v1706
  %v1743 = vpack.c.b16 %v1716, %v1707
  %v1744 = vpack.c.b16 %v1717, %v1708
  %v1745 = vpack.c.b16 %v1718, %v1709
  %v1746 = vpack.c.b16 %v1719, %v1710
  %v1747 = vpack.c.b16 %v1720, %v1711
  %v1748 = vpack.c.b16 %v1721, %v1712
  %v1749 = vpack.c.b16 %v1722, %v1713
  %v1750 = vpack.c.b16 %v1723, %v1714
  %v1751 = vpack.c.b16 %v1733, %v1724
  %v1752 = vpack.c.b16 %v1734, %v1725
  %v1753 = vpack.c.b16 %v1735, %v1726
  %v1754 = vpack.c.b16 %v1736, %v1727
  %v1755 = vpack.c.b16 %v1737, %v1728
  %v1756 = vpack.c.b16 %v1738, %v1729
  %v1757 = vpack.c.b16 %v1739, %v1730
  %v1758 = vpack.c.b16 %v1740, %v1731
  %v1759 = vpack.c.b16 %v1741, %v1732
  %vm1778 = vcmask 261120
  %v1780 = vsel %vm1778, %v1664, 0
  %v1783 = vsel %vm1778, %v1665, 0
  %1785 = vmatprep.subr.bf16.mxu0 %v1743
  %1786 = vmatpush1.bf16.msra.mxu0 %v1742
  %1787 = vmatprep.subr.bf16.mxu0 %v1752
  %1788 = vmatpush1.bf16.msra.mxu0 %v1751
  %1789 = vmatprep.subr.bf16.mxu0 0
  %1790 = vmatpush1.bf16.msra.mxu0 0
  %1791 = vmatprep.subr.bf16.mxu0 0
  %1792 = vmatpush1.bf16.msra.mxu0 0
  %1793 = vmatprep.subr.bf16.mxu0 0
  %1794 = vmatpush1.bf16.msra.mxu0 0
  %1795 = vmatprep.subr.bf16.mxu0 0
  %1796 = vmatpush1.bf16.msra.mxu0 0
  %1797 = vmatprep.subr.bf16.mxu0 0
  %1798 = vmatpush1.bf16.msra.mxu0 0
  %1799 = vmatprep.subr.bf16.mxu0 0
  %1800 = vmatpush1.bf16.msra.mxu0 0
  %1801 = vmatprep.subr.bf16.mxu0 0
  %1802 = vmatpush1.bf16.msra.mxu0 0
  %1803 = vmatprep.subr.bf16.mxu0 0
  %1804 = vmatpush1.bf16.msra.mxu0 0
  %1805 = vmatprep.subr.bf16.mxu0 0
  %1806 = vmatpush1.bf16.msra.mxu0 0
  %1807 = vmatprep.subr.bf16.mxu0 0
  %1808 = vmatpush1.bf16.msra.mxu0 0
  %1809 = vmatprep.subr.bf16.mxu0 0
  %1810 = vmatpush1.bf16.msra.mxu0 0
  %1811 = vmatprep.subr.bf16.mxu0 0
  %1812 = vmatpush1.bf16.msra.mxu0 0
  %1813 = vmatprep.subr.bf16.mxu0 0
  %1814 = vmatpush1.bf16.msra.mxu0 0
  %1815 = vmatprep.subr.bf16.mxu0 0
  %1816 = vmatpush1.bf16.msra.mxu0 0
  %1817 = vmatprep.mubr.bf16.mxu0 0
  %1818 = vmatmul.mubr.bf16.gmra.mrb[0].mxu0 %v1780
  %v1819 = vpop.f32.mrb[0].mxu0
  %v1820 = vadd.f32 0.0, %v1819
  %v1821 = vpop.f32.mrb[0].mxu0
  %v1822 = vadd.f32 0.0, %v1821
  %v1823 = vpop.f32.mrb[0].mxu0
  %v1824 = vadd.f32 0.0, %v1823
  %v1825 = vpop.f32.mrb[0].mxu0
  %v1826 = vadd.f32 0.0, %v1825
  %1827 = vmatprep.mubr.bf16.mxu0 0
  %1828 = vmatmul.mubr.bf16.gmra.mrb[0].mxu0 %v1783
  %v1829 = vpop.f32.mrb[0].mxu0
  %v1830 = vadd.f32 0.0, %v1829
  %v1831 = vpop.f32.mrb[0].mxu0
  %v1832 = vadd.f32 0.0, %v1831
  %v1833 = vpop.f32.mrb[0].mxu0
  %v1834 = vadd.f32 0.0, %v1833
  %v1835 = vpop.f32.mrb[0].mxu0
  %v1836 = vadd.f32 0.0, %v1835
  %1837 = vdwg.mxu0
  %1838 = vmatprep.subr.bf16.mxu0 %v1745
  %1839 = vmatpush1.bf16.msra.mxu0 %v1744
  %1840 = vmatprep.subr.bf16.mxu0 %v1754
  %1841 = vmatpush1.bf16.msra.mxu0 %v1753
  %1842 = vmatprep.subr.bf16.mxu0 0
  %1843 = vmatpush1.bf16.msra.mxu0 0
  %1844 = vmatprep.subr.bf16.mxu0 0
  %1845 = vmatpush1.bf16.msra.mxu0 0
  %1846 = vmatprep.subr.bf16.mxu0 0
  %1847 = vmatpush1.bf16.msra.mxu0 0
  %1848 = vmatprep.subr.bf16.mxu0 0
  %1849 = vmatpush1.bf16.msra.mxu0 0
  %1850 = vmatprep.subr.bf16.mxu0 0
  %1851 = vmatpush1.bf16.msra.mxu0 0
  %1852 = vmatprep.subr.bf16.mxu0 0
  %1853 = vmatpush1.bf16.msra.mxu0 0
  %1854 = vmatprep.subr.bf16.mxu0 0
  %1855 = vmatpush1.bf16.msra.mxu0 0
  %1856 = vmatprep.subr.bf16.mxu0 0
  %1857 = vmatpush1.bf16.msra.mxu0 0
  %1858 = vmatprep.subr.bf16.mxu0 0
  %1859 = vmatpush1.bf16.msra.mxu0 0
  %1860 = vmatprep.subr.bf16.mxu0 0
  %1861 = vmatpush1.bf16.msra.mxu0 0
  %1862 = vmatprep.subr.bf16.mxu0 0
  %1863 = vmatpush1.bf16.msra.mxu0 0
  %1864 = vmatprep.subr.bf16.mxu0 0
  %1865 = vmatpush1.bf16.msra.mxu0 0
  %1866 = vmatprep.subr.bf16.mxu0 0
  %1867 = vmatpush1.bf16.msra.mxu0 0
  %1868 = vmatprep.subr.bf16.mxu0 0
  %1869 = vmatpush1.bf16.msra.mxu0 0
  %1870 = vmatprep.mubr.bf16.mxu0 0
  %1871 = vmatmul.mubr.bf16.gmra.mrb[0].mxu0 %v1780
  %v1872 = vpop.f32.mrb[0].mxu0
  %v1873 = vadd.f32 0.0, %v1872
  %v1874 = vpop.f32.mrb[0].mxu0
  %v1875 = vadd.f32 0.0, %v1874
  %v1876 = vpop.f32.mrb[0].mxu0
  %v1877 = vadd.f32 0.0, %v1876
  %v1878 = vpop.f32.mrb[0].mxu0
  %v1879 = vadd.f32 0.0, %v1878
  %1880 = vmatprep.mubr.bf16.mxu0 0
  %1881 = vmatmul.mubr.bf16.gmra.mrb[0].mxu0 %v1783
  %v1882 = vpop.f32.mrb[0].mxu0
  %v1883 = vadd.f32 0.0, %v1882
  %v1884 = vpop.f32.mrb[0].mxu0
  %v1885 = vadd.f32 0.0, %v1884
  %v1886 = vpop.f32.mrb[0].mxu0
  %v1887 = vadd.f32 0.0, %v1886
  %v1888 = vpop.f32.mrb[0].mxu0
  %v1889 = vadd.f32 0.0, %v1888
  %1890 = vdwg.mxu0
  %1891 = vmatprep.subr.bf16.mxu0 %v1747
  %1892 = vmatpush1.bf16.msra.mxu0 %v1746
  %1893 = vmatprep.subr.bf16.mxu0 %v1756
  %1894 = vmatpush1.bf16.msra.mxu0 %v1755
  %1895 = vmatprep.subr.bf16.mxu0 0
  %1896 = vmatpush1.bf16.msra.mxu0 0
  %1897 = vmatprep.subr.bf16.mxu0 0
  %1898 = vmatpush1.bf16.msra.mxu0 0
  %1899 = vmatprep.subr.bf16.mxu0 0
  %1900 = vmatpush1.bf16.msra.mxu0 0
  %1901 = vmatprep.subr.bf16.mxu0 0
  %1902 = vmatpush1.bf16.msra.mxu0 0
  %1903 = vmatprep.subr.bf16.mxu0 0
  %1904 = vmatpush1.bf16.msra.mxu0 0
  %1905 = vmatprep.subr.bf16.mxu0 0
  %1906 = vmatpush1.bf16.msra.mxu0 0
  %1907 = vmatprep.subr.bf16.mxu0 0
  %1908 = vmatpush1.bf16.msra.mxu0 0
  %1909 = vmatprep.subr.bf16.mxu0 0
  %1910 = vmatpush1.bf16.msra.mxu0 0
  %1911 = vmatprep.subr.bf16.mxu0 0
  %1912 = vmatpush1.bf16.msra.mxu0 0
  %1913 = vmatprep.subr.bf16.mxu0 0
  %1914 = vmatpush1.bf16.msra.mxu0 0
  %1915 = vmatprep.subr.bf16.mxu0 0
  %1916 = vmatpush1.bf16.msra.mxu0 0
  %1917 = vmatprep.subr.bf16.mxu0 0
  %1918 = vmatpush1.bf16.msra.mxu0 0
  %1919 = vmatprep.subr.bf16.mxu0 0
  %1920 = vmatpush1.bf16.msra.mxu0 0
  %1921 = vmatprep.subr.bf16.mxu0 0
  %1922 = vmatpush1.bf16.msra.mxu0 0
  %1923 = vmatprep.mubr.bf16.mxu0 0
  %1924 = vmatmul.mubr.bf16.gmra.mrb[0].mxu0 %v1780
  %v1925 = vpop.f32.mrb[0].mxu0
  %v1926 = vadd.f32 0.0, %v1925
  %v1927 = vpop.f32.mrb[0].mxu0
  %v1928 = vadd.f32 0.0, %v1927
  %v1929 = vpop.f32.mrb[0].mxu0
  %v1930 = vadd.f32 0.0, %v1929
  %v1931 = vpop.f32.mrb[0].mxu0
  %v1932 = vadd.f32 0.0, %v1931
  %1933 = vmatprep.mubr.bf16.mxu0 0
  %1934 = vmatmul.mubr.bf16.gmra.mrb[0].mxu0 %v1783
  %v1935 = vpop.f32.mrb[0].mxu0
  %v1936 = vadd.f32 0.0, %v1935
  %v1937 = vpop.f32.mrb[0].mxu0
  %v1938 = vadd.f32 0.0, %v1937
  %v1939 = vpop.f32.mrb[0].mxu0
  %v1940 = vadd.f32 0.0, %v1939
  %v1941 = vpop.f32.mrb[0].mxu0
  %v1942 = vadd.f32 0.0, %v1941
  %1943 = vdwg.mxu0
  %1944 = vmatprep.subr.bf16.mxu0 %v1749
  %1945 = vmatpush1.bf16.msra.mxu0 %v1748
  %1946 = vmatprep.subr.bf16.mxu0 %v1758
  %1947 = vmatpush1.bf16.msra.mxu0 %v1757
  %1948 = vmatprep.subr.bf16.mxu0 0
  %1949 = vmatpush1.bf16.msra.mxu0 0
  %1950 = vmatprep.subr.bf16.mxu0 0
  %1951 = vmatpush1.bf16.msra.mxu0 0
  %1952 = vmatprep.subr.bf16.mxu0 0
  %1953 = vmatpush1.bf16.msra.mxu0 0
  %1954 = vmatprep.subr.bf16.mxu0 0
  %1955 = vmatpush1.bf16.msra.mxu0 0
  %1956 = vmatprep.subr.bf16.mxu0 0
  %1957 = vmatpush1.bf16.msra.mxu0 0
  %1958 = vmatprep.subr.bf16.mxu0 0
  %1959 = vmatpush1.bf16.msra.mxu0 0
  %1960 = vmatprep.subr.bf16.mxu0 0
  %1961 = vmatpush1.bf16.msra.mxu0 0
  %1962 = vmatprep.subr.bf16.mxu0 0
  %1963 = vmatpush1.bf16.msra.mxu0 0
  %1964 = vmatprep.subr.bf16.mxu0 0
  %1965 = vmatpush1.bf16.msra.mxu0 0
  %1966 = vmatprep.subr.bf16.mxu0 0
  %1967 = vmatpush1.bf16.msra.mxu0 0
  %1968 = vmatprep.subr.bf16.mxu0 0
  %1969 = vmatpush1.bf16.msra.mxu0 0
  %1970 = vmatprep.subr.bf16.mxu0 0
  %1971 = vmatpush1.bf16.msra.mxu0 0
  %1972 = vmatprep.subr.bf16.mxu0 0
  %1973 = vmatpush1.bf16.msra.mxu0 0
  %1974 = vmatprep.subr.bf16.mxu0 0
  %1975 = vmatpush1.bf16.msra.mxu0 0
  %1976 = vmatprep.mubr.bf16.mxu0 0
  %1977 = vmatmul.mubr.bf16.gmra.mrb[0].mxu0 %v1780
  %v1978 = vpop.f32.mrb[0].mxu0
  %v1979 = vadd.f32 0.0, %v1978
  %v1980 = vpop.f32.mrb[0].mxu0
  %v1981 = vadd.f32 0.0, %v1980
  %v1982 = vpop.f32.mrb[0].mxu0
  %v1983 = vadd.f32 0.0, %v1982
  %v1984 = vpop.f32.mrb[0].mxu0
  %v1985 = vadd.f32 0.0, %v1984
  %1986 = vmatprep.mubr.bf16.mxu0 0
  %1987 = vmatmul.mubr.bf16.gmra.mrb[0].mxu0 %v1783
  %v1988 = vpop.f32.mrb[0].mxu0
  %v1989 = vadd.f32 0.0, %v1988
  %v1990 = vpop.f32.mrb[0].mxu0
  %v1991 = vadd.f32 0.0, %v1990
  %v1992 = vpop.f32.mrb[0].mxu0
  %v1993 = vadd.f32 0.0, %v1992
  %v1994 = vpop.f32.mrb[0].mxu0
  %v1995 = vadd.f32 0.0, %v1994
  %1996 = vdwg.mxu0
  %1997 = vmatprep.subr.bf16.mxu0 0
  %1998 = vmatpush1.bf16.msra.mxu0 %v1750
  %1999 = vmatprep.subr.bf16.mxu0 0
  %2000 = vmatpush1.bf16.msra.mxu0 %v1759
  %2001 = vmatprep.subr.bf16.mxu0 0
  %2002 = vmatpush1.bf16.msra.mxu0 0
  %2003 = vmatprep.subr.bf16.mxu0 0
  %2004 = vmatpush1.bf16.msra.mxu0 0
  %2005 = vmatprep.subr.bf16.mxu0 0
  %2006 = vmatpush1.bf16.msra.mxu0 0
  %2007 = vmatprep.subr.bf16.mxu0 0
  %2008 = vmatpush1.bf16.msra.mxu0 0
  %2009 = vmatprep.subr.bf16.mxu0 0
  %2010 = vmatpush1.bf16.msra.mxu0 0
  %2011 = vmatprep.subr.bf16.mxu0 0
  %2012 = vmatpush1.bf16.msra.mxu0 0
  %2013 = vmatprep.subr.bf16.mxu0 0
  %2014 = vmatpush1.bf16.msra.mxu0 0
  %2015 = vmatprep.subr.bf16.mxu0 0
  %2016 = vmatpush1.bf16.msra.mxu0 0
  %2017 = vmatprep.subr.bf16.mxu0 0
  %2018 = vmatpush1.bf16.msra.mxu0 0
  %2019 = vmatprep.subr.bf16.mxu0 0
  %2020 = vmatpush1.bf16.msra.mxu0 0
  %2021 = vmatprep.subr.bf16.mxu0 0
  %2022 = vmatpush1.bf16.msra.mxu0 0
  %2023 = vmatprep.subr.bf16.mxu0 0
  %2024 = vmatpush1.bf16.msra.mxu0 0
  %2025 = vmatprep.subr.bf16.mxu0 0
  %2026 = vmatpush1.bf16.msra.mxu0 0
  %2027 = vmatprep.subr.bf16.mxu0 0
  %2028 = vmatpush1.bf16.msra.mxu0 0
  %2029 = vmatprep.mubr.bf16.mxu0 0
  %2030 = vmatmul.mubr.bf16.gmra.mrb[0].mxu0 %v1780
  %v2031 = vpop.f32.mrb[0].mxu0
  %v2032 = vadd.f32 0.0, %v2031
  %v2033 = vpop.f32.mrb[0].mxu0
  %v2034 = vpop.f32.mrb[0].mxu0
  %v2035 = vadd.f32 0.0, %v2034
  %v2036 = vpop.f32.mrb[0].mxu0
  %2037 = vmatprep.mubr.bf16.mxu0 0
  %2038 = vmatmul.mubr.bf16.gmra.mrb[0].mxu0 %v1783
  %v2039 = vpop.f32.mrb[0].mxu0
  %v2040 = vadd.f32 0.0, %v2039
  %v2041 = vpop.f32.mrb[0].mxu0
  %v2042 = vpop.f32.mrb[0].mxu0
  %v2043 = vadd.f32 0.0, %v2042
  %v2044 = vpop.f32.mrb[0].mxu0
  %2045 = vdwg.mxu0
  %v2046 = vpack.c.bf16 %v1824, %v1820
  %v2047 = vpack.c.bf16 %v1826, %v1822
  %v2048 = vpack.c.bf16 %v1877, %v1873
  %v2049 = vpack.c.bf16 %v1879, %v1875
  %v2050 = vpack.c.bf16 %v1930, %v1926
  %v2051 = vpack.c.bf16 %v1932, %v1928
  %v2052 = vpack.c.bf16 %v1983, %v1979
  %v2053 = vpack.c.bf16 %v1985, %v1981
  %v2054 = vpack.c.bf16 %v2035, %v2032
  %v2055 = vpack.c.bf16 %v1834, %v1830
  %v2056 = vpack.c.bf16 %v1836, %v1832
  %v2057 = vpack.c.bf16 %v1887, %v1883
  %v2058 = vpack.c.bf16 %v1889, %v1885
  %v2059 = vpack.c.bf16 %v1940, %v1936
  %v2060 = vpack.c.bf16 %v1942, %v1938
  %v2061 = vpack.c.bf16 %v1993, %v1989
  %v2062 = vpack.c.bf16 %v1995, %v1991
  %v2063 = vpack.c.bf16 %v2043, %v2040
  %v2064 = vld [vmem:[%s6] sm:$0xf]
  %s2065 = scalar_lea.vmem %s6, 4
  %v2066 = vld [vmem:[%s2065] sm:$0xf]
  %v2068 = vsel %vm1778, %v2066, 0
  %2070 = vmatprep.subr.bf16.mxu0 0
  %2071 = vmatpush1.bf16.msra.mxu0 %v2047
  %2072 = vmatprep.subr.bf16.mxu0 0
  %2073 = vmatpush1.bf16.msra.mxu0 %v2056
  %2074 = vmatprep.subr.bf16.mxu0 0
  %2075 = vmatpush1.bf16.msra.mxu0 0
  %2076 = vmatprep.subr.bf16.mxu0 0
  %2077 = vmatpush1.bf16.msra.mxu0 0
  %2078 = vmatprep.subr.bf16.mxu0 0
  %2079 = vmatpush1.bf16.msra.mxu0 0
  %2080 = vmatprep.subr.bf16.mxu0 0
  %2081 = vmatpush1.bf16.msra.mxu0 0
  %2082 = vmatprep.subr.bf16.mxu0 0
  %2083 = vmatpush1.bf16.msra.mxu0 0
  %2084 = vmatprep.subr.bf16.mxu0 0
  %2085 = vmatpush1.bf16.msra.mxu0 0
  %2086 = vmatprep.subr.bf16.mxu0 0
  %2087 = vmatpush1.bf16.msra.mxu0 0
  %2088 = vmatprep.subr.bf16.mxu0 0
  %2089 = vmatpush1.bf16.msra.mxu0 0
  %2090 = vmatprep.subr.bf16.mxu0 0
  %2091 = vmatpush1.bf16.msra.mxu0 0
  %2092 = vmatprep.subr.bf16.mxu0 0
  %2093 = vmatpush1.bf16.msra.mxu0 0
  %2094 = vmatprep.subr.bf16.mxu0 0
  %2095 = vmatpush1.bf16.msra.mxu0 0
  %2096 = vmatprep.subr.bf16.mxu0 0
  %2097 = vmatpush1.bf16.msra.mxu0 0
  %2098 = vmatprep.subr.bf16.mxu0 0
  %2099 = vmatpush1.bf16.msra.mxu0 0
  %2100 = vmatprep.subr.bf16.mxu0 0
  %2101 = vmatpush1.bf16.msra.mxu0 0
  %2102 = vmatprep.mubr.bf16.mxu0 0
  %2103 = vmatmul.mubr.bf16.gmra.mrb[0].mxu0 %v2068
  %v2104 = vpop.f32.mrb[0].mxu0
  %v2105 = vadd.f32 0.0, %v2104
  %v2106 = vpop.f32.mrb[0].mxu0
  %v2107 = vpop.f32.mrb[0].mxu0
  %v2108 = vpop.f32.mrb[0].mxu0
  %2109 = vdwg.mxu0
  %v2111 = vsel %vm1778, %v2064, 0
  %2113 = vmatprep.subr.bf16.mxu0 0
  %2114 = vmatpush1.bf16.msra.mxu0 %v2046
  %2115 = vmatprep.subr.bf16.mxu0 0
  %2116 = vmatpush1.bf16.msra.mxu0 %v2055
  %2117 = vmatprep.subr.bf16.mxu0 0
  %2118 = vmatpush1.bf16.msra.mxu0 0
  %2119 = vmatprep.subr.bf16.mxu0 0
  %2120 = vmatpush1.bf16.msra.mxu0 0
  %2121 = vmatprep.subr.bf16.mxu0 0
  %2122 = vmatpush1.bf16.msra.mxu0 0
  %2123 = vmatprep.subr.bf16.mxu0 0
  %2124 = vmatpush1.bf16.msra.mxu0 0
  %2125 = vmatprep.subr.bf16.mxu0 0
  %2126 = vmatpush1.bf16.msra.mxu0 0
  %2127 = vmatprep.subr.bf16.mxu0 0
  %2128 = vmatpush1.bf16.msra.mxu0 0
  %2129 = vmatprep.subr.bf16.mxu0 0
  %2130 = vmatpush1.bf16.msra.mxu0 0
  %2131 = vmatprep.subr.bf16.mxu0 0
  %2132 = vmatpush1.bf16.msra.mxu0 0
  %2133 = vmatprep.subr.bf16.mxu0 0
  %2134 = vmatpush1.bf16.msra.mxu0 0
  %2135 = vmatprep.subr.bf16.mxu0 0
  %2136 = vmatpush1.bf16.msra.mxu0 0
  %2137 = vmatprep.subr.bf16.mxu0 0
  %2138 = vmatpush1.bf16.msra.mxu0 0
  %2139 = vmatprep.subr.bf16.mxu0 0
  %2140 = vmatpush1.bf16.msra.mxu0 0
  %2141 = vmatprep.subr.bf16.mxu0 0
  %2142 = vmatpush1.bf16.msra.mxu0 0
  %2143 = vmatprep.subr.bf16.mxu0 0
  %2144 = vmatpush1.bf16.msra.mxu0 0
  %2145 = vmatprep.mubr.bf16.mxu0 0
  %2146 = vmatmul.mubr.bf16.gmra.mrb[0].mxu0 %v2111
  %v2147 = vpop.f32.mrb[0].mxu0
  %v2148 = vadd.f32 %v2105, %v2147
  %v2149 = vpop.f32.mrb[0].mxu0
  %v2150 = vpop.f32.mrb[0].mxu0
  %v2151 = vpop.f32.mrb[0].mxu0
  %2152 = vdwg.mxu0
  %s2153 = scalar_lea.vmem %s6, 8
  %v2154 = vld [vmem:[%s2153] sm:$0xf]
  %v2156 = vsel %vm1778, %v2154, 0
  %2158 = vmatprep.subr.bf16.mxu0 0
  %2159 = vmatpush1.bf16.msra.mxu0 %v2048
  %2160 = vmatprep.subr.bf16.mxu0 0
  %2161 = vmatpush1.bf16.msra.mxu0 %v2057
  %2162 = vmatprep.subr.bf16.mxu0 0
  %2163 = vmatpush1.bf16.msra.mxu0 0
  %2164 = vmatprep.subr.bf16.mxu0 0
  %2165 = vmatpush1.bf16.msra.mxu0 0
  %2166 = vmatprep.subr.bf16.mxu0 0
  %2167 = vmatpush1.bf16.msra.mxu0 0
  %2168 = vmatprep.subr.bf16.mxu0 0
  %2169 = vmatpush1.bf16.msra.mxu0 0
  %2170 = vmatprep.subr.bf16.mxu0 0
  %2171 = vmatpush1.bf16.msra.mxu0 0
  %2172 = vmatprep.subr.bf16.mxu0 0
  %2173 = vmatpush1.bf16.msra.mxu0 0
  %2174 = vmatprep.subr.bf16.mxu0 0
  %2175 = vmatpush1.bf16.msra.mxu0 0
  %2176 = vmatprep.subr.bf16.mxu0 0
  %2177 = vmatpush1.bf16.msra.mxu0 0
  %2178 = vmatprep.subr.bf16.mxu0 0
  %2179 = vmatpush1.bf16.msra.mxu0 0
  %2180 = vmatprep.subr.bf16.mxu0 0
  %2181 = vmatpush1.bf16.msra.mxu0 0
  %2182 = vmatprep.subr.bf16.mxu0 0
  %2183 = vmatpush1.bf16.msra.mxu0 0
  %2184 = vmatprep.subr.bf16.mxu0 0
  %2185 = vmatpush1.bf16.msra.mxu0 0
  %2186 = vmatprep.subr.bf16.mxu0 0
  %2187 = vmatpush1.bf16.msra.mxu0 0
  %2188 = vmatprep.subr.bf16.mxu0 0
  %2189 = vmatpush1.bf16.msra.mxu0 0
  %2190 = vmatprep.mubr.bf16.mxu0 0
  %2191 = vmatmul.mubr.bf16.gmra.mrb[0].mxu0 %v2156
  %v2192 = vpop.f32.mrb[0].mxu0
  %v2193 = vadd.f32 0.0, %v2192
  %v2194 = vpop.f32.mrb[0].mxu0
  %v2195 = vpop.f32.mrb[0].mxu0
  %v2196 = vpop.f32.mrb[0].mxu0
  %2197 = vdwg.mxu0
  %v2198 = vadd.f32 %v2148, %v2193
  %s2199 = scalar_lea.vmem %s6, 12
  %v2200 = vld [vmem:[%s2199] sm:$0xf]
  %v2202 = vsel %vm1778, %v2200, 0
  %2204 = vmatprep.subr.bf16.mxu0 0
  %2205 = vmatpush1.bf16.msra.mxu0 %v2049
  %2206 = vmatprep.subr.bf16.mxu0 0
  %2207 = vmatpush1.bf16.msra.mxu0 %v2058
  %2208 = vmatprep.subr.bf16.mxu0 0
  %2209 = vmatpush1.bf16.msra.mxu0 0
  %2210 = vmatprep.subr.bf16.mxu0 0
  %2211 = vmatpush1.bf16.msra.mxu0 0
  %2212 = vmatprep.subr.bf16.mxu0 0
  %2213 = vmatpush1.bf16.msra.mxu0 0
  %2214 = vmatprep.subr.bf16.mxu0 0
  %2215 = vmatpush1.bf16.msra.mxu0 0
  %2216 = vmatprep.subr.bf16.mxu0 0
  %2217 = vmatpush1.bf16.msra.mxu0 0
  %2218 = vmatprep.subr.bf16.mxu0 0
  %2219 = vmatpush1.bf16.msra.mxu0 0
  %2220 = vmatprep.subr.bf16.mxu0 0
  %2221 = vmatpush1.bf16.msra.mxu0 0
  %2222 = vmatprep.subr.bf16.mxu0 0
  %2223 = vmatpush1.bf16.msra.mxu0 0
  %2224 = vmatprep.subr.bf16.mxu0 0
  %2225 = vmatpush1.bf16.msra.mxu0 0
  %2226 = vmatprep.subr.bf16.mxu0 0
  %2227 = vmatpush1.bf16.msra.mxu0 0
  %2228 = vmatprep.subr.bf16.mxu0 0
  %2229 = vmatpush1.bf16.msra.mxu0 0
  %2230 = vmatprep.subr.bf16.mxu0 0
  %2231 = vmatpush1.bf16.msra.mxu0 0
  %2232 = vmatprep.subr.bf16.mxu0 0
  %2233 = vmatpush1.bf16.msra.mxu0 0
  %2234 = vmatprep.subr.bf16.mxu0 0
  %2235 = vmatpush1.bf16.msra.mxu0 0
  %2236 = vmatprep.mubr.bf16.mxu0 0
  %2237 = vmatmul.mubr.bf16.gmra.mrb[0].mxu0 %v2202
  %v2238 = vpop.f32.mrb[0].mxu0
  %v2239 = vadd.f32 0.0, %v2238
  %v2240 = vpop.f32.mrb[0].mxu0
  %v2241 = vpop.f32.mrb[0].mxu0
  %v2242 = vpop.f32.mrb[0].mxu0
  %2243 = vdwg.mxu0
  %v2244 = vadd.f32 %v2198, %v2239
  %s2245 = scalar_lea.vmem %s6, 16
  %v2246 = vld [vmem:[%s2245] sm:$0xf]
  %v2248 = vsel %vm1778, %v2246, 0
  %2250 = vmatprep.subr.bf16.mxu0 0
  %2251 = vmatpush1.bf16.msra.mxu0 %v2050
  %2252 = vmatprep.subr.bf16.mxu0 0
  %2253 = vmatpush1.bf16.msra.mxu0 %v2059
  %2254 = vmatprep.subr.bf16.mxu0 0
  %2255 = vmatpush1.bf16.msra.mxu0 0
  %2256 = vmatprep.subr.bf16.mxu0 0
  %2257 = vmatpush1.bf16.msra.mxu0 0
  %2258 = vmatprep.subr.bf16.mxu0 0
  %2259 = vmatpush1.bf16.msra.mxu0 0
  %2260 = vmatprep.subr.bf16.mxu0 0
  %2261 = vmatpush1.bf16.msra.mxu0 0
  %2262 = vmatprep.subr.bf16.mxu0 0
  %2263 = vmatpush1.bf16.msra.mxu0 0
  %2264 = vmatprep.subr.bf16.mxu0 0
  %2265 = vmatpush1.bf16.msra.mxu0 0
  %2266 = vmatprep.subr.bf16.mxu0 0
  %2267 = vmatpush1.bf16.msra.mxu0 0
  %2268 = vmatprep.subr.bf16.mxu0 0
  %2269 = vmatpush1.bf16.msra.mxu0 0
  %2270 = vmatprep.subr.bf16.mxu0 0
  %2271 = vmatpush1.bf16.msra.mxu0 0
  %2272 = vmatprep.subr.bf16.mxu0 0
  %2273 = vmatpush1.bf16.msra.mxu0 0
  %2274 = vmatprep.subr.bf16.mxu0 0
  %2275 = vmatpush1.bf16.msra.mxu0 0
  %2276 = vmatprep.subr.bf16.mxu0 0
  %2277 = vmatpush1.bf16.msra.mxu0 0
  %2278 = vmatprep.subr.bf16.mxu0 0
  %2279 = vmatpush1.bf16.msra.mxu0 0
  %2280 = vmatprep.subr.bf16.mxu0 0
  %2281 = vmatpush1.bf16.msra.mxu0 0
  %2282 = vmatprep.mubr.bf16.mxu0 0
  %2283 = vmatmul.mubr.bf16.gmra.mrb[0].mxu0 %v2248
  %v2284 = vpop.f32.mrb[0].mxu0
  %v2285 = vadd.f32 0.0, %v2284
  %v2286 = vpop.f32.mrb[0].mxu0
  %v2287 = vpop.f32.mrb[0].mxu0
  %v2288 = vpop.f32.mrb[0].mxu0
  %2289 = vdwg.mxu0
  %v2290 = vadd.f32 %v2244, %v2285
  %s2291 = scalar_lea.vmem %s6, 20
  %v2292 = vld [vmem:[%s2291] sm:$0xf]
  %v2294 = vsel %vm1778, %v2292, 0
  %2296 = vmatprep.subr.bf16.mxu0 0
  %2297 = vmatpush1.bf16.msra.mxu0 %v2051
  %2298 = vmatprep.subr.bf16.mxu0 0
  %2299 = vmatpush1.bf16.msra.mxu0 %v2060
  %2300 = vmatprep.subr.bf16.mxu0 0
  %2301 = vmatpush1.bf16.msra.mxu0 0
  %2302 = vmatprep.subr.bf16.mxu0 0
  %2303 = vmatpush1.bf16.msra.mxu0 0
  %2304 = vmatprep.subr.bf16.mxu0 0
  %2305 = vmatpush1.bf16.msra.mxu0 0
  %2306 = vmatprep.subr.bf16.mxu0 0
  %2307 = vmatpush1.bf16.msra.mxu0 0
  %2308 = vmatprep.subr.bf16.mxu0 0
  %2309 = vmatpush1.bf16.msra.mxu0 0
  %2310 = vmatprep.subr.bf16.mxu0 0
  %2311 = vmatpush1.bf16.msra.mxu0 0
  %2312 = vmatprep.subr.bf16.mxu0 0
  %2313 = vmatpush1.bf16.msra.mxu0 0
  %2314 = vmatprep.subr.bf16.mxu0 0
  %2315 = vmatpush1.bf16.msra.mxu0 0
  %2316 = vmatprep.subr.bf16.mxu0 0
  %2317 = vmatpush1.bf16.msra.mxu0 0
  %2318 = vmatprep.subr.bf16.mxu0 0
  %2319 = vmatpush1.bf16.msra.mxu0 0
  %2320 = vmatprep.subr.bf16.mxu0 0
  %2321 = vmatpush1.bf16.msra.mxu0 0
  %2322 = vmatprep.subr.bf16.mxu0 0
  %2323 = vmatpush1.bf16.msra.mxu0 0
  %2324 = vmatprep.subr.bf16.mxu0 0
  %2325 = vmatpush1.bf16.msra.mxu0 0
  %2326 = vmatprep.subr.bf16.mxu0 0
  %2327 = vmatpush1.bf16.msra.mxu0 0
  %2328 = vmatprep.mubr.bf16.mxu0 0
  %2329 = vmatmul.mubr.bf16.gmra.mrb[0].mxu0 %v2294
  %v2330 = vpop.f32.mrb[0].mxu0
  %v2331 = vadd.f32 0.0, %v2330
  %v2332 = vpop.f32.mrb[0].mxu0
  %v2333 = vpop.f32.mrb[0].mxu0
  %v2334 = vpop.f32.mrb[0].mxu0
  %2335 = vdwg.mxu0
  %v2336 = vadd.f32 %v2290, %v2331
  %s2337 = scalar_lea.vmem %s6, 24
  %v2338 = vld [vmem:[%s2337] sm:$0xf]
  %v2340 = vsel %vm1778, %v2338, 0
  %2342 = vmatprep.subr.bf16.mxu0 0
  %2343 = vmatpush1.bf16.msra.mxu0 %v2052
  %2344 = vmatprep.subr.bf16.mxu0 0
  %2345 = vmatpush1.bf16.msra.mxu0 %v2061
  %2346 = vmatprep.subr.bf16.mxu0 0
  %2347 = vmatpush1.bf16.msra.mxu0 0
  %2348 = vmatprep.subr.bf16.mxu0 0
  %2349 = vmatpush1.bf16.msra.mxu0 0
  %2350 = vmatprep.subr.bf16.mxu0 0
  %2351 = vmatpush1.bf16.msra.mxu0 0
  %2352 = vmatprep.subr.bf16.mxu0 0
  %2353 = vmatpush1.bf16.msra.mxu0 0
  %2354 = vmatprep.subr.bf16.mxu0 0
  %2355 = vmatpush1.bf16.msra.mxu0 0
  %2356 = vmatprep.subr.bf16.mxu0 0
  %2357 = vmatpush1.bf16.msra.mxu0 0
  %2358 = vmatprep.subr.bf16.mxu0 0
  %2359 = vmatpush1.bf16.msra.mxu0 0
  %2360 = vmatprep.subr.bf16.mxu0 0
  %2361 = vmatpush1.bf16.msra.mxu0 0
  %2362 = vmatprep.subr.bf16.mxu0 0
  %2363 = vmatpush1.bf16.msra.mxu0 0
  %2364 = vmatprep.subr.bf16.mxu0 0
  %2365 = vmatpush1.bf16.msra.mxu0 0
  %2366 = vmatprep.subr.bf16.mxu0 0
  %2367 = vmatpush1.bf16.msra.mxu0 0
  %2368 = vmatprep.subr.bf16.mxu0 0
  %2369 = vmatpush1.bf16.msra.mxu0 0
  %2370 = vmatprep.subr.bf16.mxu0 0
  %2371 = vmatpush1.bf16.msra.mxu0 0
  %2372 = vmatprep.subr.bf16.mxu0 0
  %2373 = vmatpush1.bf16.msra.mxu0 0
  %2374 = vmatprep.mubr.bf16.mxu0 0
  %2375 = vmatmul.mubr.bf16.gmra.mrb[0].mxu0 %v2340
  %v2376 = vpop.f32.mrb[0].mxu0
  %v2377 = vadd.f32 0.0, %v2376
  %v2378 = vpop.f32.mrb[0].mxu0
  %v2379 = vpop.f32.mrb[0].mxu0
  %v2380 = vpop.f32.mrb[0].mxu0
  %2381 = vdwg.mxu0
  %v2382 = vadd.f32 %v2336, %v2377
  %s2383 = scalar_lea.vmem %s6, 28
  %v2384 = vld [vmem:[%s2383] sm:$0xf]
  %v2386 = vsel %vm1778, %v2384, 0
  %2388 = vmatprep.subr.bf16.mxu0 0
  %2389 = vmatpush1.bf16.msra.mxu0 %v2053
  %2390 = vmatprep.subr.bf16.mxu0 0
  %2391 = vmatpush1.bf16.msra.mxu0 %v2062
  %2392 = vmatprep.subr.bf16.mxu0 0
  %2393 = vmatpush1.bf16.msra.mxu0 0
  %2394 = vmatprep.subr.bf16.mxu0 0
  %2395 = vmatpush1.bf16.msra.mxu0 0
  %2396 = vmatprep.subr.bf16.mxu0 0
  %2397 = vmatpush1.bf16.msra.mxu0 0
  %2398 = vmatprep.subr.bf16.mxu0 0
  %2399 = vmatpush1.bf16.msra.mxu0 0
  %2400 = vmatprep.subr.bf16.mxu0 0
  %2401 = vmatpush1.bf16.msra.mxu0 0
  %2402 = vmatprep.subr.bf16.mxu0 0
  %2403 = vmatpush1.bf16.msra.mxu0 0
  %2404 = vmatprep.subr.bf16.mxu0 0
  %2405 = vmatpush1.bf16.msra.mxu0 0
  %2406 = vmatprep.subr.bf16.mxu0 0
  %2407 = vmatpush1.bf16.msra.mxu0 0
  %2408 = vmatprep.subr.bf16.mxu0 0
  %2409 = vmatpush1.bf16.msra.mxu0 0
  %2410 = vmatprep.subr.bf16.mxu0 0
  %2411 = vmatpush1.bf16.msra.mxu0 0
  %2412 = vmatprep.subr.bf16.mxu0 0
  %2413 = vmatpush1.bf16.msra.mxu0 0
  %2414 = vmatprep.subr.bf16.mxu0 0
  %2415 = vmatpush1.bf16.msra.mxu0 0
  %2416 = vmatprep.subr.bf16.mxu0 0
  %2417 = vmatpush1.bf16.msra.mxu0 0
  %2418 = vmatprep.subr.bf16.mxu0 0
  %2419 = vmatpush1.bf16.msra.mxu0 0
  %2420 = vmatprep.mubr.bf16.mxu0 0
  %2421 = vmatmul.mubr.bf16.gmra.mrb[0].mxu0 %v2386
  %v2422 = vpop.f32.mrb[0].mxu0
  %v2423 = vadd.f32 0.0, %v2422
  %v2424 = vpop.f32.mrb[0].mxu0
  %v2425 = vpop.f32.mrb[0].mxu0
  %v2426 = vpop.f32.mrb[0].mxu0
  %2427 = vdwg.mxu0
  %v2428 = vadd.f32 %v2382, %v2423
  %s2429 = scalar_lea.vmem %s6, 32
  %v2430 = vld [vmem:[%s2429] sm:$0xf]
  %v2432 = vsel %vm1778, %v2430, 0
  %2434 = vmatprep.subr.bf16.mxu0 0
  %2435 = vmatpush1.bf16.msra.mxu0 %v2054
  %2436 = vmatprep.subr.bf16.mxu0 0
  %2437 = vmatpush1.bf16.msra.mxu0 %v2063
  %2438 = vmatprep.subr.bf16.mxu0 0
  %2439 = vmatpush1.bf16.msra.mxu0 0
  %2440 = vmatprep.subr.bf16.mxu0 0
  %2441 = vmatpush1.bf16.msra.mxu0 0
  %2442 = vmatprep.subr.bf16.mxu0 0
  %2443 = vmatpush1.bf16.msra.mxu0 0
  %2444 = vmatprep.subr.bf16.mxu0 0
  %2445 = vmatpush1.bf16.msra.mxu0 0
  %2446 = vmatprep.subr.bf16.mxu0 0
  %2447 = vmatpush1.bf16.msra.mxu0 0
  %2448 = vmatprep.subr.bf16.mxu0 0
  %2449 = vmatpush1.bf16.msra.mxu0 0
  %2450 = vmatprep.subr.bf16.mxu0 0
  %2451 = vmatpush1.bf16.msra.mxu0 0
  %2452 = vmatprep.subr.bf16.mxu0 0
  %2453 = vmatpush1.bf16.msra.mxu0 0
  %2454 = vmatprep.subr.bf16.mxu0 0
  %2455 = vmatpush1.bf16.msra.mxu0 0
  %2456 = vmatprep.subr.bf16.mxu0 0
  %2457 = vmatpush1.bf16.msra.mxu0 0
  %2458 = vmatprep.subr.bf16.mxu0 0
  %2459 = vmatpush1.bf16.msra.mxu0 0
  %2460 = vmatprep.subr.bf16.mxu0 0
  %2461 = vmatpush1.bf16.msra.mxu0 0
  %2462 = vmatprep.subr.bf16.mxu0 0
  %2463 = vmatpush1.bf16.msra.mxu0 0
  %2464 = vmatprep.subr.bf16.mxu0 0
  %2465 = vmatpush1.bf16.msra.mxu0 0
  %2466 = vmatprep.mubr.bf16.mxu0 0
  %2467 = vmatmul.mubr.bf16.gmra.mrb[0].mxu0 %v2432
  %v2468 = vpop.f32.mrb[0].mxu0
  %v2469 = vadd.f32 0.0, %v2468
  %v2470 = vpop.f32.mrb[0].mxu0
  %v2471 = vpop.f32.mrb[0].mxu0
  %v2472 = vpop.f32.mrb[0].mxu0
  %2473 = vdwg.mxu0
  %v2474 = vadd.f32 %v2428, %v2469
  %v2475 = vld [vmem:[%s9 + $0x4] sm:$0x1]
  %v2476 = vlaneseq
  %v2477 = vshrl.u32 %v2476, 7
  %v2478 = vsub.s32 0, %v2477
  %v2479 = vrot.slane %v2475, %v2478
  %v2480 = vadd.f32 %v2474, %v2479
  %v2481 = vmul.f32 %v2480, 0.2
  %v2482 = vmax.f32 %v2480, %v2481
  %v2483 = vld [vmem:[%s9 + $0x5] sm:$0x1]
  %v2484 = vlaneseq
  %v2485 = vshrl.u32 %v2484, 7
  %v2486 = vsub.s32 0, %v2485
  %v2487 = vrot.slane %v2483, %v2486
  %v2488 = vmul.f32 %v2482, %v2487
  %v2489 = vld [vmem:[%s9 + $0x6] sm:$0x1]
  %v2490 = vlaneseq
  %v2491 = vshrl.u32 %v2490, 7
  %v2492 = vsub.s32 0, %v2491
  %v2493 = vrot.slane %v2489, %v2492
  %v2494 = vadd.f32 %v2488, %v2493
  %v2495 = vpack.c.bf16 %v2494, %v2494
  %v2496 = vld [vmem:[%s4] sm:$0xff]
  %v2497 = vld [vmem:[%s4 + $0x8] sm:$0xff]
  %v2498 = vld [vmem:[%s4 + $0x10] sm:$0xff]
  %v2499 = vld [vmem:[%s4 + $0x18] sm:$0xff]
  %v2500 = vld [vmem:[%s4 + $0x20] sm:$0xf]
  %v2501 = vld [vmem:[%s4 + $0x24] sm:$0xff]
  %v2502 = vld [vmem:[%s4 + $0x2c] sm:$0xff]
  %v2503 = vld [vmem:[%s4 + $0x34] sm:$0xff]
  %v2504 = vld [vmem:[%s4 + $0x3c] sm:$0xff]
  %v2505 = vld [vmem:[%s4 + $0x44] sm:$0xf]
  %v2506 = vld [vmem:[%s4 + $0x48] sm:$0xff]
  %v2507 = vld [vmem:[%s4 + $0x50] sm:$0xff]
  %v2508 = vld [vmem:[%s4 + $0x58] sm:$0xff]
  %v2509 = vld [vmem:[%s4 + $0x60] sm:$0xff]
  %v2510 = vld [vmem:[%s4 + $0x68] sm:$0xf]
  %v2511 = vld [vmem:[%s4 + $0x6c] sm:$0xff]
  %v2512 = vld [vmem:[%s4 + $0x74] sm:$0xff]
  %v2513 = vld [vmem:[%s4 + $0x7c] sm:$0xff]
  %v2514 = vld [vmem:[%s4 + $0x84] sm:$0xff]
  %v2515 = vld [vmem:[%s4 + $0x8c] sm:$0xf]
  %v2516 = vld [vmem:[%s4 + $0x90] sm:$0xff]
  %v2517 = vld [vmem:[%s4 + $0x98] sm:$0xff]
  %v2518 = vld [vmem:[%s4 + $0xa0] sm:$0xff]
  %v2519 = vld [vmem:[%s4 + $0xa8] sm:$0xff]
  %v2520 = vld [vmem:[%s4 + $0xb0] sm:$0xf]
  %v2521 = vld [vmem:[%s4 + $0xb4] sm:$0xff]
  %v2522 = vld [vmem:[%s4 + $0xbc] sm:$0xff]
  %v2523 = vld [vmem:[%s4 + $0xc4] sm:$0xff]
  %v2524 = vld [vmem:[%s4 + $0xcc] sm:$0xff]
  %v2525 = vld [vmem:[%s4 + $0xd4] sm:$0xf]
  %v2526 = vld [vmem:[%s4 + $0xd8] sm:$0xff]
  %v2527 = vld [vmem:[%s4 + $0xe0] sm:$0xff]
  %v2528 = vld [vmem:[%s4 + $0xe8] sm:$0xff]
  %v2529 = vld [vmem:[%s4 + $0xf0] sm:$0xff]
  %v2530 = vld [vmem:[%s4 + $0xf8] sm:$0xf]
  %v2531 = vld [vmem:[%s4 + $0xfc] sm:$0xff]
  %v2532 = vld [vmem:[%s4 + $0x104] sm:$0xff]
  %v2533 = vld [vmem:[%s4 + $0x10c] sm:$0xff]
  %v2534 = vld [vmem:[%s4 + $0x114] sm:$0xff]
  %v2535 = vld [vmem:[%s4 + $0x11c] sm:$0xf]
  %v2576 = vunpack.c.l.b16 %v2496
  %v2577 = vunpack.c.h.b16 %v2496
  %v2578 = vunpack.c.l.b16 %v2497
  %v2579 = vunpack.c.h.b16 %v2497
  %v2580 = vunpack.c.l.b16 %v2498
  %v2581 = vunpack.c.h.b16 %v2498
  %v2582 = vunpack.c.l.b16 %v2499
  %v2583 = vunpack.c.h.b16 %v2499
  %v2584 = vunpack.c.l.b16 %v2500
  %v2585 = vunpack.c.l.b16 %v2501
  %v2586 = vunpack.c.h.b16 %v2501
  %v2587 = vunpack.c.l.b16 %v2502
  %v2588 = vunpack.c.h.b16 %v2502
  %v2589 = vunpack.c.l.b16 %v2503
  %v2590 = vunpack.c.h.b16 %v2503
  %v2591 = vunpack.c.l.b16 %v2504
  %v2592 = vunpack.c.h.b16 %v2504
  %v2593 = vunpack.c.l.b16 %v2505
  %v2594 = vunpack.c.l.b16 %v2506
  %v2595 = vunpack.c.h.b16 %v2506
  %v2596 = vunpack.c.l.b16 %v2507
  %v2597 = vunpack.c.h.b16 %v2507
  %v2598 = vunpack.c.l.b16 %v2508
  %v2599 = vunpack.c.h.b16 %v2508
  %v2600 = vunpack.c.l.b16 %v2509
  %v2601 = vunpack.c.h.b16 %v2509
  %v2602 = vunpack.c.l.b16 %v2510
  %v2603 = vunpack.c.l.b16 %v2511
  %v2604 = vunpack.c.h.b16 %v2511
  %v2605 = vunpack.c.l.b16 %v2512
  %v2606 = vunpack.c.h.b16 %v2512
  %v2607 = vunpack.c.l.b16 %v2513
  %v2608 = vunpack.c.h.b16 %v2513
  %v2609 = vunpack.c.l.b16 %v2514
  %v2610 = vunpack.c.h.b16 %v2514
  %v2611 = vunpack.c.l.b16 %v2515
  %v2612 = vunpack.c.l.b16 %v2516
  %v2613 = vunpack.c.h.b16 %v2516
  %v2614 = vunpack.c.l.b16 %v2517
  %v2615 = vunpack.c.h.b16 %v2517
  %v2616 = vunpack.c.l.b16 %v2518
  %v2617 = vunpack.c.h.b16 %v2518
  %v2618 = vunpack.c.l.b16 %v2519
  %v2619 = vunpack.c.h.b16 %v2519
  %v2620 = vunpack.c.l.b16 %v2520
  %v2621 = vunpack.c.l.b16 %v2521
  %v2622 = vunpack.c.h.b16 %v2521
  %v2623 = vunpack.c.l.b16 %v2522
  %v2624 = vunpack.c.h.b16 %v2522
  %v2625 = vunpack.c.l.b16 %v2523
  %v2626 = vunpack.c.h.b16 %v2523
  %v2627 = vunpack.c.l.b16 %v2524
  %v2628 = vunpack.c.h.b16 %v2524
  %v2629 = vunpack.c.l.b16 %v2525
  %v2630 = vunpack.c.l.b16 %v2526
  %v2631 = vunpack.c.h.b16 %v2526
  %v2632 = vunpack.c.l.b16 %v2527
  %v2633 = vunpack.c.h.b16 %v2527
  %v2634 = vunpack.c.l.b16 %v2528
  %v2635 = vunpack.c.h.b16 %v2528
  %v2636 = vunpack.c.l.b16 %v2529
  %v2637 = vunpack.c.h.b16 %v2529
  %v2638 = vunpack.c.l.b16 %v2530
  %v2639 = vunpack.c.l.b16 %v2531
  %v2640 = vunpack.c.h.b16 %v2531
  %v2641 = vunpack.c.l.b16 %v2532
  %v2642 = vunpack.c.h.b16 %v2532
  %v2643 = vunpack.c.l.b16 %v2533
  %v2644 = vunpack.c.h.b16 %v2533
  %v2645 = vunpack.c.l.b16 %v2534
  %v2646 = vunpack.c.h.b16 %v2534
  %v2647 = vunpack.c.l.b16 %v2535
  %v2648 = vpack.c.b16 %v2585, %v2576
  %v2649 = vpack.c.b16 %v2586, %v2577
  %v2650 = vpack.c.b16 %v2587, %v2578
  %v2651 = vpack.c.b16 %v2588, %v2579
  %v2652 = vpack.c.b16 %v2589, %v2580
  %v2653 = vpack.c.b16 %v2590, %v2581
  %v2654 = vpack.c.b16 %v2591, %v2582
  %v2655 = vpack.c.b16 %v2592, %v2583
  %v2656 = vpack.c.b16 %v2593, %v2584
  %v2657 = vpack.c.b16 %v2603, %v2594
  %v2658 = vpack.c.b16 %v2604, %v2595
  %v2659 = vpack.c.b16 %v2605, %v2596
  %v2660 = vpack.c.b16 %v2606, %v2597
  %v2661 = vpack.c.b16 %v2607, %v2598
  %v2662 = vpack.c.b16 %v2608, %v2599
  %v2663 = vpack.c.b16 %v2609, %v2600
  %v2664 = vpack.c.b16 %v2610, %v2601
  %v2665 = vpack.c.b16 %v2611, %v2602
  %v2666 = vpack.c.b16 %v2621, %v2612
  %v2667 = vpack.c.b16 %v2622, %v2613
  %v2668 = vpack.c.b16 %v2623, %v2614
  %v2669 = vpack.c.b16 %v2624, %v2615
  %v2670 = vpack.c.b16 %v2625, %v2616
  %v2671 = vpack.c.b16 %v2626, %v2617
  %v2672 = vpack.c.b16 %v2627, %v2618
  %v2673 = vpack.c.b16 %v2628, %v2619
  %v2674 = vpack.c.b16 %v2629, %v2620
  %v2675 = vpack.c.b16 %v2639, %v2630
  %v2676 = vpack.c.b16 %v2640, %v2631
  %v2677 = vpack.c.b16 %v2641, %v2632
  %v2678 = vpack.c.b16 %v2642, %v2633
  %v2679 = vpack.c.b16 %v2643, %v2634
  %v2680 = vpack.c.b16 %v2644, %v2635
  %v2681 = vpack.c.b16 %v2645, %v2636
  %v2682 = vpack.c.b16 %v2646, %v2637
  %v2683 = vpack.c.b16 %v2647, %v2638
  %vm2720 = vcmask 523264
  %v2722 = vsel %vm2720, %v2495, 0
  %2724 = vmatprep.subr.bf16.mxu0 %v2649
  %2725 = vmatpush1.bf16.msra.mxu0 %v2648
  %2726 = vmatprep.subr.bf16.mxu0 %v2658
  %2727 = vmatpush1.bf16.msra.mxu0 %v2657
  %2728 = vmatprep.subr.bf16.mxu0 %v2667
  %2729 = vmatpush1.bf16.msra.mxu0 %v2666
  %2730 = vmatprep.subr.bf16.mxu0 %v2676
  %2731 = vmatpush1.bf16.msra.mxu0 %v2675
  %2732 = vmatprep.subr.bf16.mxu0 0
  %2733 = vmatpush1.bf16.msra.mxu0 0
  %2734 = vmatprep.subr.bf16.mxu0 0
  %2735 = vmatpush1.bf16.msra.mxu0 0
  %2736 = vmatprep.subr.bf16.mxu0 0
  %2737 = vmatpush1.bf16.msra.mxu0 0
  %2738 = vmatprep.subr.bf16.mxu0 0
  %2739 = vmatpush1.bf16.msra.mxu0 0
  %2740 = vmatprep.subr.bf16.mxu0 0
  %2741 = vmatpush1.bf16.msra.mxu0 0
  %2742 = vmatprep.subr.bf16.mxu0 0
  %2743 = vmatpush1.bf16.msra.mxu0 0
  %2744 = vmatprep.subr.bf16.mxu0 0
  %2745 = vmatpush1.bf16.msra.mxu0 0
  %2746 = vmatprep.subr.bf16.mxu0 0
  %2747 = vmatpush1.bf16.msra.mxu0 0
  %2748 = vmatprep.subr.bf16.mxu0 0
  %2749 = vmatpush1.bf16.msra.mxu0 0
  %2750 = vmatprep.subr.bf16.mxu0 0
  %2751 = vmatpush1.bf16.msra.mxu0 0
  %2752 = vmatprep.subr.bf16.mxu0 0
  %2753 = vmatpush1.bf16.msra.mxu0 0
  %2754 = vmatprep.subr.bf16.mxu0 0
  %2755 = vmatpush1.bf16.msra.mxu0 0
  %2756 = vmatprep.mubr.bf16.mxu0 0
  %2757 = vmatmul.mubr.bf16.gmra.mrb[0].mxu0 %v2722
  %v2758 = vpop.f32.mrb[0].mxu0
  %v2759 = vadd.f32 0.0, %v2758
  %v2760 = vpop.f32.mrb[0].mxu0
  %v2761 = vadd.f32 0.0, %v2760
  %v2762 = vpop.f32.mrb[0].mxu0
  %v2763 = vpop.f32.mrb[0].mxu0
  %2764 = vdwg.mxu0
  %2765 = vmatprep.subr.bf16.mxu0 %v2651
  %2766 = vmatpush1.bf16.msra.mxu0 %v2650
  %2767 = vmatprep.subr.bf16.mxu0 %v2660
  %2768 = vmatpush1.bf16.msra.mxu0 %v2659
  %2769 = vmatprep.subr.bf16.mxu0 %v2669
  %2770 = vmatpush1.bf16.msra.mxu0 %v2668
  %2771 = vmatprep.subr.bf16.mxu0 %v2678
  %2772 = vmatpush1.bf16.msra.mxu0 %v2677
  %2773 = vmatprep.subr.bf16.mxu0 0
  %2774 = vmatpush1.bf16.msra.mxu0 0
  %2775 = vmatprep.subr.bf16.mxu0 0
  %2776 = vmatpush1.bf16.msra.mxu0 0
  %2777 = vmatprep.subr.bf16.mxu0 0
  %2778 = vmatpush1.bf16.msra.mxu0 0
  %2779 = vmatprep.subr.bf16.mxu0 0
  %2780 = vmatpush1.bf16.msra.mxu0 0
  %2781 = vmatprep.subr.bf16.mxu0 0
  %2782 = vmatpush1.bf16.msra.mxu0 0
  %2783 = vmatprep.subr.bf16.mxu0 0
  %2784 = vmatpush1.bf16.msra.mxu0 0
  %2785 = vmatprep.subr.bf16.mxu0 0
  %2786 = vmatpush1.bf16.msra.mxu0 0
  %2787 = vmatprep.subr.bf16.mxu0 0
  %2788 = vmatpush1.bf16.msra.mxu0 0
  %2789 = vmatprep.subr.bf16.mxu0 0
  %2790 = vmatpush1.bf16.msra.mxu0 0
  %2791 = vmatprep.subr.bf16.mxu0 0
  %2792 = vmatpush1.bf16.msra.mxu0 0
  %2793 = vmatprep.subr.bf16.mxu0 0
  %2794 = vmatpush1.bf16.msra.mxu0 0
  %2795 = vmatprep.subr.bf16.mxu0 0
  %2796 = vmatpush1.bf16.msra.mxu0 0
  %2797 = vmatprep.mubr.bf16.mxu0 0
  %2798 = vmatmul.mubr.bf16.gmra.mrb[0].mxu0 %v2722
  %v2799 = vpop.f32.mrb[0].mxu0
  %v2800 = vadd.f32 0.0, %v2799
  %v2801 = vpop.f32.mrb[0].mxu0
  %v2802 = vadd.f32 0.0, %v2801
  %v2803 = vpop.f32.mrb[0].mxu0
  %v2804 = vpop.f32.mrb[0].mxu0
  %2805 = vdwg.mxu0
  %2806 = vmatprep.subr.bf16.mxu0 %v2653
  %2807 = vmatpush1.bf16.msra.mxu0 %v2652
  %2808 = vmatprep.subr.bf16.mxu0 %v2662
  %2809 = vmatpush1.bf16.msra.mxu0 %v2661
  %2810 = vmatprep.subr.bf16.mxu0 %v2671
  %2811 = vmatpush1.bf16.msra.mxu0 %v2670
  %2812 = vmatprep.subr.bf16.mxu0 %v2680
  %2813 = vmatpush1.bf16.msra.mxu0 %v2679
  %2814 = vmatprep.subr.bf16.mxu0 0
  %2815 = vmatpush1.bf16.msra.mxu0 0
  %2816 = vmatprep.subr.bf16.mxu0 0
  %2817 = vmatpush1.bf16.msra.mxu0 0
  %2818 = vmatprep.subr.bf16.mxu0 0
  %2819 = vmatpush1.bf16.msra.mxu0 0
  %2820 = vmatprep.subr.bf16.mxu0 0
  %2821 = vmatpush1.bf16.msra.mxu0 0
  %2822 = vmatprep.subr.bf16.mxu0 0
  %2823 = vmatpush1.bf16.msra.mxu0 0
  %2824 = vmatprep.subr.bf16.mxu0 0
  %2825 = vmatpush1.bf16.msra.mxu0 0
  %2826 = vmatprep.subr.bf16.mxu0 0
  %2827 = vmatpush1.bf16.msra.mxu0 0
  %2828 = vmatprep.subr.bf16.mxu0 0
  %2829 = vmatpush1.bf16.msra.mxu0 0
  %2830 = vmatprep.subr.bf16.mxu0 0
  %2831 = vmatpush1.bf16.msra.mxu0 0
  %2832 = vmatprep.subr.bf16.mxu0 0
  %2833 = vmatpush1.bf16.msra.mxu0 0
  %2834 = vmatprep.subr.bf16.mxu0 0
  %2835 = vmatpush1.bf16.msra.mxu0 0
  %2836 = vmatprep.subr.bf16.mxu0 0
  %2837 = vmatpush1.bf16.msra.mxu0 0
  %2838 = vmatprep.mubr.bf16.mxu0 0
  %2839 = vmatmul.mubr.bf16.gmra.mrb[0].mxu0 %v2722
  %v2840 = vpop.f32.mrb[0].mxu0
  %v2841 = vadd.f32 0.0, %v2840
  %v2842 = vpop.f32.mrb[0].mxu0
  %v2843 = vadd.f32 0.0, %v2842
  %v2844 = vpop.f32.mrb[0].mxu0
  %v2845 = vpop.f32.mrb[0].mxu0
  %2846 = vdwg.mxu0
  %2847 = vmatprep.subr.bf16.mxu0 %v2655
  %2848 = vmatpush1.bf16.msra.mxu0 %v2654
  %2849 = vmatprep.subr.bf16.mxu0 %v2664
  %2850 = vmatpush1.bf16.msra.mxu0 %v2663
  %2851 = vmatprep.subr.bf16.mxu0 %v2673
  %2852 = vmatpush1.bf16.msra.mxu0 %v2672
  %2853 = vmatprep.subr.bf16.mxu0 %v2682
  %2854 = vmatpush1.bf16.msra.mxu0 %v2681
  %2855 = vmatprep.subr.bf16.mxu0 0
  %2856 = vmatpush1.bf16.msra.mxu0 0
  %2857 = vmatprep.subr.bf16.mxu0 0
  %2858 = vmatpush1.bf16.msra.mxu0 0
  %2859 = vmatprep.subr.bf16.mxu0 0
  %2860 = vmatpush1.bf16.msra.mxu0 0
  %2861 = vmatprep.subr.bf16.mxu0 0
  %2862 = vmatpush1.bf16.msra.mxu0 0
  %2863 = vmatprep.subr.bf16.mxu0 0
  %2864 = vmatpush1.bf16.msra.mxu0 0
  %2865 = vmatprep.subr.bf16.mxu0 0
  %2866 = vmatpush1.bf16.msra.mxu0 0
  %2867 = vmatprep.subr.bf16.mxu0 0
  %2868 = vmatpush1.bf16.msra.mxu0 0
  %2869 = vmatprep.subr.bf16.mxu0 0
  %2870 = vmatpush1.bf16.msra.mxu0 0
  %2871 = vmatprep.subr.bf16.mxu0 0
  %2872 = vmatpush1.bf16.msra.mxu0 0
  %2873 = vmatprep.subr.bf16.mxu0 0
  %2874 = vmatpush1.bf16.msra.mxu0 0
  %2875 = vmatprep.subr.bf16.mxu0 0
  %2876 = vmatpush1.bf16.msra.mxu0 0
  %2877 = vmatprep.subr.bf16.mxu0 0
  %2878 = vmatpush1.bf16.msra.mxu0 0
  %2879 = vmatprep.mubr.bf16.mxu0 0
  %2880 = vmatmul.mubr.bf16.gmra.mrb[0].mxu0 %v2722
  %v2881 = vpop.f32.mrb[0].mxu0
  %v2882 = vadd.f32 0.0, %v2881
  %v2883 = vpop.f32.mrb[0].mxu0
  %v2884 = vadd.f32 0.0, %v2883
  %v2885 = vpop.f32.mrb[0].mxu0
  %v2886 = vpop.f32.mrb[0].mxu0
  %2887 = vdwg.mxu0
  %2888 = vmatprep.subr.bf16.mxu0 0
  %2889 = vmatpush1.bf16.msra.mxu0 %v2656
  %2890 = vmatprep.subr.bf16.mxu0 0
  %2891 = vmatpush1.bf16.msra.mxu0 %v2665
  %2892 = vmatprep.subr.bf16.mxu0 0
  %2893 = vmatpush1.bf16.msra.mxu0 %v2674
  %2894 = vmatprep.subr.bf16.mxu0 0
  %2895 = vmatpush1.bf16.msra.mxu0 %v2683
  %2896 = vmatprep.subr.bf16.mxu0 0
  %2897 = vmatpush1.bf16.msra.mxu0 0
  %2898 = vmatprep.subr.bf16.mxu0 0
  %2899 = vmatpush1.bf16.msra.mxu0 0
  %2900 = vmatprep.subr.bf16.mxu0 0
  %2901 = vmatpush1.bf16.msra.mxu0 0
  %2902 = vmatprep.subr.bf16.mxu0 0
  %2903 = vmatpush1.bf16.msra.mxu0 0
  %2904 = vmatprep.subr.bf16.mxu0 0
  %2905 = vmatpush1.bf16.msra.mxu0 0
  %2906 = vmatprep.subr.bf16.mxu0 0
  %2907 = vmatpush1.bf16.msra.mxu0 0
  %2908 = vmatprep.subr.bf16.mxu0 0
  %2909 = vmatpush1.bf16.msra.mxu0 0
  %2910 = vmatprep.subr.bf16.mxu0 0
  %2911 = vmatpush1.bf16.msra.mxu0 0
  %2912 = vmatprep.subr.bf16.mxu0 0
  %2913 = vmatpush1.bf16.msra.mxu0 0
  %2914 = vmatprep.subr.bf16.mxu0 0
  %2915 = vmatpush1.bf16.msra.mxu0 0
  %2916 = vmatprep.subr.bf16.mxu0 0
  %2917 = vmatpush1.bf16.msra.mxu0 0
  %2918 = vmatprep.subr.bf16.mxu0 0
  %2919 = vmatpush1.bf16.msra.mxu0 0
  %2920 = vmatprep.mubr.bf16.mxu0 0
  %2921 = vmatmul.mubr.bf16.gmra.mrb[0].mxu0 %v2722
  %v2922 = vpop.f32.mrb[0].mxu0
  %v2923 = vadd.f32 0.0, %v2922
  %v2924 = vpop.f32.mrb[0].mxu0
  %v2925 = vpop.f32.mrb[0].mxu0
  %v2926 = vpop.f32.mrb[0].mxu0
  %2927 = vdwg.mxu0
  %v2928 = vpack.c.bf16 %v2759, %v2759
  %v2929 = vpack.c.bf16 %v2761, %v2761
  %v2930 = vpack.c.bf16 %v2800, %v2800
  %v2931 = vpack.c.bf16 %v2802, %v2802
  %v2932 = vpack.c.bf16 %v2841, %v2841
  %v2933 = vpack.c.bf16 %v2843, %v2843
  %v2934 = vpack.c.bf16 %v2882, %v2882
  %v2935 = vpack.c.bf16 %v2884, %v2884
  %v2936 = vpack.c.bf16 %v2923, %v2923
  %v2937 = vld [vmem:[%s7] sm:$0x1]
  %s2938 = scalar_lea.vmem %s7, 1
  %v2939 = vld [vmem:[%s2938] sm:$0x1]
  %vm2940 = vcmask 64512
  %v2942 = vsel %vm2940, %v2939, 0
  %vm2944 = vcmask 1043456
  %v2946 = vsel %vm2944, %v2929, 0
  %2948 = vmatprep.subr.bf16.mxu0 0
  %2949 = vmatpush1.bf16.msra.mxu0 %v2946
  %2950 = vmatprep.subr.bf16.mxu0 0
  %2951 = vmatpush1.bf16.msra.mxu0 0
  %2952 = vmatprep.subr.bf16.mxu0 0
  %2953 = vmatpush1.bf16.msra.mxu0 0
  %2954 = vmatprep.subr.bf16.mxu0 0
  %2955 = vmatpush1.bf16.msra.mxu0 0
  %2956 = vmatprep.subr.bf16.mxu0 0
  %2957 = vmatpush1.bf16.msra.mxu0 0
  %2958 = vmatprep.subr.bf16.mxu0 0
  %2959 = vmatpush1.bf16.msra.mxu0 0
  %2960 = vmatprep.subr.bf16.mxu0 0
  %2961 = vmatpush1.bf16.msra.mxu0 0
  %2962 = vmatprep.subr.bf16.mxu0 0
  %2963 = vmatpush1.bf16.msra.mxu0 0
  %2964 = vmatprep.subr.bf16.mxu0 0
  %2965 = vmatpush1.bf16.msra.mxu0 0
  %2966 = vmatprep.subr.bf16.mxu0 0
  %2967 = vmatpush1.bf16.msra.mxu0 0
  %2968 = vmatprep.subr.bf16.mxu0 0
  %2969 = vmatpush1.bf16.msra.mxu0 0
  %2970 = vmatprep.subr.bf16.mxu0 0
  %2971 = vmatpush1.bf16.msra.mxu0 0
  %2972 = vmatprep.subr.bf16.mxu0 0
  %2973 = vmatpush1.bf16.msra.mxu0 0
  %2974 = vmatprep.subr.bf16.mxu0 0
  %2975 = vmatpush1.bf16.msra.mxu0 0
  %2976 = vmatprep.subr.bf16.mxu0 0
  %2977 = vmatpush1.bf16.msra.mxu0 0
  %2978 = vmatprep.subr.bf16.mxu0 0
  %2979 = vmatpush1.bf16.msra.mxu0 0
  %2980 = vmatprep.mubr.bf16.mxu0 0
  %2981 = vmatmul.mubr.bf16.gmra.mrb[0].mxu0 %v2942
  %v2982 = vpop.f32.mrb[0].mxu0
  %v2983 = vadd.f32 0.0, %v2982
  %v2984 = vpop.f32.mrb[0].mxu0
  %v2985 = vpop.f32.mrb[0].mxu0
  %v2986 = vpop.f32.mrb[0].mxu0
  %2987 = vdwg.mxu0
  %v2989 = vsel %vm2940, %v2937, 0
  %v2992 = vsel %vm2944, %v2928, 0
  %2994 = vmatprep.subr.bf16.mxu0 0
  %2995 = vmatpush1.bf16.msra.mxu0 %v2992
  %2996 = vmatprep.subr.bf16.mxu0 0
  %2997 = vmatpush1.bf16.msra.mxu0 0
  %2998 = vmatprep.subr.bf16.mxu0 0
  %2999 = vmatpush1.bf16.msra.mxu0 0
  %3000 = vmatprep.subr.bf16.mxu0 0
  %3001 = vmatpush1.bf16.msra.mxu0 0
  %3002 = vmatprep.subr.bf16.mxu0 0
  %3003 = vmatpush1.bf16.msra.mxu0 0
  %3004 = vmatprep.subr.bf16.mxu0 0
  %3005 = vmatpush1.bf16.msra.mxu0 0
  %3006 = vmatprep.subr.bf16.mxu0 0
  %3007 = vmatpush1.bf16.msra.mxu0 0
  %3008 = vmatprep.subr.bf16.mxu0 0
  %3009 = vmatpush1.bf16.msra.mxu0 0
  %3010 = vmatprep.subr.bf16.mxu0 0
  %3011 = vmatpush1.bf16.msra.mxu0 0
  %3012 = vmatprep.subr.bf16.mxu0 0
  %3013 = vmatpush1.bf16.msra.mxu0 0
  %3014 = vmatprep.subr.bf16.mxu0 0
  %3015 = vmatpush1.bf16.msra.mxu0 0
  %3016 = vmatprep.subr.bf16.mxu0 0
  %3017 = vmatpush1.bf16.msra.mxu0 0
  %3018 = vmatprep.subr.bf16.mxu0 0
  %3019 = vmatpush1.bf16.msra.mxu0 0
  %3020 = vmatprep.subr.bf16.mxu0 0
  %3021 = vmatpush1.bf16.msra.mxu0 0
  %3022 = vmatprep.subr.bf16.mxu0 0
  %3023 = vmatpush1.bf16.msra.mxu0 0
  %3024 = vmatprep.subr.bf16.mxu0 0
  %3025 = vmatpush1.bf16.msra.mxu0 0
  %3026 = vmatprep.mubr.bf16.mxu0 0
  %3027 = vmatmul.mubr.bf16.gmra.mrb[0].mxu0 %v2989
  %v3028 = vpop.f32.mrb[0].mxu0
  %v3029 = vadd.f32 %v2983, %v3028
  %v3030 = vpop.f32.mrb[0].mxu0
  %v3031 = vpop.f32.mrb[0].mxu0
  %v3032 = vpop.f32.mrb[0].mxu0
  %3033 = vdwg.mxu0
  %s3034 = scalar_lea.vmem %s7, 2
  %v3035 = vld [vmem:[%s3034] sm:$0x1]
  %v3037 = vsel %vm2940, %v3035, 0
  %v3040 = vsel %vm2944, %v2930, 0
  %3042 = vmatprep.subr.bf16.mxu0 0
  %3043 = vmatpush1.bf16.msra.mxu0 %v3040
  %3044 = vmatprep.subr.bf16.mxu0 0
  %3045 = vmatpush1.bf16.msra.mxu0 0
  %3046 = vmatprep.subr.bf16.mxu0 0
  %3047 = vmatpush1.bf16.msra.mxu0 0
  %3048 = vmatprep.subr.bf16.mxu0 0
  %3049 = vmatpush1.bf16.msra.mxu0 0
  %3050 = vmatprep.subr.bf16.mxu0 0
  %3051 = vmatpush1.bf16.msra.mxu0 0
  %3052 = vmatprep.subr.bf16.mxu0 0
  %3053 = vmatpush1.bf16.msra.mxu0 0
  %3054 = vmatprep.subr.bf16.mxu0 0
  %3055 = vmatpush1.bf16.msra.mxu0 0
  %3056 = vmatprep.subr.bf16.mxu0 0
  %3057 = vmatpush1.bf16.msra.mxu0 0
  %3058 = vmatprep.subr.bf16.mxu0 0
  %3059 = vmatpush1.bf16.msra.mxu0 0
  %3060 = vmatprep.subr.bf16.mxu0 0
  %3061 = vmatpush1.bf16.msra.mxu0 0
  %3062 = vmatprep.subr.bf16.mxu0 0
  %3063 = vmatpush1.bf16.msra.mxu0 0
  %3064 = vmatprep.subr.bf16.mxu0 0
  %3065 = vmatpush1.bf16.msra.mxu0 0
  %3066 = vmatprep.subr.bf16.mxu0 0
  %3067 = vmatpush1.bf16.msra.mxu0 0
  %3068 = vmatprep.subr.bf16.mxu0 0
  %3069 = vmatpush1.bf16.msra.mxu0 0
  %3070 = vmatprep.subr.bf16.mxu0 0
  %3071 = vmatpush1.bf16.msra.mxu0 0
  %3072 = vmatprep.subr.bf16.mxu0 0
  %3073 = vmatpush1.bf16.msra.mxu0 0
  %3074 = vmatprep.mubr.bf16.mxu0 0
  %3075 = vmatmul.mubr.bf16.gmra.mrb[0].mxu0 %v3037
  %v3076 = vpop.f32.mrb[0].mxu0
  %v3077 = vadd.f32 0.0, %v3076
  %v3078 = vpop.f32.mrb[0].mxu0
  %v3079 = vpop.f32.mrb[0].mxu0
  %v3080 = vpop.f32.mrb[0].mxu0
  %3081 = vdwg.mxu0
  %v3082 = vadd.f32 %v3029, %v3077
  %s3083 = scalar_lea.vmem %s7, 3
  %v3084 = vld [vmem:[%s3083] sm:$0x1]
  %v3086 = vsel %vm2940, %v3084, 0
  %v3089 = vsel %vm2944, %v2931, 0
  %3091 = vmatprep.subr.bf16.mxu0 0
  %3092 = vmatpush1.bf16.msra.mxu0 %v3089
  %3093 = vmatprep.subr.bf16.mxu0 0
  %3094 = vmatpush1.bf16.msra.mxu0 0
  %3095 = vmatprep.subr.bf16.mxu0 0
  %3096 = vmatpush1.bf16.msra.mxu0 0
  %3097 = vmatprep.subr.bf16.mxu0 0
  %3098 = vmatpush1.bf16.msra.mxu0 0
  %3099 = vmatprep.subr.bf16.mxu0 0
  %3100 = vmatpush1.bf16.msra.mxu0 0
  %3101 = vmatprep.subr.bf16.mxu0 0
  %3102 = vmatpush1.bf16.msra.mxu0 0
  %3103 = vmatprep.subr.bf16.mxu0 0
  %3104 = vmatpush1.bf16.msra.mxu0 0
  %3105 = vmatprep.subr.bf16.mxu0 0
  %3106 = vmatpush1.bf16.msra.mxu0 0
  %3107 = vmatprep.subr.bf16.mxu0 0
  %3108 = vmatpush1.bf16.msra.mxu0 0
  %3109 = vmatprep.subr.bf16.mxu0 0
  %3110 = vmatpush1.bf16.msra.mxu0 0
  %3111 = vmatprep.subr.bf16.mxu0 0
  %3112 = vmatpush1.bf16.msra.mxu0 0
  %3113 = vmatprep.subr.bf16.mxu0 0
  %3114 = vmatpush1.bf16.msra.mxu0 0
  %3115 = vmatprep.subr.bf16.mxu0 0
  %3116 = vmatpush1.bf16.msra.mxu0 0
  %3117 = vmatprep.subr.bf16.mxu0 0
  %3118 = vmatpush1.bf16.msra.mxu0 0
  %3119 = vmatprep.subr.bf16.mxu0 0
  %3120 = vmatpush1.bf16.msra.mxu0 0
  %3121 = vmatprep.subr.bf16.mxu0 0
  %3122 = vmatpush1.bf16.msra.mxu0 0
  %3123 = vmatprep.mubr.bf16.mxu0 0
  %3124 = vmatmul.mubr.bf16.gmra.mrb[0].mxu0 %v3086
  %v3125 = vpop.f32.mrb[0].mxu0
  %v3126 = vadd.f32 0.0, %v3125
  %v3127 = vpop.f32.mrb[0].mxu0
  %v3128 = vpop.f32.mrb[0].mxu0
  %v3129 = vpop.f32.mrb[0].mxu0
  %3130 = vdwg.mxu0
  %v3131 = vadd.f32 %v3082, %v3126
  %s3132 = scalar_lea.vmem %s7, 4
  %v3133 = vld [vmem:[%s3132] sm:$0x1]
  %v3135 = vsel %vm2940, %v3133, 0
  %v3138 = vsel %vm2944, %v2932, 0
  %3140 = vmatprep.subr.bf16.mxu0 0
  %3141 = vmatpush1.bf16.msra.mxu0 %v3138
  %3142 = vmatprep.subr.bf16.mxu0 0
  %3143 = vmatpush1.bf16.msra.mxu0 0
  %3144 = vmatprep.subr.bf16.mxu0 0
  %3145 = vmatpush1.bf16.msra.mxu0 0
  %3146 = vmatprep.subr.bf16.mxu0 0
  %3147 = vmatpush1.bf16.msra.mxu0 0
  %3148 = vmatprep.subr.bf16.mxu0 0
  %3149 = vmatpush1.bf16.msra.mxu0 0
  %3150 = vmatprep.subr.bf16.mxu0 0
  %3151 = vmatpush1.bf16.msra.mxu0 0
  %3152 = vmatprep.subr.bf16.mxu0 0
  %3153 = vmatpush1.bf16.msra.mxu0 0
  %3154 = vmatprep.subr.bf16.mxu0 0
  %3155 = vmatpush1.bf16.msra.mxu0 0
  %3156 = vmatprep.subr.bf16.mxu0 0
  %3157 = vmatpush1.bf16.msra.mxu0 0
  %3158 = vmatprep.subr.bf16.mxu0 0
  %3159 = vmatpush1.bf16.msra.mxu0 0
  %3160 = vmatprep.subr.bf16.mxu0 0
  %3161 = vmatpush1.bf16.msra.mxu0 0
  %3162 = vmatprep.subr.bf16.mxu0 0
  %3163 = vmatpush1.bf16.msra.mxu0 0
  %3164 = vmatprep.subr.bf16.mxu0 0
  %3165 = vmatpush1.bf16.msra.mxu0 0
  %3166 = vmatprep.subr.bf16.mxu0 0
  %3167 = vmatpush1.bf16.msra.mxu0 0
  %3168 = vmatprep.subr.bf16.mxu0 0
  %3169 = vmatpush1.bf16.msra.mxu0 0
  %3170 = vmatprep.subr.bf16.mxu0 0
  %3171 = vmatpush1.bf16.msra.mxu0 0
  %3172 = vmatprep.mubr.bf16.mxu0 0
  %3173 = vmatmul.mubr.bf16.gmra.mrb[0].mxu0 %v3135
  %v3174 = vpop.f32.mrb[0].mxu0
  %v3175 = vadd.f32 0.0, %v3174
  %v3176 = vpop.f32.mrb[0].mxu0
  %v3177 = vpop.f32.mrb[0].mxu0
  %v3178 = vpop.f32.mrb[0].mxu0
  %3179 = vdwg.mxu0
  %v3180 = vadd.f32 %v3131, %v3175
  %s3181 = scalar_lea.vmem %s7, 5
  %v3182 = vld [vmem:[%s3181] sm:$0x1]
  %v3184 = vsel %vm2940, %v3182, 0
  %v3187 = vsel %vm2944, %v2933, 0
  %3189 = vmatprep.subr.bf16.mxu0 0
  %3190 = vmatpush1.bf16.msra.mxu0 %v3187
  %3191 = vmatprep.subr.bf16.mxu0 0
  %3192 = vmatpush1.bf16.msra.mxu0 0
  %3193 = vmatprep.subr.bf16.mxu0 0
  %3194 = vmatpush1.bf16.msra.mxu0 0
  %3195 = vmatprep.subr.bf16.mxu0 0
  %3196 = vmatpush1.bf16.msra.mxu0 0
  %3197 = vmatprep.subr.bf16.mxu0 0
  %3198 = vmatpush1.bf16.msra.mxu0 0
  %3199 = vmatprep.subr.bf16.mxu0 0
  %3200 = vmatpush1.bf16.msra.mxu0 0
  %3201 = vmatprep.subr.bf16.mxu0 0
  %3202 = vmatpush1.bf16.msra.mxu0 0
  %3203 = vmatprep.subr.bf16.mxu0 0
  %3204 = vmatpush1.bf16.msra.mxu0 0
  %3205 = vmatprep.subr.bf16.mxu0 0
  %3206 = vmatpush1.bf16.msra.mxu0 0
  %3207 = vmatprep.subr.bf16.mxu0 0
  %3208 = vmatpush1.bf16.msra.mxu0 0
  %3209 = vmatprep.subr.bf16.mxu0 0
  %3210 = vmatpush1.bf16.msra.mxu0 0
  %3211 = vmatprep.subr.bf16.mxu0 0
  %3212 = vmatpush1.bf16.msra.mxu0 0
  %3213 = vmatprep.subr.bf16.mxu0 0
  %3214 = vmatpush1.bf16.msra.mxu0 0
  %3215 = vmatprep.subr.bf16.mxu0 0
  %3216 = vmatpush1.bf16.msra.mxu0 0
  %3217 = vmatprep.subr.bf16.mxu0 0
  %3218 = vmatpush1.bf16.msra.mxu0 0
  %3219 = vmatprep.subr.bf16.mxu0 0
  %3220 = vmatpush1.bf16.msra.mxu0 0
  %3221 = vmatprep.mubr.bf16.mxu0 0
  %3222 = vmatmul.mubr.bf16.gmra.mrb[0].mxu0 %v3184
  %v3223 = vpop.f32.mrb[0].mxu0
  %v3224 = vadd.f32 0.0, %v3223
  %v3225 = vpop.f32.mrb[0].mxu0
  %v3226 = vpop.f32.mrb[0].mxu0
  %v3227 = vpop.f32.mrb[0].mxu0
  %3228 = vdwg.mxu0
  %v3229 = vadd.f32 %v3180, %v3224
  %s3230 = scalar_lea.vmem %s7, 6
  %v3231 = vld [vmem:[%s3230] sm:$0x1]
  %v3233 = vsel %vm2940, %v3231, 0
  %v3236 = vsel %vm2944, %v2934, 0
  %3238 = vmatprep.subr.bf16.mxu0 0
  %3239 = vmatpush1.bf16.msra.mxu0 %v3236
  %3240 = vmatprep.subr.bf16.mxu0 0
  %3241 = vmatpush1.bf16.msra.mxu0 0
  %3242 = vmatprep.subr.bf16.mxu0 0
  %3243 = vmatpush1.bf16.msra.mxu0 0
  %3244 = vmatprep.subr.bf16.mxu0 0
  %3245 = vmatpush1.bf16.msra.mxu0 0
  %3246 = vmatprep.subr.bf16.mxu0 0
  %3247 = vmatpush1.bf16.msra.mxu0 0
  %3248 = vmatprep.subr.bf16.mxu0 0
  %3249 = vmatpush1.bf16.msra.mxu0 0
  %3250 = vmatprep.subr.bf16.mxu0 0
  %3251 = vmatpush1.bf16.msra.mxu0 0
  %3252 = vmatprep.subr.bf16.mxu0 0
  %3253 = vmatpush1.bf16.msra.mxu0 0
  %3254 = vmatprep.subr.bf16.mxu0 0
  %3255 = vmatpush1.bf16.msra.mxu0 0
  %3256 = vmatprep.subr.bf16.mxu0 0
  %3257 = vmatpush1.bf16.msra.mxu0 0
  %3258 = vmatprep.subr.bf16.mxu0 0
  %3259 = vmatpush1.bf16.msra.mxu0 0
  %3260 = vmatprep.subr.bf16.mxu0 0
  %3261 = vmatpush1.bf16.msra.mxu0 0
  %3262 = vmatprep.subr.bf16.mxu0 0
  %3263 = vmatpush1.bf16.msra.mxu0 0
  %3264 = vmatprep.subr.bf16.mxu0 0
  %3265 = vmatpush1.bf16.msra.mxu0 0
  %3266 = vmatprep.subr.bf16.mxu0 0
  %3267 = vmatpush1.bf16.msra.mxu0 0
  %3268 = vmatprep.subr.bf16.mxu0 0
  %3269 = vmatpush1.bf16.msra.mxu0 0
  %3270 = vmatprep.mubr.bf16.mxu0 0
  %3271 = vmatmul.mubr.bf16.gmra.mrb[0].mxu0 %v3233
  %v3272 = vpop.f32.mrb[0].mxu0
  %v3273 = vadd.f32 0.0, %v3272
  %v3274 = vpop.f32.mrb[0].mxu0
  %v3275 = vpop.f32.mrb[0].mxu0
  %v3276 = vpop.f32.mrb[0].mxu0
  %3277 = vdwg.mxu0
  %v3278 = vadd.f32 %v3229, %v3273
  %s3279 = scalar_lea.vmem %s7, 7
  %v3280 = vld [vmem:[%s3279] sm:$0x1]
  %v3282 = vsel %vm2940, %v3280, 0
  %v3285 = vsel %vm2944, %v2935, 0
  %3287 = vmatprep.subr.bf16.mxu0 0
  %3288 = vmatpush1.bf16.msra.mxu0 %v3285
  %3289 = vmatprep.subr.bf16.mxu0 0
  %3290 = vmatpush1.bf16.msra.mxu0 0
  %3291 = vmatprep.subr.bf16.mxu0 0
  %3292 = vmatpush1.bf16.msra.mxu0 0
  %3293 = vmatprep.subr.bf16.mxu0 0
  %3294 = vmatpush1.bf16.msra.mxu0 0
  %3295 = vmatprep.subr.bf16.mxu0 0
  %3296 = vmatpush1.bf16.msra.mxu0 0
  %3297 = vmatprep.subr.bf16.mxu0 0
  %3298 = vmatpush1.bf16.msra.mxu0 0
  %3299 = vmatprep.subr.bf16.mxu0 0
  %3300 = vmatpush1.bf16.msra.mxu0 0
  %3301 = vmatprep.subr.bf16.mxu0 0
  %3302 = vmatpush1.bf16.msra.mxu0 0
  %3303 = vmatprep.subr.bf16.mxu0 0
  %3304 = vmatpush1.bf16.msra.mxu0 0
  %3305 = vmatprep.subr.bf16.mxu0 0
  %3306 = vmatpush1.bf16.msra.mxu0 0
  %3307 = vmatprep.subr.bf16.mxu0 0
  %3308 = vmatpush1.bf16.msra.mxu0 0
  %3309 = vmatprep.subr.bf16.mxu0 0
  %3310 = vmatpush1.bf16.msra.mxu0 0
  %3311 = vmatprep.subr.bf16.mxu0 0
  %3312 = vmatpush1.bf16.msra.mxu0 0
  %3313 = vmatprep.subr.bf16.mxu0 0
  %3314 = vmatpush1.bf16.msra.mxu0 0
  %3315 = vmatprep.subr.bf16.mxu0 0
  %3316 = vmatpush1.bf16.msra.mxu0 0
  %3317 = vmatprep.subr.bf16.mxu0 0
  %3318 = vmatpush1.bf16.msra.mxu0 0
  %3319 = vmatprep.mubr.bf16.mxu0 0
  %3320 = vmatmul.mubr.bf16.gmra.mrb[0].mxu0 %v3282
  %v3321 = vpop.f32.mrb[0].mxu0
  %v3322 = vadd.f32 0.0, %v3321
  %v3323 = vpop.f32.mrb[0].mxu0
  %v3324 = vpop.f32.mrb[0].mxu0
  %v3325 = vpop.f32.mrb[0].mxu0
  %3326 = vdwg.mxu0
  %v3327 = vadd.f32 %v3278, %v3322
  %s3328 = scalar_lea.vmem %s7, 8
  %v3329 = vld [vmem:[%s3328] sm:$0x1]
  %v3331 = vsel %vm2940, %v3329, 0
  %v3334 = vsel %vm2944, %v2936, 0
  %3336 = vmatprep.subr.bf16.mxu0 0
  %3337 = vmatpush1.bf16.msra.mxu0 %v3334
  %3338 = vmatprep.subr.bf16.mxu0 0
  %3339 = vmatpush1.bf16.msra.mxu0 0
  %3340 = vmatprep.subr.bf16.mxu0 0
  %3341 = vmatpush1.bf16.msra.mxu0 0
  %3342 = vmatprep.subr.bf16.mxu0 0
  %3343 = vmatpush1.bf16.msra.mxu0 0
  %3344 = vmatprep.subr.bf16.mxu0 0
  %3345 = vmatpush1.bf16.msra.mxu0 0
  %3346 = vmatprep.subr.bf16.mxu0 0
  %3347 = vmatpush1.bf16.msra.mxu0 0
  %3348 = vmatprep.subr.bf16.mxu0 0
  %3349 = vmatpush1.bf16.msra.mxu0 0
  %3350 = vmatprep.subr.bf16.mxu0 0
  %3351 = vmatpush1.bf16.msra.mxu0 0
  %3352 = vmatprep.subr.bf16.mxu0 0
  %3353 = vmatpush1.bf16.msra.mxu0 0
  %3354 = vmatprep.subr.bf16.mxu0 0
  %3355 = vmatpush1.bf16.msra.mxu0 0
  %3356 = vmatprep.subr.bf16.mxu0 0
  %3357 = vmatpush1.bf16.msra.mxu0 0
  %3358 = vmatprep.subr.bf16.mxu0 0
  %3359 = vmatpush1.bf16.msra.mxu0 0
  %3360 = vmatprep.subr.bf16.mxu0 0
  %3361 = vmatpush1.bf16.msra.mxu0 0
  %3362 = vmatprep.subr.bf16.mxu0 0
  %3363 = vmatpush1.bf16.msra.mxu0 0
  %3364 = vmatprep.subr.bf16.mxu0 0
  %3365 = vmatpush1.bf16.msra.mxu0 0
  %3366 = vmatprep.subr.bf16.mxu0 0
  %3367 = vmatpush1.bf16.msra.mxu0 0
  %3368 = vmatprep.mubr.bf16.mxu0 0
  %3369 = vmatmul.mubr.bf16.gmra.mrb[0].mxu0 %v3331
  %v3370 = vpop.f32.mrb[0].mxu0
  %v3371 = vadd.f32 0.0, %v3370
  %v3372 = vpop.f32.mrb[0].mxu0
  %v3373 = vpop.f32.mrb[0].mxu0
  %v3374 = vpop.f32.mrb[0].mxu0
  %3375 = vdwg.mxu0
  %v3376 = vadd.f32 %v3327, %v3371
  %v3377 = vld [vmem:[%s9 + $0x7] sm:$0x1]
  %v3378 = vlaneseq
  %v3379 = vshrl.u32 %v3378, 7
  %v3380 = vsub.s32 0, %v3379
  %v3381 = vrot.slane %v3377, %v3380
  %v3382 = vadd.f32 %v3376, %v3381
  %v3383 = vmul.f32 %v3382, 0.2
  %v3384 = vmax.f32 %v3382, %v3383
  %v3385 = vld [vmem:[%s9 + $0x8] sm:$0x1]
  %v3386 = vlaneseq
  %v3387 = vshrl.u32 %v3386, 7
  %v3388 = vsub.s32 0, %v3387
  %v3389 = vrot.slane %v3385, %v3388
  %v3390 = vmul.f32 %v3384, %v3389
  %v3391 = vld [vmem:[%s9 + $0x9] sm:$0x1]
  %v3392 = vlaneseq
  %v3393 = vshrl.u32 %v3392, 7
  %v3394 = vsub.s32 0, %v3393
  %v3395 = vrot.slane %v3391, %v3394
  %v3396 = vadd.f32 %v3390, %v3395
  %v3397 = vpack.c.bf16 %v3396, %v3396
  %v3398 = vld [vmem:[%s8] sm:$0xf]
  %v3399 = vld [vmem:[%s8 + $0x4] sm:$0xf]
  %v3400 = vld [vmem:[%s8 + $0x8] sm:$0xf]
  %v3401 = vld [vmem:[%s8 + $0xc] sm:$0xf]
  %v3402 = vld [vmem:[%s8 + $0x10] sm:$0xf]
  %v3403 = vld [vmem:[%s8 + $0x14] sm:$0xf]
  %v3404 = vld [vmem:[%s8 + $0x18] sm:$0xf]
  %v3405 = vld [vmem:[%s8 + $0x1c] sm:$0xf]
  %v3406 = vld [vmem:[%s8 + $0x20] sm:$0xf]
  %v3407 = vld [vmem:[%s8 + $0x24] sm:$0xf]
  %v3408 = vld [vmem:[%s8 + $0x28] sm:$0xf]
  %v3409 = vld [vmem:[%s8 + $0x2c] sm:$0xf]
  %v3410 = vld [vmem:[%s8 + $0x30] sm:$0xf]
  %v3411 = vld [vmem:[%s8 + $0x34] sm:$0xf]
  %v3412 = vld [vmem:[%s8 + $0x38] sm:$0xf]
  %v3413 = vld [vmem:[%s8 + $0x3c] sm:$0xf]
  %v3414 = vld [vmem:[%s9 + $0xa] sm:$0x1]
  %v3415 = vlaneseq
  %v3416 = vshrl.u32 %v3415, 7
  %v3417 = vsub.s32 0, %v3416
  %v3418 = vrot.slane %v3414, %v3417
  %v3435 = vunpack.c.l.b16 %v3398
  %v3436 = vunpack.c.l.b16 %v3399
  %v3437 = vunpack.c.l.b16 %v3400
  %v3438 = vunpack.c.l.b16 %v3401
  %v3439 = vunpack.c.l.b16 %v3402
  %v3440 = vunpack.c.l.b16 %v3403
  %v3441 = vunpack.c.l.b16 %v3404
  %v3442 = vunpack.c.l.b16 %v3405
  %v3443 = vunpack.c.l.b16 %v3406
  %v3444 = vunpack.c.l.b16 %v3407
  %v3445 = vunpack.c.l.b16 %v3408
  %v3446 = vunpack.c.l.b16 %v3409
  %v3447 = vunpack.c.l.b16 %v3410
  %v3448 = vunpack.c.l.b16 %v3411
  %v3449 = vunpack.c.l.b16 %v3412
  %v3450 = vunpack.c.l.b16 %v3413
  %v3451 = vpack.c.b16 %v3436, %v3435
  %v3452 = vpack.c.b16 %v3438, %v3437
  %v3453 = vpack.c.b16 %v3440, %v3439
  %v3454 = vpack.c.b16 %v3442, %v3441
  %v3455 = vpack.c.b16 %v3444, %v3443
  %v3456 = vpack.c.b16 %v3446, %v3445
  %v3457 = vpack.c.b16 %v3448, %v3447
  %v3458 = vpack.c.b16 %v3450, %v3449
  %3467 = vmatprep.subr.bf16.mxu0 0
  %3468 = vmatpush1.bf16.msra.mxu0 %v3451
  %3469 = vmatprep.subr.bf16.mxu0 0
  %3470 = vmatpush1.bf16.msra.mxu0 %v3452
  %3471 = vmatprep.subr.bf16.mxu0 0
  %3472 = vmatpush1.bf16.msra.mxu0 %v3453
  %3473 = vmatprep.subr.bf16.mxu0 0
  %3474 = vmatpush1.bf16.msra.mxu0 %v3454
  %3475 = vmatprep.subr.bf16.mxu0 0
  %3476 = vmatpush1.bf16.msra.mxu0 %v3455
  %3477 = vmatprep.subr.bf16.mxu0 0
  %3478 = vmatpush1.bf16.msra.mxu0 %v3456
  %3479 = vmatprep.subr.bf16.mxu0 0
  %3480 = vmatpush1.bf16.msra.mxu0 %v3457
  %3481 = vmatprep.subr.bf16.mxu0 0
  %3482 = vmatpush1.bf16.msra.mxu0 %v3458
  %3483 = vmatprep.subr.bf16.mxu0 0
  %3484 = vmatpush1.bf16.msra.mxu0 0
  %3485 = vmatprep.subr.bf16.mxu0 0
  %3486 = vmatpush1.bf16.msra.mxu0 0
  %3487 = vmatprep.subr.bf16.mxu0 0
  %3488 = vmatpush1.bf16.msra.mxu0 0
  %3489 = vmatprep.subr.bf16.mxu0 0
  %3490 = vmatpush1.bf16.msra.mxu0 0
  %3491 = vmatprep.subr.bf16.mxu0 0
  %3492 = vmatpush1.bf16.msra.mxu0 0
  %3493 = vmatprep.subr.bf16.mxu0 0
  %3494 = vmatpush1.bf16.msra.mxu0 0
  %3495 = vmatprep.subr.bf16.mxu0 0
  %3496 = vmatpush1.bf16.msra.mxu0 0
  %3497 = vmatprep.subr.bf16.mxu0 0
  %3498 = vmatpush1.bf16.msra.mxu0 0
  %3499 = vmatprep.mubr.bf16.mxu0 0
  %3500 = vmatmul.mubr.bf16.gmra.mrb[0].mxu0 %v3397
  %v3501 = vpop.f32.mrb[0].mxu0
  %v3502 = vadd.f32 %v3418, %v3501
  %v3503 = vpop.f32.mrb[0].mxu0
  %v3504 = vpop.f32.mrb[0].mxu0
  %v3505 = vpop.f32.mrb[0].mxu0
  %3506 = vdwg.mxu0
  %v3507 = vsub.f32 0.0, %v3502
  %v3508 = vmul.f32 %v3507, 1.442695
  %v3509 = vpow.pop %v3508
  %v3510 = vadd.f32 %v3509, 1.0
  %v3511 = vrcp.pop %v3510
  %v3512 = vmul.f32 1.0, %v3511
  %3513 = vst [vmem:[%s10] sm:$0x3] %v3512
  // Predicated region
  $region42: #{discriminator_forward.1} parent=0 // pred_check
    _
  $region43: #{discriminator_forward.1} parent=0 // pred_check_branch
    %3515 = sbr.rel (0) target = $region45
  $region44: #{discriminator_forward.1} parent=0 // pred_region
    _
  $region45: #{discriminator_forward.1} parent=0 // pred_fallthru
    _
  // Predicated region
  $region46: #{discriminator_forward.1} parent=0 // pred_check
    _
  $region47: #{discriminator_forward.1} parent=0 // pred_check_branch
    %3517 = sbr.rel (0) target = $region49
  $region48: #{discriminator_forward.1} parent=0 // pred_region
    _
  $region49: #{discriminator_forward.1} parent=0 // pred_fallthru
    _

</llo_original>
